<compile_context>
chip_gen: v5e
topology: v5e:2x2
jax: 0.10.0
libtpu: 0.0.40
codegen_flags: <defaults>
</compile_context>

<pallas_src>
import math
import numpy as np
import jax
import jax.numpy as jnp
from jax.experimental import pallas as pl
from jax.experimental.pallas import tpu as pltpu

N_FFT = 400
HOP = 200                       # torchaudio default: win_length // 2
N_FREQ = N_FFT // 2 + 1         # 201
N_FREQ_PAD = 256                # lane-aligned freq bins (201 zero-padded to 256)
TWO_FP = 2 * N_FREQ_PAD         # 512  (re | im), lane aligned
HOP_PAD = 256                   # lane-aligned half-frame slot in the iSTFT output
MASK_TILE = 8192                # lanes per grid step of the masking kernel
VMEM_LIMIT = 32 * 1024 * 1024   # explicit scoped-VMEM budget (safe on v5e/v6e/v7x)


def _pick_frame_tile():
    # MXU M-dim per tile: HALF=128 saturates v5e's 128-wide MXU; v6e/v7x have
    # 256-wide MXUs so use HALF=256 (FRAME_TILE=512).  Per-tile VMEM stays < ~5 MB.
    try:
        kind = jax.devices()[0].device_kind.lower()
        if ("v6" in kind) or ("v7" in kind) or ("7x" in kind):
            return 512
    except Exception:
        pass
    return 256


FRAME_TILE = _pick_frame_tile()  # frames per STFT/iSTFT grid step (even)
HALF = FRAME_TILE // 2           # even/odd frame pairs per STFT grid step


# --------------------------- host-side constant bases ----------------------------

def _hann_np(n):
    k = np.arange(n, dtype=np.float64)
    return 0.5 * (1.0 - np.cos(2.0 * np.pi * k / n))


def _stft_basis():
    """(N_FFT, TWO_FP) windowed forward-DFT basis, bf16, freq bins zero-padded.

    Angles use integer (n*k) % N_FFT reduction before the float multiply so the
    basis matches an exact DFT to float64 precision before the bf16 cast."""
    n = np.arange(N_FFT, dtype=np.int64)[:, None]
    k = np.arange(N_FREQ, dtype=np.int64)[None, :]
    ang = 2.0 * np.pi * ((n * k) % N_FFT).astype(np.float64) / N_FFT
    win = _hann_np(N_FFT)[:, None]
    basis = np.zeros((N_FFT, TWO_FP), np.float64)
    basis[:, :N_FREQ] = win * np.cos(ang)                     # re
    basis[:, N_FREQ_PAD:N_FREQ_PAD + N_FREQ] = -win * np.sin(ang)   # im
    return jnp.asarray(basis, dtype=jnp.bfloat16)


def _istft_basis():
    """(TWO_FP, 2*HOP_PAD) inverse-DFT basis, synthesis window + 1/N folded in, bf16.

    Columns [0:HOP) hold within-frame samples [0,HOP); columns [HOP_PAD:HOP_PAD+HOP)
    hold samples [HOP,N_FFT) so the kernel's first/second half split is lane-aligned."""
    k = np.arange(N_FREQ, dtype=np.int64)[:, None]
    n = np.arange(N_FFT, dtype=np.int64)[None, :]
    ang = 2.0 * np.pi * ((k * n) % N_FFT).astype(np.float64) / N_FFT
    w = np.where((k == 0) | (k == N_FFT // 2), 1.0, 2.0) / N_FFT
    win = _hann_np(N_FFT)[None, :]
    c = w * np.cos(ang) * win          # (201, 400)
    s = -w * np.sin(ang) * win
    basis = np.zeros((TWO_FP, 2 * HOP_PAD), np.float64)
    basis[:N_FREQ, :HOP] = c[:, :HOP]
    basis[:N_FREQ, HOP_PAD:HOP_PAD + HOP] = c[:, HOP:]
    basis[N_FREQ_PAD:N_FREQ_PAD + N_FREQ, :HOP] = s[:, :HOP]
    basis[N_FREQ_PAD:N_FREQ_PAD + N_FREQ, HOP_PAD:HOP_PAD + HOP] = s[:, HOP:]
    return jnp.asarray(basis, dtype=jnp.bfloat16)


def _inv_env():
    """(1, HOP_PAD) reciprocal Hann^2 overlap-add envelope for the trimmed interior.

    For Hann with 50% overlap the interior envelope is in [0.5, 1.0], never near
    zero, so no eps clamp is needed (matches torchaudio's clamped divide)."""
    w2 = _hann_np(N_FFT) ** 2
    env = w2[:HOP] + w2[HOP:]
    v = np.zeros((1, HOP_PAD), np.float32)
    v[0, :HOP] = 1.0 / env
    return jnp.asarray(v)


# --------------------------------- Pallas kernels ---------------------------------

def _stft_kernel(ev_ref, od_ref, basis_ref, o_ref):
    # ev_ref / od_ref : (1, HALF, N_FFT)  bf16   even / odd frames of this tile
    # basis_ref       : (N_FFT, TWO_FP)   bf16   windowed DFT basis (resident)
    # o_ref           : (1, HALF, 2*TWO_FP) f32  [even-frame spec | odd-frame spec]
    frames = jnp.concatenate([ev_ref[0], od_ref[0]], axis=0)   # (FRAME_TILE, N_FFT)
    res = jnp.dot(frames, basis_ref[...], preferred_element_type=jnp.float32)
    o_ref[0, :, :TWO_FP] = res[:HALF]       # even frames, lane-aligned store
    o_ref[0, :, TWO_FP:] = res[HALF:]       # odd frames,  lane-aligned store


def _istft_kernel(s_ref, basis_ref, env_ref, o_ref, carry_ref):
    # s_ref     : (1, FRAME_TILE, TWO_FP)     bf16  spectrogram frames of this tile
    # basis_ref : (TWO_FP, 2*HOP_PAD)         bf16  inverse basis (resident)
    # env_ref   : (1, HOP_PAD)                f32   1 / Hann^2 OLA envelope
    # o_ref     : (1, FRAME_TILE, HOP_PAD)    f32   overlap-added, normalised samples
    # carry_ref : (1, HOP_PAD)                f32   HOP-sample tail carried across tiles
    j = pl.program_id(1)

    @pl.when(j == 0)
    def _():
        carry_ref[...] = jnp.zeros_like(carry_ref)

    fr = jnp.dot(s_ref[0], basis_ref[...], preferred_element_type=jnp.float32)
    first = fr[:, :HOP_PAD]                 # samples [0, HOP)   of each frame
    second = fr[:, HOP_PAD:]                # samples [HOP, 400) of each frame
    prev = pltpu.roll(second, shift=1, axis=0)            # prev[k] = second[k-1]
    row0 = jax.lax.broadcasted_iota(jnp.int32, (FRAME_TILE, HOP_PAD), 0) == 0
    prev = jnp.where(row0, carry_ref[...], prev)           # row 0 <- previous tile tail
    o_ref[0] = (prev + first) * env_ref[...]
    carry_ref[...] = second[FRAME_TILE - 1:, :]             # tail for the next tile


def _mask_kernel(x_ref, row_ref, col_ref, o_ref):
    # x_ref (B, tile) * row_ref (B, 1) * col_ref (1, tile) -> o_ref (B, tile)
    o_ref[...] = x_ref[...] * row_ref[...] * col_ref[...]


# ------------------------------- kernel wrappers -----------------------------------

def stft_pallas(x, basis):
    """(B, T) f32 waveform -> ((B, n_pad_frames, TWO_FP) f32 spectrogram, n_frames)."""
    B, T = x.shape
    n_frames = 1 + T // HOP
    n_tiles = pl.cdiv(n_frames, FRAME_TILE)
    pad = N_FFT // 2
    xp = jnp.pad(x, ((0, 0), (pad, pad)), mode="reflect")
    need = n_tiles * FRAME_TILE * HOP + HOP
    if xp.shape[1] < need:
        xp = jnp.pad(xp, ((0, 0), (0, need - xp.shape[1])))
    xb = xp.astype(jnp.bfloat16)            # bf16 on the host: halves STFT input DMA
    # Two free views: even frames (stride N_FFT) and odd frames (same, shifted by HOP).
    ev = xb[:, :n_tiles * FRAME_TILE * HOP].reshape(B, n_tiles * HALF, N_FFT)
    od = xb[:, HOP:HOP + n_tiles * FRAME_TILE * HOP].reshape(B, n_tiles * HALF, N_FFT)

    out = pl.pallas_call(
        _stft_kernel,
        out_shape=jax.ShapeDtypeStruct((B, n_tiles * HALF, 2 * TWO_FP), jnp.float32),
        grid=(B, n_tiles),
        in_specs=[pl.BlockSpec((1, HALF, N_FFT), lambda b, j: (b, j, 0)),
                  pl.BlockSpec((1, HALF, N_FFT), lambda b, j: (b, j, 0)),
                  pl.BlockSpec((N_FFT, TWO_FP), lambda b, j: (0, 0))],
        out_specs=pl.BlockSpec((1, HALF, 2 * TWO_FP), lambda b, j: (b, j, 0)),
        compiler_params=pltpu.CompilerParams(
            dimension_semantics=("parallel", "parallel"),
            vmem_limit_bytes=VMEM_LIMIT),
    )(ev, od, basis)
    # Free reshape: paired (even|odd) lane layout -> natural frame order (no data move).
    spec = out.reshape(B, n_tiles * FRAME_TILE, TWO_FP)
    return spec, n_frames


def istft_pallas(spec, basis, inv_env):
    """(B, T, TWO_FP) bf16 spectrogram -> (B, HOP*(T-1)) f32 waveform.

    Overlap-add, Hann^2 normalisation and the center trim are fused into the kernel
    (HOP == N_FFT/2 so each sample mixes only two frames; the boundary half-frame is
    carried across tiles in VMEM scratch along the sequential frame grid axis)."""
    B, T_sp, _ = spec.shape
    n_tiles = pl.cdiv(T_sp, FRAME_TILE)
    T_pad = n_tiles * FRAME_TILE
    spec = jnp.pad(spec, ((0, 0), (0, T_pad - T_sp), (0, 0)))

    out = pl.pallas_call(
        _istft_kernel,
        out_shape=jax.ShapeDtypeStruct((B, T_pad, HOP_PAD), jnp.float32),
        grid=(B, n_tiles),
        in_specs=[pl.BlockSpec((1, FRAME_TILE, TWO_FP), lambda b, j: (b, j, 0)),
                  pl.BlockSpec((TWO_FP, 2 * HOP_PAD), lambda b, j: (0, 0)),
                  pl.BlockSpec((1, HOP_PAD), lambda b, j: (0, 0))],
        out_specs=pl.BlockSpec((1, FRAME_TILE, HOP_PAD), lambda b, j: (b, j, 0)),
        scratch_shapes=[pltpu.VMEM((1, HOP_PAD), jnp.float32)],
        compiler_params=pltpu.CompilerParams(
            dimension_semantics=("parallel", "arbitrary"),
            vmem_limit_bytes=VMEM_LIMIT),
    )(spec, basis, inv_env)
    # Row r (r>=1) holds samples [r*HOP : (r+1)*HOP) of the center-trimmed waveform;
    # row 0 and rows >= T_sp correspond to the trimmed / padded boundary.
    return out[:, 1:T_sp, :HOP].reshape(B, (T_sp - 1) * HOP)


def pallas_mask_mul(x, row_keep, col_keep):
    """x (B, L) f32  *  row_keep (B, 1)  *  col_keep (1, L), mask built in-kernel."""
    B, L = x.shape
    tile = L if L <= MASK_TILE else MASK_TILE
    return pl.pallas_call(
        _mask_kernel,
        out_shape=jax.ShapeDtypeStruct((B, L), jnp.float32),
        grid=(pl.cdiv(L, tile),),
        in_specs=[pl.BlockSpec((B, tile), lambda i: (0, i)),
                  pl.BlockSpec((B, 1), lambda i: (0, 0)),
                  pl.BlockSpec((1, tile), lambda i: (0, i))],
        out_specs=pl.BlockSpec((B, tile), lambda i: (0, i)),
        compiler_params=pltpu.CompilerParams(
            dimension_semantics=("parallel",),
            vmem_limit_bytes=VMEM_LIMIT),
    )(x, row_keep, col_keep)


# ----------------------------------- plain-JAX glue --------------------------------

def phase_vocoder(spec, n_valid, rate):
    """torchaudio.functional.phase_vocoder on (B, frames, freq) layout.

    `spec` may carry padded frames beyond `n_valid`; they are treated as the zero
    frames torchaudio pads with.  Zero-padded frequency lanes (201..255) stay zero.
    Returns the time-stretched spectrogram in bf16, re|im concatenated on lanes."""
    # TODO(synk): this stage (gather + serial cumsum + transcendentals) stays in plain
    # JAX; a Pallas version would need scalar-prefetch frame gathers and a sequential
    # phase carry and is left for a follow-up.
    B, n_pad, _ = spec.shape
    re = spec[..., :N_FREQ_PAD]
    im = spec[..., N_FREQ_PAD:]
    phase_advance = (jnp.arange(N_FREQ_PAD, dtype=jnp.float32)
                     * (math.pi * HOP / (N_FFT // 2)))[None, None, :]
    n_out = int(math.ceil(n_valid / rate))
    time_steps = jnp.arange(n_out, dtype=jnp.float32) * rate
    alphas = jnp.mod(time_steps, 1.0)[None, :, None]
    idx = time_steps.astype(jnp.int32)                 # always < n_valid

    phase_0 = jnp.arctan2(im[:, :1, :], re[:, :1, :])

    re0, im0 = re[:, idx, :], im[:, idx, :]
    valid1 = (idx + 1 < n_valid)[None, :, None]        # frame n_valid acts as zeros
    idx1 = jnp.minimum(idx + 1, n_pad - 1)
    re1 = jnp.where(valid1, re[:, idx1, :], 0.0)
    im1 = jnp.where(valid1, im[:, idx1, :], 0.0)

    ang0 = jnp.arctan2(im0, re0)
    ang1 = jnp.arctan2(im1, re1)
    norm0 = jnp.sqrt(re0 * re0 + im0 * im0)
    norm1 = jnp.sqrt(re1 * re1 + im1 * im1)

    phase = ang1 - ang0 - phase_advance
    phase = phase - 2.0 * jnp.pi * jnp.round(phase / (2.0 * jnp.pi))
    phase = phase + phase_advance
    phase = jnp.concatenate([phase_0, phase[:, :-1, :]], axis=1)
    phase_acc = jnp.cumsum(phase, axis=1)

    mag = alphas * norm1 + (1.0 - alphas) * norm0
    re_o = (mag * jnp.cos(phase_acc)).astype(jnp.bfloat16)
    im_o = (mag * jnp.sin(phase_acc)).astype(jnp.bfloat16)
    return jnp.concatenate([re_o, im_o], axis=-1)      # (B, n_out, TWO_FP) bf16


@jax.jit
def _time_stretch(x, stft_basis, istft_basis, inv_env):
    spec, n_frames = stft_pallas(x, stft_basis)
    spec_ts = phase_vocoder(spec, n_frames, 0.9)
    return istft_pallas(spec_ts, istft_basis, inv_env)


# --------------------------------- SpecAugment module ------------------------------

class SpecAugmentPallas:
    def __init__(self, rate, policy=3, freq_mask=15, time_mask=35,
                 overriding_rate=0.8, seed=1234):
        self.rate = rate
        self.overriding_rate = overriding_rate
        self.freq_mask = freq_mask
        self.time_mask = time_mask
        # TODO(synk): host-side torch.rand(...).item() policy branching has no
        # in-kernel equivalent; reproduced with a deterministic numpy RNG.
        self._rng = np.random.RandomState(seed)
        self._stft_b = _stft_basis()
        self._istft_b = _istft_basis()
        self._inv_env = _inv_env()
        self._forward = {1: self.policy1, 2: self.policy2, 3: self.policy3}[policy]

    def __call__(self, x):
        return self._forward(x)

    def apply_time_stretch(self, x):
        return _time_stretch(x, self._stft_b, self._istft_b, self._inv_env)

    def policy1(self, x):
        probability = self._rng.rand()
        x = self.apply_time_stretch(x)
        if self.rate > probability:
            return self._spec_aug(x, n_pairs=1)
        return x

    def policy2(self, x):
        probability = self._rng.rand()
        x = self.apply_time_stretch(x)
        if self.rate > probability:
            return self._spec_aug(x, n_pairs=2)
        return x

    def policy3(self, x):
        # Faithful to the reference: policy3 stretches once and then delegates to
        # policy1/policy2, which stretch again (net 0.9^2 time-stretch).
        probability = self._rng.rand()
        x = self.apply_time_stretch(x)
        if probability > 0.5:
            return self.policy1(x)
        return self.policy2(x)

    # torchaudio mask_along_axis semantics (mask_value = 0); on the 2-D waveform
    # returned by InverseSpectrogram the "frequency" axis is axis 0 (batch) and the
    # "time" axis is axis 1, exactly as torchaudio reshapes a 2-D input.
    def _axis_keep(self, size, mask_param):
        value = self._rng.rand() * mask_param
        min_value = self._rng.rand() * (size - value)
        start = int(min_value)
        end = int(min_value + value)
        idx = np.arange(size)
        keep = ~((idx >= start) & (idx < end))
        return keep.astype(np.float32)

    def _spec_aug(self, x, n_pairs):
        B, L = x.shape
        row_keep = np.ones((B,), np.float32)
        col_keep = np.ones((L,), np.float32)
        for _ in range(n_pairs):
            row_keep *= self._axis_keep(B, self.freq_mask)   # FrequencyMasking
            col_keep *= self._axis_keep(L, self.time_mask)   # TimeMasking
        return pallas_mask_mul(x,
                               jnp.asarray(row_keep)[:, None],
                               jnp.asarray(col_keep)[None, :])


if __name__ == "__main__":
    key = jax.random.PRNGKey(0)
    B, T = 2, 4000                       # small waveform batch (batch, time)
    x = jax.random.normal(key, (B, T), dtype=jnp.float32)

    module = SpecAugmentPallas(rate=1.0, policy=3, freq_mask=3, time_mask=35)
    y = module(x)
    y = jax.block_until_ready(y)
    assert y.ndim == 2 and y.shape[0] == B and bool(jnp.all(jnp.isfinite(y)))
    print("KERNEL_OK")
</pallas_src>

<mosaic_0001>
module attributes {stable_mosaic.version = 11 : i64} {
  func.func @_stft_kernel(%arg0: i32, %arg1: i32, %arg2: memref<1x128x400xbf16, #tpu.memory_space<vmem>>, %arg3: memref<1x128x400xbf16, #tpu.memory_space<vmem>>, %arg4: memref<400x512xbf16, #tpu.memory_space<vmem>>, %arg5: memref<1x128x1024xf32, #tpu.memory_space<vmem>>) attributes {dimension_semantics = [#tpu.dimension_semantics<parallel>, #tpu.dimension_semantics<parallel>], iteration_bounds = array<i64: 2, 1>, scalar_prefetch = 0 : i64, scratch_operands = 0 : i64, tpu.core_type = #tpu.core_type<tc>, window_params = [{transform_indices = @transform_0, window_bounds = array<i64: 1, 128, 400>}, {transform_indices = @transform_1, window_bounds = array<i64: 1, 128, 400>}, {pipeline_mode = #tpu.pipeline_mode<synchronous>, transform_indices = @transform_2, window_bounds = array<i64: 400, 512>}, {transform_indices = @transform_3, window_bounds = array<i64: 1, 128, 1024>}]} {
    %c0 = arith.constant 0 : index
    %c0_0 = arith.constant 0 : index
    %c0_1 = arith.constant 0 : index
    %0 = vector.load %arg2[%c0, %c0_0, %c0_1] : memref<1x128x400xbf16, #tpu.memory_space<vmem>>, vector<1x128x400xbf16>
    %1 = vector.shape_cast %0 : vector<1x128x400xbf16> to vector<128x400xbf16>
    %c0_2 = arith.constant 0 : index
    %c0_3 = arith.constant 0 : index
    %c0_4 = arith.constant 0 : index
    %2 = vector.load %arg3[%c0_2, %c0_3, %c0_4] : memref<1x128x400xbf16, #tpu.memory_space<vmem>>, vector<1x128x400xbf16>
    %3 = vector.shape_cast %2 : vector<1x128x400xbf16> to vector<128x400xbf16>
    %4 = tpu.concatenate %1, %3 in 0 : vector<128x400xbf16>, vector<128x400xbf16> -> vector<256x400xbf16>
    %c0_5 = arith.constant 0 : index
    %c0_6 = arith.constant 0 : index
    %5 = vector.load %arg4[%c0_5, %c0_6] : memref<400x512xbf16, #tpu.memory_space<vmem>>, vector<400x512xbf16>
    %cst = arith.constant dense<0.000000e+00> : vector<256x512xf32>
    %6 = tpu.matmul %4, %5, %cst {dimension_numbers = #tpu.dot_dimension_numbers<[1], [0], [0], [1], [0, 0, 1, 1], [], []>} : vector<256x400xbf16>, vector<400x512xbf16>, vector<256x512xf32> -> vector<256x512xf32>
    %7 = vector.extract_strided_slice %6 {offsets = [0, 0], sizes = [128, 512], strides = [1, 1]} : vector<256x512xf32> to vector<128x512xf32>
    %c0_7 = arith.constant 0 : index
    %c0_8 = arith.constant 0 : index
    %c0_9 = arith.constant 0 : index
    %8 = vector.load %arg5[%c0_7, %c0_8, %c0_9] : memref<1x128x1024xf32, #tpu.memory_space<vmem>>, vector<1x128x512xf32>
    %9 = vector.shape_cast %8 : vector<1x128x512xf32> to vector<128x512xf32>
    %10 = vector.shape_cast %7 : vector<128x512xf32> to vector<1x128x512xf32>
    tpu.vector_store %arg5[%c0_7, %c0_8, %c0_9], %10 {strides = array<i32>} : memref<1x128x1024xf32, #tpu.memory_space<vmem>>, vector<1x128x512xf32>,
    %11 = vector.extract_strided_slice %6 {offsets = [128, 0], sizes = [128, 512], strides = [1, 1]} : vector<256x512xf32> to vector<128x512xf32>
    %c0_10 = arith.constant 0 : index
    %c0_11 = arith.constant 0 : index
    %c512 = arith.constant 512 : index
    %12 = vector.load %arg5[%c0_10, %c0_11, %c512] : memref<1x128x1024xf32, #tpu.memory_space<vmem>>, vector<1x128x512xf32>
    %13 = vector.shape_cast %12 : vector<1x128x512xf32> to vector<128x512xf32>
    %14 = vector.shape_cast %11 : vector<128x512xf32> to vector<1x128x512xf32>
    tpu.vector_store %arg5[%c0_10, %c0_11, %c512], %14 {strides = array<i32>} : memref<1x128x1024xf32, #tpu.memory_space<vmem>>, vector<1x128x512xf32>,
    return
  }
  func.func @transform_0(%arg0: i32, %arg1: i32) -> (i32, i32, i32) {
    %c0_i32 = arith.constant 0 : i32
    %c0_i32_0 = arith.constant 0 : i32
    return %arg0, %arg1, %c0_i32 : i32, i32, i32
  }
  func.func @transform_1(%arg0: i32, %arg1: i32) -> (i32, i32, i32) {
    %c0_i32 = arith.constant 0 : i32
    %c0_i32_0 = arith.constant 0 : i32
    return %arg0, %arg1, %c0_i32 : i32, i32, i32
  }
  func.func @transform_2(%arg0: i32, %arg1: i32) -> (i32, i32) {
    %c0_i32 = arith.constant 0 : i32
    %c0_i32_0 = arith.constant 0 : i32
    %c0_i32_1 = arith.constant 0 : i32
    return %c0_i32, %c0_i32_0 : i32, i32
  }
  func.func @transform_3(%arg0: i32, %arg1: i32) -> (i32, i32, i32) {
    %c0_i32 = arith.constant 0 : i32
    %c0_i32_0 = arith.constant 0 : i32
    return %arg0, %arg1, %c0_i32 : i32, i32, i32
  }
}

module attributes {stable_mosaic.version = 11 : i64} {
  func.func @_istft_kernel(%arg0: i32, %arg1: i32, %arg2: memref<1x256x512xbf16, #tpu.memory_space<vmem>>, %arg3: memref<512x512xbf16, #tpu.memory_space<vmem>>, %arg4: memref<1x256xf32, #tpu.memory_space<vmem>>, %arg5: memref<1x256x256xf32, #tpu.memory_space<vmem>>, %arg6: memref<1x256xf32, #tpu.memory_space<vmem>>) attributes {dimension_semantics = [#tpu.dimension_semantics<parallel>, #tpu.dimension_semantics<arbitrary>], iteration_bounds = array<i64: 2, 1>, scalar_prefetch = 0 : i64, scratch_operands = 1 : i64, tpu.core_type = #tpu.core_type<tc>, window_params = [{transform_indices = @transform_0, window_bounds = array<i64: 1, 256, 512>}, {pipeline_mode = #tpu.pipeline_mode<synchronous>, transform_indices = @transform_1, window_bounds = array<i64: 512, 512>}, {pipeline_mode = #tpu.pipeline_mode<synchronous>, transform_indices = @transform_2, window_bounds = array<i64: 1, 256>}, {transform_indices = @transform_3, window_bounds = array<i64: 1, 256, 256>}]} {
    %c0_i32 = arith.constant 0 : i32
    %0 = arith.cmpi eq, %arg1, %c0_i32 : i32
    %1 = arith.extui %0 : i1 to i32
    %c0_i32_0 = arith.constant 0 : i32
    %2 = arith.cmpi ne, %1, %c0_i32_0 : i32
    scf.if %2 {
      %cst_15 = arith.constant 0.000000e+00 : f32
      %26 = vector.broadcast %cst_15 : f32 to vector<1x256xf32>
      %c0_16 = arith.constant 0 : index
      %c0_17 = arith.constant 0 : index
      %27 = vector.load %arg6[%c0_16, %c0_17] : memref<1x256xf32, #tpu.memory_space<vmem>>, vector<1x256xf32>
      tpu.vector_store %arg6[%c0_16, %c0_17], %26 {strides = array<i32>} : memref<1x256xf32, #tpu.memory_space<vmem>>, vector<1x256xf32>,
    } else {
    }
    %c0 = arith.constant 0 : index
    %c0_1 = arith.constant 0 : index
    %c0_2 = arith.constant 0 : index
    %3 = vector.load %arg2[%c0, %c0_1, %c0_2] : memref<1x256x512xbf16, #tpu.memory_space<vmem>>, vector<1x256x512xbf16>
    %4 = vector.shape_cast %3 : vector<1x256x512xbf16> to vector<256x512xbf16>
    %c0_3 = arith.constant 0 : index
    %c0_4 = arith.constant 0 : index
    %5 = vector.load %arg3[%c0_3, %c0_4] : memref<512x512xbf16, #tpu.memory_space<vmem>>, vector<512x512xbf16>
    %cst = arith.constant dense<0.000000e+00> : vector<256x512xf32>
    %6 = tpu.matmul %4, %5, %cst {dimension_numbers = #tpu.dot_dimension_numbers<[1], [0], [0], [1], [0, 0, 1, 1], [], []>} : vector<256x512xbf16>, vector<512x512xbf16>, vector<256x512xf32> -> vector<256x512xf32>
    %7 = vector.extract_strided_slice %6 {offsets = [0, 0], sizes = [256, 256], strides = [1, 1]} : vector<256x512xf32> to vector<256x256xf32>
    %8 = vector.extract_strided_slice %6 {offsets = [0, 256], sizes = [256, 256], strides = [1, 1]} : vector<256x512xf32> to vector<256x256xf32>
    %c1_i32 = arith.constant 1 : i32
    %9 = tpu.dynamic_rotate %8 by %c1_i32 dim 0 : vector<256x256xf32>, i32 -> vector<256x256xf32>
    %10 = tpu.iota {dimensions = array<i32: 0>} : vector<256x256xi32>
    %c0_i32_5 = arith.constant 0 : i32
    %11 = vector.broadcast %c0_i32_5 : i32 to vector<256x256xi32>
    %12 = arith.cmpi eq, %10, %11 : vector<256x256xi32>
    %c0_6 = arith.constant 0 : index
    %c0_7 = arith.constant 0 : index
    %13 = vector.load %arg6[%c0_6, %c0_7] : memref<1x256xf32, #tpu.memory_space<vmem>>, vector<1x256xf32>
    %14 = vector.shape_cast %13 : vector<1x256xf32> to vector<1x256xf32>
    %15 = vector.broadcast %14 : vector<1x256xf32> to vector<256x256xf32>
    %16 = arith.select %12, %15, %9 : vector<256x256xi1>, vector<256x256xf32>
    %17 = arith.addf %16, %7 : vector<256x256xf32>
    %c0_8 = arith.constant 0 : index
    %c0_9 = arith.constant 0 : index
    %18 = vector.load %arg4[%c0_8, %c0_9] : memref<1x256xf32, #tpu.memory_space<vmem>>, vector<1x256xf32>
    %19 = vector.broadcast %18 : vector<1x256xf32> to vector<256x256xf32>
    %20 = arith.mulf %17, %19 : vector<256x256xf32>
    %c0_10 = arith.constant 0 : index
    %c0_11 = arith.constant 0 : index
    %c0_12 = arith.constant 0 : index
    %21 = vector.load %arg5[%c0_10, %c0_11, %c0_12] : memref<1x256x256xf32, #tpu.memory_space<vmem>>, vector<1x256x256xf32>
    %22 = vector.shape_cast %21 : vector<1x256x256xf32> to vector<256x256xf32>
    %23 = vector.shape_cast %20 : vector<256x256xf32> to vector<1x256x256xf32>
    tpu.vector_store %arg5[%c0_10, %c0_11, %c0_12], %23 {strides = array<i32>} : memref<1x256x256xf32, #tpu.memory_space<vmem>>, vector<1x256x256xf32>,
    %24 = vector.extract_strided_slice %8 {offsets = [255, 0], sizes = [1, 256], strides = [1, 1]} : vector<256x256xf32> to vector<1x256xf32>
    %c0_13 = arith.constant 0 : index
    %c0_14 = arith.constant 0 : index
    %25 = vector.load %arg6[%c0_13, %c0_14] : memref<1x256xf32, #tpu.memory_space<vmem>>, vector<1x256xf32>
    tpu.vector_store %arg6[%c0_13, %c0_14], %24 {strides = array<i32>} : memref<1x256xf32, #tpu.memory_space<vmem>>, vector<1x256xf32>,
    return
  }
  func.func @transform_0(%arg0: i32, %arg1: i32) -> (i32, i32, i32) {
    %c0_i32 = arith.constant 0 : i32
    %c0_i32_0 = arith.constant 0 : i32
    return %arg0, %arg1, %c0_i32 : i32, i32, i32
  }
  func.func @transform_1(%arg0: i32, %arg1: i32) -> (i32, i32) {
    %c0_i32 = arith.constant 0 : i32
    %c0_i32_0 = arith.constant 0 : i32
    %c0_i32_1 = arith.constant 0 : i32
    return %c0_i32, %c0_i32_0 : i32, i32
  }
  func.func @transform_2(%arg0: i32, %arg1: i32) -> (i32, i32) {
    %c0_i32 = arith.constant 0 : i32
    %c0_i32_0 = arith.constant 0 : i32
    %c0_i32_1 = arith.constant 0 : i32
    return %c0_i32, %c0_i32_0 : i32, i32
  }
  func.func @transform_3(%arg0: i32, %arg1: i32) -> (i32, i32, i32) {
    %c0_i32 = arith.constant 0 : i32
    %c0_i32_0 = arith.constant 0 : i32
    return %arg0, %arg1, %c0_i32 : i32, i32, i32
  }
}

</mosaic_0001>

<llo_original>
// kernel: reverse.1
$region0: #{reverse.1}
  %s0 = inlined_call_operand.vmem [shape: bf16[2,256], index: 0, kind: input, shape index: {}]
  %s1 = inlined_call_operand.vmem [shape: bf16[2,256], index: 1, kind: output, shape index: {}]
  %v2 = vlaneseq
  %v3 = vsub.s32 127, %v2
  %4 = vset.pattern.permute.xlu0 %v3
  $region1: #{reverse.1} parent=0
    #allocation0 [shape = 'u8[4096]{0}', space=vmem, size = 0x1000, scoped, tag = 'operand span for operand 0']
    #allocation1 [shape = 'u8[1024]{0}', space=vmem, size = 0x400, scoped, tag = 'packed  for operand 0']
    #allocation2 [shape = 'u8[4096]{0}', space=vmem, size = 0x1000, scoped, tag = 'operand span for operand 1']
    #allocation3 [shape = 'u8[1024]{0}', space=vmem, size = 0x400, scoped, tag = 'packed  for operand 1']
    loop: start=0, step=1, limit=4
    $region2: #{reverse.1} parent=1 // loop_pre_header
      _
    $region3: #{reverse.1} parent=1 // loop_header
      %s6 = sphi 0, %s10
      %p7 = scmp.ge.s32.totalorder %s6, 4
      %s13 = sphi 0, %s25
      %s14 = sphi 0, %s21
      %s15 = sphi 0, %s13
      %s16 = sphi 0, %s14
      %s17 = sphi 0, %s15
      %s18 = sphi 0, %s16
    $region4: #{reverse.1} parent=1 // loop_header_branch
      %9 = sbr.rel (%p7) target = $region8
    $region5: #{reverse.1} parent=1 // loop_body
      %s11 = ssub.s32 %s6, 1
      %s12 = ssub.s32 %s6, 2
      %s19 = sadd.s32 1, %s14
      %p20 = scmp.ge.s32.totalorder %s19, 2
      %s21 = scalar_select %p20, 0, %s19
      %s22 = sadd.s32 1, %s13
      %s23 = scalar_select %p20, %s22, %s13
      %p24 = scmp.ge.s32.totalorder %s23, 1
      %s25 = scalar_select %p24, 0, %s23
      %p26 = scmp.le.s32.totalorder 1, %s6
      %p27 = scmp.lt.s32.totalorder %s6, 3
      %p28 = pnand %p26, %p27
      %p29 = pneg %p28
      // Predicated region
      $region9: #{reverse.1} parent=5 // pred_check
        _
      $region10: #{reverse.1} parent=5 // pred_check_branch
        %31 = sbr.rel (%p28) target = $region12
      $region11: #{reverse.1} parent=5 // pred_region
        %s32 = ssub.s32 %s6, 1
      $region12: #{reverse.1} parent=5 // pred_fallthru
        _
      %p33 = scmp.lt.s32.totalorder %s6, 2
      // Predicated region
      $region13: #{reverse.1} parent=5 // pred_check
        %p34 = pneg %p33
      $region14: #{reverse.1} parent=5 // pred_check_branch
        %36 = sbr.rel (%p34) target = $region16
      $region15: #{reverse.1} parent=5 // pred_region
        %s37 = sand.u32 %s6, 1
        %s38 = sand.u32 %s6, 1
        %s39 = scalar_lea.vmem [#allocation1], %s38
        %s40 = ssub.s32 1, %s14
        %s41 = smul.addr %s13, 2
        %s42 = sadd.s32 %s40, %s41
        %s43 = scalar_lea.vmem %s0, %s42
        // Predicated region
        $region17: #{reverse.1} parent=15 // pred_check
          _
        $region18: #{reverse.1} parent=15 // pred_check_branch
          %45 = sbr.rel (0) target = $region20
        $region19: #{reverse.1} parent=15 // pred_region
          // Predicated region
          $region21: #{reverse.1} parent=19 // pred_check
            _
          $region22: #{reverse.1} parent=19 // pred_check_branch
            %47 = sbr.rel target = $region24
          $region23: #{reverse.1} parent=19 // pred_region
            // Predicated region
            $region36: #{reverse.1} parent=23 // pred_check
              _
            $region37: #{reverse.1} parent=23 // pred_check_branch
              %63 = sbr.rel (0) target = $region39
            $region38: #{reverse.1} parent=23 // pred_region
              %s65 = ssub.s32 2, 1
              loop: start=0, step=1, limit=1
              $region40: #{reverse.1} parent=38 // loop_pre_header
                _
              $region41: #{reverse.1} parent=38 // loop_header
                %s67 = sphi 0, %s71
                %p68 = scmp.ge.s32.totalorder %s67, 1
                %s72 = sphi %s43, %s43
                %s73 = sphi %s39, %s39
              $region42: #{reverse.1} parent=38 // loop_header_branch
                %70 = sbr.rel (%p68) target = $region46
              $region43: #{reverse.1} parent=38 // loop_body
                %v74 = vld [vmem:[%s72] sm:%s65]
                %75 = vst [vmem:[%s73] sm:%s65] %v74
              $region44: #{reverse.1} parent=38 // loop_footer
                %s71 = sadd.s32 1, %s67
              $region45: #{reverse.1} parent=38 // loop_footer_branch
                %66 = sbr.rel target = $region41
              $region46: #{reverse.1} parent=38 // loop_exit
                _
            $region39: #{reverse.1} parent=23 // pred_fallthru
              _
          $region24: #{reverse.1} parent=19 // pred_fallthru
            _
          // Predicated region
          $region25: #{reverse.1} parent=19 // pred_check
            _
          $region26: #{reverse.1} parent=19 // pred_check_branch
            %49 = sbr.rel (0) target = $region28
          $region27: #{reverse.1} parent=19 // pred_region
            %s51 = ssub.s32 2, 1
            loop: start=0, step=1, limit=1
            $region29: #{reverse.1} parent=27 // loop_pre_header
              _
            $region30: #{reverse.1} parent=27 // loop_header
              %s53 = sphi 0, %s57
              %p54 = scmp.ge.s32.totalorder %s53, 1
              %s58 = sphi %s43, %s43
              %s59 = sphi %s39, %s39
            $region31: #{reverse.1} parent=27 // loop_header_branch
              %56 = sbr.rel (%p54) target = $region35
            $region32: #{reverse.1} parent=27 // loop_body
              %v60 = vld [vmem:[%s58] sm:%s51]
              %61 = vst [vmem:[%s59] sm:%s51] %v60
            $region33: #{reverse.1} parent=27 // loop_footer
              %s57 = sadd.s32 1, %s53
            $region34: #{reverse.1} parent=27 // loop_footer_branch
              %52 = sbr.rel target = $region30
            $region35: #{reverse.1} parent=27 // loop_exit
              _
          $region28: #{reverse.1} parent=19 // pred_fallthru
            _
        $region20: #{reverse.1} parent=15 // pred_fallthru
          _
        %76 = vnop
      $region16: #{reverse.1} parent=5 // pred_fallthru
        _
      %p77 = scmp.le.s32.totalorder 1, %s6
      %p78 = scmp.lt.s32.totalorder %s6, 3
      %p79 = pnand %p77, %p78
      %p80 = pneg %p79
      // Predicated region
      $region47: #{reverse.1} parent=5 // pred_check
        _
      $region48: #{reverse.1} parent=5 // pred_check_branch
        %82 = sbr.rel (%p79) target = $region50
      $region49: #{reverse.1} parent=5 // pred_region
        %s83 = ssub.s32 %s6, 1
        %s84 = sand.u32 %s11, 1
        %s85 = sand.u32 %s11, 1
        %s86 = scalar_lea.vmem [#allocation1], %s85
        %s87 = sand.u32 %s11, 1
        %s88 = sand.u32 %s11, 1
        %s89 = scalar_lea.vmem [#allocation1], %s88
        %s90 = sand.u32 %s11, 1
        %s91 = sand.u32 %s11, 1
        %s92 = scalar_lea.vmem [#allocation3], %s91
        %s94 = ssub.s32 4, 1
        %s95 = sshrl.u32 %s94, 1
        %s96 = sor.u32 %s94, %s95
        %s97 = sand.u32 %s96, 85
        %s98 = sshrl.u32 %s97, 1
        %s99 = sor.u32 %s97, %s98
        %s100 = sand.u32 51, %s99
        %s101 = sshrl.u32 %s100, 2
        %s102 = sor.u32 %s100, %s101
        %s103 = sand.u32 15, %s102
        %v104 = vld [vmem:[%s89] sm:%s103]
        %v105 = vunpack.c.l.bf16 %v104
        %v106 = vunpack.c.h.bf16 %v104
        %107 = vst [vmem:[#allocation0] sm:%s94] %v105
        %s108 = ssub.s32 1, %s16
        %v109 = vld [vmem:[#allocation0] sm:$0xff]
        %110 = vperm.xlu0 %4, %v109
        %v111 = vpop.permute.xlu0 %110
        %112 = vst [vmem:[#allocation2] sm:$0xff] %v111
        %s114 = ssub.s32 4, 1
        %v115 = vld [vmem:[#allocation2] sm:%s114]
        %v116 = vpack.c.bf16 0.0, %v115
        %s118 = ssub.s32 2, 1
        %119 = vst [vmem:[%s92] sm:%s118] %v116
        %s120 = sand.u32 %s11, 1
        %s121 = sand.u32 %s11, 1
        %s122 = scalar_lea.vmem [#allocation3], %s121
        %s123 = smul.addr %s15, 2
        %s124 = sadd.s32 %s16, %s123
        %s125 = scalar_lea.vmem %s1, %s124
        // Predicated region
        $region51: #{reverse.1} parent=49 // pred_check
          _
        $region52: #{reverse.1} parent=49 // pred_check_branch
          %127 = sbr.rel (0) target = $region54
        $region53: #{reverse.1} parent=49 // pred_region
          // Predicated region
          $region55: #{reverse.1} parent=53 // pred_check
            _
          $region56: #{reverse.1} parent=53 // pred_check_branch
            %129 = sbr.rel target = $region58
          $region57: #{reverse.1} parent=53 // pred_region
            // Predicated region
            $region70: #{reverse.1} parent=57 // pred_check
              _
            $region71: #{reverse.1} parent=57 // pred_check_branch
              %145 = sbr.rel (0) target = $region73
            $region72: #{reverse.1} parent=57 // pred_region
              %s147 = ssub.s32 2, 1
              loop: start=0, step=1, limit=1
              $region74: #{reverse.1} parent=72 // loop_pre_header
                _
              $region75: #{reverse.1} parent=72 // loop_header
                %s149 = sphi 0, %s153
                %p150 = scmp.ge.s32.totalorder %s149, 1
                %s154 = sphi %s122, %s122
                %s155 = sphi %s125, %s125
              $region76: #{reverse.1} parent=72 // loop_header_branch
                %152 = sbr.rel (%p150) target = $region80
              $region77: #{reverse.1} parent=72 // loop_body
                %v156 = vld [vmem:[%s154] sm:%s147]
                %157 = vst [vmem:[%s155] sm:%s147] %v156
              $region78: #{reverse.1} parent=72 // loop_footer
                %s153 = sadd.s32 1, %s149
              $region79: #{reverse.1} parent=72 // loop_footer_branch
                %148 = sbr.rel target = $region75
              $region80: #{reverse.1} parent=72 // loop_exit
                _
            $region73: #{reverse.1} parent=57 // pred_fallthru
              _
          $region58: #{reverse.1} parent=53 // pred_fallthru
            _
          // Predicated region
          $region59: #{reverse.1} parent=53 // pred_check
            _
          $region60: #{reverse.1} parent=53 // pred_check_branch
            %131 = sbr.rel (0) target = $region62
          $region61: #{reverse.1} parent=53 // pred_region
            %s133 = ssub.s32 2, 1
            loop: start=0, step=1, limit=1
            $region63: #{reverse.1} parent=61 // loop_pre_header
              _
            $region64: #{reverse.1} parent=61 // loop_header
              %s135 = sphi 0, %s139
              %p136 = scmp.ge.s32.totalorder %s135, 1
              %s140 = sphi %s122, %s122
              %s141 = sphi %s125, %s125
            $region65: #{reverse.1} parent=61 // loop_header_branch
              %138 = sbr.rel (%p136) target = $region69
            $region66: #{reverse.1} parent=61 // loop_body
              %v142 = vld [vmem:[%s140] sm:%s133]
              %143 = vst [vmem:[%s141] sm:%s133] %v142
            $region67: #{reverse.1} parent=61 // loop_footer
              %s139 = sadd.s32 1, %s135
            $region68: #{reverse.1} parent=61 // loop_footer_branch
              %134 = sbr.rel target = $region64
            $region69: #{reverse.1} parent=61 // loop_exit
              _
          $region62: #{reverse.1} parent=53 // pred_fallthru
            _
        $region54: #{reverse.1} parent=49 // pred_fallthru
          _
        %158 = vnop
      $region50: #{reverse.1} parent=5 // pred_fallthru
        _
      %p159 = scmp.le.s32.totalorder 2, %s6
      // Predicated region
      $region81: #{reverse.1} parent=5 // pred_check
        %p160 = pneg %p159
      $region82: #{reverse.1} parent=5 // pred_check_branch
        %162 = sbr.rel (%p160) target = $region84
      $region83: #{reverse.1} parent=5 // pred_region
        %s163 = ssub.s32 %s6, 2
        %s164 = sand.u32 %s12, 1
        %s165 = sand.u32 %s12, 1
        %s166 = scalar_lea.vmem [#allocation3], %s165
      $region84: #{reverse.1} parent=5 // pred_fallthru
        _
    $region6: #{reverse.1} parent=1 // loop_footer
      %s10 = sadd.s32 1, %s6
    $region7: #{reverse.1} parent=1 // loop_footer_branch
      %5 = sbr.rel target = $region3
    $region8: #{reverse.1} parent=1 // loop_exit
      _

// kernel: _time_stretch.2
$region0: #{_time_stretch.2}
  #allocation0 [shape = 'u32[]', space=smem, size = 0x4, offset = 0x4, fixed_abs, tag = 'smem constant byte address 0x4 - core index']
  #allocation1 [shape = 'u32[72,128]{1,0:T(1,128)}', space=vmem, size = 0x9000, scoped, tag = 'internal scratch']
  %s0 = inlined_call_operand.vmem [shape: bf16[2,128,400], index: 0, kind: input, shape index: {}]
  %s1 = inlined_call_operand.vmem [shape: bf16[2,128,400], index: 1, kind: input, shape index: {}]
  %s2 = inlined_call_operand.vmem [shape: bf16[400,512], index: 2, kind: input, shape index: {}]
  %s3 = inlined_call_operand.vmem [shape: f32[2,128,1024], index: 3, kind: output, shape index: {}]
  %s4 = sld [smem:[#allocation0]]
  $region45: #{_time_stretch.2} parent=0
    _
  %s6 = ssub.s32 1, %s4
  %s7 = scalar_select 0, %s6, %s4
  loop: start=0, step=1, limit=4
  $region2: #{_time_stretch.2} parent=0 // loop_pre_header
    _
  $region3: #{_time_stretch.2} parent=0 // loop_header
    %s9 = sphi 0, %s13
    %p10 = scmp.ge.s32.totalorder %s9, 4
    %s16 = sphi 0, %s28
    %s17 = sphi 0, %s24
    %s18 = sphi 0, %s16
    %s19 = sphi 0, %s17
    %s20 = sphi 0, %s18
    %s21 = sphi 0, %s19
    %s33 = sphi 0, %s35
    %s36 = sphi 0, %s33
    %s37 = sphi 0, %s36
    %s53 = sphi 0, %s37
    %s61 = sphi 0, %s63
    %s64 = sphi 0, %s61
    %s65 = sphi 0, %s64
    %s81 = sphi 0, %s65
    %s85 = sphi 0, %s85
    %s87 = sphi 0, %s85
    %s88 = sphi 0, %s87
    %s102 = sphi 0, %s88
    %s110 = sphi 0, %s112
    %s113 = sphi 0, %s110
    %s114 = sphi 0, %s113
    %s130 = sphi 0, %s114
  $region4: #{_time_stretch.2} parent=0 // loop_header_branch
    %12 = sbr.rel (%p10) target = $region8
  $region5: #{_time_stretch.2} parent=0 // loop_body
    %s14 = ssub.s32 %s9, 1
    %s15 = ssub.s32 %s9, 2
    %s22 = sadd.s32 1, %s17
    %p23 = scmp.ge.s32.totalorder %s22, 1
    %s24 = scalar_select %p23, 0, %s22
    %s25 = sadd.s32 1, %s16
    %s26 = scalar_select %p23, %s25, %s16
    %p27 = scmp.ge.s32.totalorder %s26, 2
    %s28 = scalar_select %p27, 0, %s26
    %s29 = ssub.s32 %s16, %s28
    %s30 = ssub.s32 %s17, %s24
    %s31 = sor.u32 %s29, %s30
    %p32 = scmp.eq.s32.totalorder %s31, 0
    %s34 = sadd.s32 %s33, 1
    %s35 = scalar_select %p32, %s33, %s34
    %p38 = pneg %p32
    %p39 = scmp.eq.s32.totalorder %s9, 1
    %p40 = por %p38, %p39
    %p41 = scmp.ne.s32.totalorder %s33, %s36
    %p42 = scmp.eq.s32.totalorder %s9, 0
    %p43 = por %p41, %p42
    %p44 = scmp.ne.s32.totalorder %s33, %s36
    %p45 = scmp.eq.s32.totalorder %s14, 1
    %p46 = por %p44, %p45
    %p47 = scmp.ne.s32.totalorder %s36, %s37
    %p48 = scmp.eq.s32.totalorder %s14, 0
    %p49 = por %p47, %p48
    %p50 = scmp.ne.s32.totalorder %s36, %s37
    %p51 = scmp.eq.s32.totalorder %s15, 1
    %p52 = por %p50, %p51
    %p54 = scmp.ne.s32.totalorder %s37, %s53
    %p55 = scmp.eq.s32.totalorder %s15, 0
    %p56 = por %p54, %p55
    %s57 = ssub.s32 %s16, %s28
    %s58 = ssub.s32 %s17, %s24
    %s59 = sor.u32 %s57, %s58
    %p60 = scmp.eq.s32.totalorder %s59, 0
    %s62 = sadd.s32 %s61, 1
    %s63 = scalar_select %p60, %s61, %s62
    %p66 = pneg %p60
    %p67 = scmp.eq.s32.totalorder %s9, 1
    %p68 = por %p66, %p67
    %p69 = scmp.ne.s32.totalorder %s61, %s64
    %p70 = scmp.eq.s32.totalorder %s9, 0
    %p71 = por %p69, %p70
    %p72 = scmp.ne.s32.totalorder %s61, %s64
    %p73 = scmp.eq.s32.totalorder %s14, 1
    %p74 = por %p72, %p73
    %p75 = scmp.ne.s32.totalorder %s64, %s65
    %p76 = scmp.eq.s32.totalorder %s14, 0
    %p77 = por %p75, %p76
    %p78 = scmp.ne.s32.totalorder %s64, %s65
    %p79 = scmp.eq.s32.totalorder %s15, 1
    %p80 = por %p78, %p79
    %p82 = scmp.ne.s32.totalorder %s65, %s81
    %p83 = scmp.eq.s32.totalorder %s15, 0
    %p84 = por %p82, %p83
    %s86 = sadd.s32 %s85, 1
    %p89 = scmp.eq.s32.totalorder %s9, 1
    %p90 = scmp.ne.s32.totalorder %s85, %s87
    %p91 = scmp.eq.s32.totalorder %s9, 0
    %p92 = por %p90, %p91
    %p93 = scmp.ne.s32.totalorder %s85, %s87
    %p94 = scmp.eq.s32.totalorder %s14, 1
    %p95 = por %p93, %p94
    %p96 = scmp.ne.s32.totalorder %s87, %s88
    %p97 = scmp.eq.s32.totalorder %s14, 0
    %p98 = por %p96, %p97
    %p99 = scmp.ne.s32.totalorder %s87, %s88
    %p100 = scmp.eq.s32.totalorder %s15, 1
    %p101 = por %p99, %p100
    %p103 = scmp.ne.s32.totalorder %s88, %s102
    %p104 = scmp.eq.s32.totalorder %s15, 0
    %p105 = por %p103, %p104
    %s106 = ssub.s32 %s16, %s28
    %s107 = ssub.s32 %s17, %s24
    %s108 = sor.u32 %s106, %s107
    %p109 = scmp.eq.s32.totalorder %s108, 0
    %s111 = sadd.s32 %s110, 1
    %s112 = scalar_select %p109, %s110, %s111
    %p115 = pneg %p109
    %p116 = scmp.eq.s32.totalorder %s9, 1
    %p117 = por %p115, %p116
    %p118 = scmp.ne.s32.totalorder %s110, %s113
    %p119 = scmp.eq.s32.totalorder %s9, 0
    %p120 = por %p118, %p119
    %p121 = scmp.ne.s32.totalorder %s110, %s113
    %p122 = scmp.eq.s32.totalorder %s14, 1
    %p123 = por %p121, %p122
    %p124 = scmp.ne.s32.totalorder %s113, %s114
    %p125 = scmp.eq.s32.totalorder %s14, 0
    %p126 = por %p124, %p125
    %p127 = scmp.ne.s32.totalorder %s113, %s114
    %p128 = scmp.eq.s32.totalorder %s15, 1
    %p129 = por %p127, %p128
    %p131 = scmp.ne.s32.totalorder %s114, %s130
    %p132 = scmp.eq.s32.totalorder %s15, 0
    %p133 = por %p131, %p132
    %p134 = scmp.le.s32.totalorder 1, %s9
    %p135 = scmp.lt.s32.totalorder %s9, 3
    %p136 = pnand %p134, %p135
    %p137 = pneg %p136
    // Predicated region
    $region9: #{_time_stretch.2} parent=5 // pred_check
      _
    $region10: #{_time_stretch.2} parent=5 // pred_check_branch
      %139 = sbr.rel (%p136) target = $region12
    $region11: #{_time_stretch.2} parent=5 // pred_region
      %s140 = ssub.s32 %s9, 1
      // Predicated region
      $region13: #{_time_stretch.2} parent=11 // pred_check
        %p141 = pneg %p98
      $region14: #{_time_stretch.2} parent=11 // pred_check_branch
        %143 = sbr.rel (%p141) target = $region16
      $region15: #{_time_stretch.2} parent=11 // pred_region
        _
      $region16: #{_time_stretch.2} parent=11 // pred_fallthru
        _
    $region12: #{_time_stretch.2} parent=5 // pred_fallthru
      _
    %p144 = scmp.lt.s32.totalorder %s9, 2
    // Predicated region
    $region17: #{_time_stretch.2} parent=5 // pred_check
      %p145 = pneg %p144
    $region18: #{_time_stretch.2} parent=5 // pred_check_branch
      %147 = sbr.rel (%p145) target = $region20
    $region19: #{_time_stretch.2} parent=5 // pred_region
      // Predicated region
      $region21: #{_time_stretch.2} parent=19 // pred_check
        %p148 = pneg %p43
      $region22: #{_time_stretch.2} parent=19 // pred_check_branch
        %150 = sbr.rel (%p148) target = $region24
      $region23: #{_time_stretch.2} parent=19 // pred_region
        %s151 = smul.u32 16, %s17
        %p152 = scmp.lt.s32.totalorder %s16, 1
        %s153 = scalar_select %p152, %s16, 1
        %p154 = scmp.lt.s32.totalorder %s151, 15
        %s155 = scalar_select %p154, %s151, 15
        %s156 = smul.addr %s155, 4
        %s157 = smul.addr %s153, 64
        %s158 = sadd.s32 %s156, %s157
        %s159 = smul.addr %s158, 4
        %s160 = scalar_lea.vmem %s0, %s159
        %s161 = smul.u32 16, %s17
      $region24: #{_time_stretch.2} parent=19 // pred_fallthru
        _
      // Predicated region
      $region25: #{_time_stretch.2} parent=19 // pred_check
        %p162 = pneg %p71
      $region26: #{_time_stretch.2} parent=19 // pred_check_branch
        %164 = sbr.rel (%p162) target = $region28
      $region27: #{_time_stretch.2} parent=19 // pred_region
        %s165 = smul.u32 16, %s17
        %p166 = scmp.lt.s32.totalorder %s16, 1
        %s167 = scalar_select %p166, %s16, 1
        %p168 = scmp.lt.s32.totalorder %s165, 15
        %s169 = scalar_select %p168, %s165, 15
        %s170 = smul.addr %s169, 4
        %s171 = smul.addr %s167, 64
        %s172 = sadd.s32 %s170, %s171
        %s173 = smul.addr %s172, 4
        %s174 = scalar_lea.vmem %s1, %s173
        %s175 = smul.u32 16, %s17
      $region28: #{_time_stretch.2} parent=19 // pred_fallthru
        _
    $region20: #{_time_stretch.2} parent=5 // pred_fallthru
      _
    %p176 = scmp.le.s32.totalorder 1, %s9
    %p177 = scmp.lt.s32.totalorder %s9, 3
    %p178 = pnand %p176, %p177
    %p179 = pneg %p178
    // Predicated region
    $region29: #{_time_stretch.2} parent=5 // pred_check
      _
    $region30: #{_time_stretch.2} parent=5 // pred_check_branch
      %181 = sbr.rel (%p178) target = $region32
    $region31: #{_time_stretch.2} parent=5 // pred_region
      %s182 = ssub.s32 %s9, 1
      %s183 = smul.u32 16, %s19
      %p184 = scmp.lt.s32.totalorder %s18, 1
      %s185 = scalar_select %p184, %s18, 1
      %p186 = scmp.lt.s32.totalorder %s183, 15
      %s187 = scalar_select %p186, %s183, 15
      %s188 = smul.addr %s187, 4
      %s189 = smul.addr %s185, 64
      %s190 = sadd.s32 %s188, %s189
      %s191 = smul.addr %s190, 4
      %s192 = scalar_lea.vmem %s0, %s191
      %p193 = pneg %p49
      %p194 = pneg %p46
      %s195 = smul.u32 16, %s19
      %p196 = scmp.lt.s32.totalorder %s18, 1
      %s197 = scalar_select %p196, %s18, 1
      %p198 = scmp.lt.s32.totalorder %s195, 15
      %s199 = scalar_select %p198, %s195, 15
      %s200 = smul.addr %s199, 4
      %s201 = smul.addr %s197, 64
      %s202 = sadd.s32 %s200, %s201
      %s203 = smul.addr %s202, 4
      %s204 = scalar_lea.vmem %s1, %s203
      %p205 = pneg %p77
      %p206 = pneg %p74
      %p207 = pneg %p98
      %p208 = pneg %p95
      %p209 = pneg %p126
      %p210 = pneg %p123
      %s211 = smul.u32 16, %s19
      %p212 = scmp.lt.s32.totalorder %s18, 1
      %s213 = scalar_select %p212, %s18, 1
      %p214 = scmp.lt.s32.totalorder %s211, 15
      %s215 = scalar_select %p214, %s211, 15
      %s216 = smul.addr %s215, 8
      %s217 = smul.addr %s213, 128
      %s218 = sadd.s32 %s216, %s217
      %s219 = smul.addr %s218, 8
      %s220 = scalar_lea.vmem %s3, %s219
      %s221 = smul.u32 16, %s19
      %p222 = scmp.lt.s32.totalorder %s18, 1
      %s223 = scalar_select %p222, %s18, 1
      %p224 = scmp.lt.s32.totalorder %s221, 15
      %s225 = scalar_select %p224, %s221, 15
      %s226 = smul.addr %s225, 4
      %s227 = smul.addr %s223, 64
      %s228 = sadd.s32 %s226, %s227
      %s229 = smul.addr %s228, 4
      %s230 = scalar_lea.vmem %s0, %s229
      %s231 = smul.u32 16, %s19
      %s232 = smul.u32 16, %s19
      %p233 = scmp.lt.s32.totalorder %s18, 1
      %s234 = scalar_select %p233, %s18, 1
      %p235 = scmp.lt.s32.totalorder %s232, 15
      %s236 = scalar_select %p235, %s232, 15
      %s237 = smul.addr %s236, 4
      %s238 = smul.addr %s234, 64
      %s239 = sadd.s32 %s237, %s238
      %s240 = smul.addr %s239, 4
      %s241 = scalar_lea.vmem %s1, %s240
      %s242 = smul.u32 16, %s19
      %s243 = smul.u32 16, %s19
      %p244 = scmp.lt.s32.totalorder %s18, 1
      %s245 = scalar_select %p244, %s18, 1
      %p246 = scmp.lt.s32.totalorder %s243, 15
      %s247 = scalar_select %p246, %s243, 15
      %s248 = smul.addr %s247, 8
      %s249 = smul.addr %s245, 128
      %s250 = sadd.s32 %s248, %s249
      %s251 = smul.addr %s250, 8
      %s252 = scalar_lea.vmem %s3, %s251
      %s253 = smul.u32 16, %s19
      %v255 = vld [vmem:[%s230] sm:$0xff]
      %v256 = vld [vmem:[%s230 + $0x8] sm:$0xff]
      %v257 = vld [vmem:[%s230 + $0x10] sm:$0xff]
      %v258 = vld [vmem:[%s230 + $0x18] sm:$0xff]
      %v259 = vld [vmem:[%s230 + $0x20] sm:$0xff]
      %v260 = vld [vmem:[%s230 + $0x28] sm:$0xff]
      %v261 = vld [vmem:[%s230 + $0x30] sm:$0xff]
      %v262 = vld [vmem:[%s230 + $0x38] sm:$0xff]
      %v263 = vld [vmem:[%s230 + $0x40] sm:$0xff]
      %v264 = vld [vmem:[%s230 + $0x48] sm:$0xff]
      %v265 = vld [vmem:[%s230 + $0x50] sm:$0xff]
      %v266 = vld [vmem:[%s230 + $0x58] sm:$0xff]
      %v267 = vld [vmem:[%s230 + $0x60] sm:$0xff]
      %v268 = vld [vmem:[%s230 + $0x68] sm:$0xff]
      %v269 = vld [vmem:[%s230 + $0x70] sm:$0xff]
      %v270 = vld [vmem:[%s230 + $0x78] sm:$0xff]
      %v271 = vld [vmem:[%s230 + $0x80] sm:$0xff]
      %v272 = vld [vmem:[%s230 + $0x88] sm:$0xff]
      %v273 = vld [vmem:[%s230 + $0x90] sm:$0xff]
      %v274 = vld [vmem:[%s230 + $0x98] sm:$0xff]
      %v275 = vld [vmem:[%s230 + $0xa0] sm:$0xff]
      %v276 = vld [vmem:[%s230 + $0xa8] sm:$0xff]
      %v277 = vld [vmem:[%s230 + $0xb0] sm:$0xff]
      %v278 = vld [vmem:[%s230 + $0xb8] sm:$0xff]
      %v279 = vld [vmem:[%s230 + $0xc0] sm:$0xff]
      %v280 = vld [vmem:[%s230 + $0xc8] sm:$0xff]
      %v281 = vld [vmem:[%s230 + $0xd0] sm:$0xff]
      %v282 = vld [vmem:[%s230 + $0xd8] sm:$0xff]
      %v283 = vld [vmem:[%s230 + $0xe0] sm:$0xff]
      %v284 = vld [vmem:[%s230 + $0xe8] sm:$0xff]
      %v285 = vld [vmem:[%s230 + $0xf0] sm:$0xff]
      %v286 = vld [vmem:[%s230 + $0xf8] sm:$0xff]
      %v287 = vld [vmem:[%s241] sm:$0xff]
      %v288 = vld [vmem:[%s241 + $0x8] sm:$0xff]
      %v289 = vld [vmem:[%s241 + $0x10] sm:$0xff]
      %v290 = vld [vmem:[%s241 + $0x18] sm:$0xff]
      %v291 = vld [vmem:[%s241 + $0x20] sm:$0xff]
      %v292 = vld [vmem:[%s241 + $0x28] sm:$0xff]
      %v293 = vld [vmem:[%s241 + $0x30] sm:$0xff]
      %v294 = vld [vmem:[%s241 + $0x38] sm:$0xff]
      %v295 = vld [vmem:[%s241 + $0x40] sm:$0xff]
      %v296 = vld [vmem:[%s241 + $0x48] sm:$0xff]
      %v297 = vld [vmem:[%s241 + $0x50] sm:$0xff]
      %v298 = vld [vmem:[%s241 + $0x58] sm:$0xff]
      %v299 = vld [vmem:[%s241 + $0x60] sm:$0xff]
      %v300 = vld [vmem:[%s241 + $0x68] sm:$0xff]
      %v301 = vld [vmem:[%s241 + $0x70] sm:$0xff]
      %v302 = vld [vmem:[%s241 + $0x78] sm:$0xff]
      %v303 = vld [vmem:[%s241 + $0x80] sm:$0xff]
      %v304 = vld [vmem:[%s241 + $0x88] sm:$0xff]
      %v305 = vld [vmem:[%s241 + $0x90] sm:$0xff]
      %v306 = vld [vmem:[%s241 + $0x98] sm:$0xff]
      %v307 = vld [vmem:[%s241 + $0xa0] sm:$0xff]
      %v308 = vld [vmem:[%s241 + $0xa8] sm:$0xff]
      %v309 = vld [vmem:[%s241 + $0xb0] sm:$0xff]
      %v310 = vld [vmem:[%s241 + $0xb8] sm:$0xff]
      %v311 = vld [vmem:[%s241 + $0xc0] sm:$0xff]
      %v312 = vld [vmem:[%s241 + $0xc8] sm:$0xff]
      %v313 = vld [vmem:[%s241 + $0xd0] sm:$0xff]
      %v314 = vld [vmem:[%s241 + $0xd8] sm:$0xff]
      %v315 = vld [vmem:[%s241 + $0xe0] sm:$0xff]
      %v316 = vld [vmem:[%s241 + $0xe8] sm:$0xff]
      %v317 = vld [vmem:[%s241 + $0xf0] sm:$0xff]
      %v318 = vld [vmem:[%s241 + $0xf8] sm:$0xff]
      %v351 = vunpack.c.l.b16 %v255
      %v352 = vunpack.c.h.b16 %v255
      %v353 = vunpack.c.l.b16 %v256
      %v354 = vunpack.c.h.b16 %v256
      %v355 = vunpack.c.l.b16 %v257
      %v356 = vunpack.c.h.b16 %v257
      %v357 = vunpack.c.l.b16 %v258
      %v358 = vunpack.c.h.b16 %v258
      %v359 = vunpack.c.l.b16 %v259
      %v360 = vunpack.c.h.b16 %v259
      %v361 = vunpack.c.l.b16 %v260
      %v362 = vunpack.c.h.b16 %v260
      %v363 = vunpack.c.l.b16 %v261
      %v364 = vunpack.c.h.b16 %v261
      %v365 = vunpack.c.l.b16 %v262
      %v366 = vunpack.c.h.b16 %v262
      %v367 = vunpack.c.l.b16 %v263
      %v368 = vunpack.c.h.b16 %v263
      %v369 = vunpack.c.l.b16 %v264
      %v370 = vunpack.c.h.b16 %v264
      %v371 = vunpack.c.l.b16 %v265
      %v372 = vunpack.c.h.b16 %v265
      %v373 = vunpack.c.l.b16 %v266
      %v374 = vunpack.c.h.b16 %v266
      %v375 = vunpack.c.l.b16 %v267
      %v376 = vunpack.c.h.b16 %v267
      %v377 = vunpack.c.l.b16 %v268
      %v378 = vunpack.c.h.b16 %v268
      %v379 = vunpack.c.l.b16 %v269
      %v380 = vunpack.c.h.b16 %v269
      %v381 = vunpack.c.l.b16 %v270
      %v382 = vunpack.c.h.b16 %v270
      %v383 = vunpack.c.l.b16 %v271
      %v384 = vunpack.c.h.b16 %v271
      %v385 = vunpack.c.l.b16 %v272
      %v386 = vunpack.c.h.b16 %v272
      %v387 = vunpack.c.l.b16 %v273
      %v388 = vunpack.c.h.b16 %v273
      %v389 = vunpack.c.l.b16 %v274
      %v390 = vunpack.c.h.b16 %v274
      %v391 = vunpack.c.l.b16 %v275
      %v392 = vunpack.c.h.b16 %v275
      %v393 = vunpack.c.l.b16 %v276
      %v394 = vunpack.c.h.b16 %v276
      %v395 = vunpack.c.l.b16 %v277
      %v396 = vunpack.c.h.b16 %v277
      %v397 = vunpack.c.l.b16 %v278
      %v398 = vunpack.c.h.b16 %v278
      %v399 = vunpack.c.l.b16 %v279
      %v400 = vunpack.c.h.b16 %v279
      %v401 = vunpack.c.l.b16 %v280
      %v402 = vunpack.c.h.b16 %v280
      %v403 = vunpack.c.l.b16 %v281
      %v404 = vunpack.c.h.b16 %v281
      %v405 = vunpack.c.l.b16 %v282
      %v406 = vunpack.c.h.b16 %v282
      %v407 = vunpack.c.l.b16 %v283
      %v408 = vunpack.c.h.b16 %v283
      %v409 = vunpack.c.l.b16 %v284
      %v410 = vunpack.c.h.b16 %v284
      %v411 = vunpack.c.l.b16 %v285
      %v412 = vunpack.c.h.b16 %v285
      %v413 = vunpack.c.l.b16 %v286
      %v414 = vunpack.c.h.b16 %v286
      %v415 = vpack.c.b16 %v355, %v351
      %v416 = vpack.c.b16 %v356, %v352
      %v417 = vpack.c.b16 %v357, %v353
      %v418 = vpack.c.b16 %v358, %v354
      %v419 = vpack.c.b16 %v363, %v359
      %v420 = vpack.c.b16 %v364, %v360
      %v421 = vpack.c.b16 %v365, %v361
      %v422 = vpack.c.b16 %v366, %v362
      %v423 = vpack.c.b16 %v371, %v367
      %v424 = vpack.c.b16 %v372, %v368
      %v425 = vpack.c.b16 %v373, %v369
      %v426 = vpack.c.b16 %v374, %v370
      %v427 = vpack.c.b16 %v379, %v375
      %v428 = vpack.c.b16 %v380, %v376
      %v429 = vpack.c.b16 %v381, %v377
      %v430 = vpack.c.b16 %v382, %v378
      %v431 = vpack.c.b16 %v387, %v383
      %v432 = vpack.c.b16 %v388, %v384
      %v433 = vpack.c.b16 %v389, %v385
      %v434 = vpack.c.b16 %v390, %v386
      %v435 = vpack.c.b16 %v395, %v391
      %v436 = vpack.c.b16 %v396, %v392
      %v437 = vpack.c.b16 %v397, %v393
      %v438 = vpack.c.b16 %v398, %v394
      %v439 = vpack.c.b16 %v403, %v399
      %v440 = vpack.c.b16 %v404, %v400
      %v441 = vpack.c.b16 %v405, %v401
      %v442 = vpack.c.b16 %v406, %v402
      %v443 = vpack.c.b16 %v411, %v407
      %v444 = vpack.c.b16 %v412, %v408
      %v445 = vpack.c.b16 %v413, %v409
      %v446 = vpack.c.b16 %v414, %v410
      %v503 = vunpack.c.l.b16 %v287
      %v504 = vunpack.c.h.b16 %v287
      %v505 = vunpack.c.l.b16 %v288
      %v506 = vunpack.c.h.b16 %v288
      %v507 = vunpack.c.l.b16 %v289
      %v508 = vunpack.c.h.b16 %v289
      %v509 = vunpack.c.l.b16 %v290
      %v510 = vunpack.c.h.b16 %v290
      %v511 = vunpack.c.l.b16 %v291
      %v512 = vunpack.c.h.b16 %v291
      %v513 = vunpack.c.l.b16 %v292
      %v514 = vunpack.c.h.b16 %v292
      %v515 = vunpack.c.l.b16 %v293
      %v516 = vunpack.c.h.b16 %v293
      %v517 = vunpack.c.l.b16 %v294
      %v518 = vunpack.c.h.b16 %v294
      %v519 = vunpack.c.l.b16 %v295
      %v520 = vunpack.c.h.b16 %v295
      %v521 = vunpack.c.l.b16 %v296
      %v522 = vunpack.c.h.b16 %v296
      %v523 = vunpack.c.l.b16 %v297
      %v524 = vunpack.c.h.b16 %v297
      %v525 = vunpack.c.l.b16 %v298
      %v526 = vunpack.c.h.b16 %v298
      %v527 = vunpack.c.l.b16 %v299
      %v528 = vunpack.c.h.b16 %v299
      %v529 = vunpack.c.l.b16 %v300
      %v530 = vunpack.c.h.b16 %v300
      %v531 = vunpack.c.l.b16 %v301
      %v532 = vunpack.c.h.b16 %v301
      %v533 = vunpack.c.l.b16 %v302
      %v534 = vunpack.c.h.b16 %v302
      %v535 = vunpack.c.l.b16 %v303
      %v536 = vunpack.c.h.b16 %v303
      %v537 = vunpack.c.l.b16 %v304
      %v538 = vunpack.c.h.b16 %v304
      %v539 = vunpack.c.l.b16 %v305
      %v540 = vunpack.c.h.b16 %v305
      %v541 = vunpack.c.l.b16 %v306
      %v542 = vunpack.c.h.b16 %v306
      %v543 = vunpack.c.l.b16 %v307
      %v544 = vunpack.c.h.b16 %v307
      %v545 = vunpack.c.l.b16 %v308
      %v546 = vunpack.c.h.b16 %v308
      %v547 = vunpack.c.l.b16 %v309
      %v548 = vunpack.c.h.b16 %v309
      %v549 = vunpack.c.l.b16 %v310
      %v550 = vunpack.c.h.b16 %v310
      %v551 = vunpack.c.l.b16 %v311
      %v552 = vunpack.c.h.b16 %v311
      %v553 = vunpack.c.l.b16 %v312
      %v554 = vunpack.c.h.b16 %v312
      %v555 = vunpack.c.l.b16 %v313
      %v556 = vunpack.c.h.b16 %v313
      %v557 = vunpack.c.l.b16 %v314
      %v558 = vunpack.c.h.b16 %v314
      %v559 = vunpack.c.l.b16 %v315
      %v560 = vunpack.c.h.b16 %v315
      %v561 = vunpack.c.l.b16 %v316
      %v562 = vunpack.c.h.b16 %v316
      %v563 = vunpack.c.l.b16 %v317
      %v564 = vunpack.c.h.b16 %v317
      %v565 = vunpack.c.l.b16 %v318
      %v566 = vunpack.c.h.b16 %v318
      %v567 = vpack.c.b16 %v507, %v503
      %v568 = vpack.c.b16 %v508, %v504
      %v569 = vpack.c.b16 %v509, %v505
      %v570 = vpack.c.b16 %v510, %v506
      %v571 = vpack.c.b16 %v515, %v511
      %v572 = vpack.c.b16 %v516, %v512
      %v573 = vpack.c.b16 %v517, %v513
      %v574 = vpack.c.b16 %v518, %v514
      %v575 = vpack.c.b16 %v523, %v519
      %v576 = vpack.c.b16 %v524, %v520
      %v577 = vpack.c.b16 %v525, %v521
      %v578 = vpack.c.b16 %v526, %v522
      %v579 = vpack.c.b16 %v531, %v527
      %v580 = vpack.c.b16 %v532, %v528
      %v581 = vpack.c.b16 %v533, %v529
      %v582 = vpack.c.b16 %v534, %v530
      %v583 = vpack.c.b16 %v539, %v535
      %v584 = vpack.c.b16 %v540, %v536
      %v585 = vpack.c.b16 %v541, %v537
      %v586 = vpack.c.b16 %v542, %v538
      %v587 = vpack.c.b16 %v547, %v543
      %v588 = vpack.c.b16 %v548, %v544
      %v589 = vpack.c.b16 %v549, %v545
      %v590 = vpack.c.b16 %v550, %v546
      %v591 = vpack.c.b16 %v555, %v551
      %v592 = vpack.c.b16 %v556, %v552
      %v593 = vpack.c.b16 %v557, %v553
      %v594 = vpack.c.b16 %v558, %v554
      %v595 = vpack.c.b16 %v563, %v559
      %v596 = vpack.c.b16 %v564, %v560
      %v597 = vpack.c.b16 %v565, %v561
      %v598 = vpack.c.b16 %v566, %v562
      %v623 = vld [vmem:[%s2] sm:$0xff]
      %v624 = vld [vmem:[%s2 + $0x8] sm:$0xff]
      %v625 = vld [vmem:[%s2 + $0x10] sm:$0xff]
      %v626 = vld [vmem:[%s2 + $0x18] sm:$0xff]
      %v627 = vld [vmem:[%s2 + $0x20] sm:$0xff]
      %v628 = vld [vmem:[%s2 + $0x28] sm:$0xff]
      %v629 = vld [vmem:[%s2 + $0x30] sm:$0xff]
      %v630 = vld [vmem:[%s2 + $0x38] sm:$0xff]
      %v631 = vld [vmem:[%s2 + $0x40] sm:$0xff]
      %v632 = vld [vmem:[%s2 + $0x48] sm:$0xff]
      %v633 = vld [vmem:[%s2 + $0x50] sm:$0xff]
      %v634 = vld [vmem:[%s2 + $0x58] sm:$0xff]
      %v635 = vld [vmem:[%s2 + $0x60] sm:$0xff]
      %v636 = vld [vmem:[%s2 + $0x68] sm:$0xff]
      %v637 = vld [vmem:[%s2 + $0x70] sm:$0xff]
      %v638 = vld [vmem:[%s2 + $0x78] sm:$0xff]
      %v639 = vld [vmem:[%s2 + $0x80] sm:$0xff]
      %v640 = vld [vmem:[%s2 + $0x88] sm:$0xff]
      %v641 = vld [vmem:[%s2 + $0x90] sm:$0xff]
      %v642 = vld [vmem:[%s2 + $0x98] sm:$0xff]
      %v643 = vld [vmem:[%s2 + $0xa0] sm:$0xff]
      %v644 = vld [vmem:[%s2 + $0xa8] sm:$0xff]
      %v645 = vld [vmem:[%s2 + $0xb0] sm:$0xff]
      %v646 = vld [vmem:[%s2 + $0xb8] sm:$0xff]
      %v647 = vld [vmem:[%s2 + $0xc0] sm:$0xff]
      %v648 = vld [vmem:[%s2 + $0xc8] sm:$0xff]
      %v649 = vld [vmem:[%s2 + $0xd0] sm:$0xff]
      %v650 = vld [vmem:[%s2 + $0xd8] sm:$0xff]
      %v651 = vld [vmem:[%s2 + $0xe0] sm:$0xff]
      %v652 = vld [vmem:[%s2 + $0xe8] sm:$0xff]
      %v653 = vld [vmem:[%s2 + $0xf0] sm:$0xff]
      %v654 = vld [vmem:[%s2 + $0xf8] sm:$0xff]
      %v655 = vld [vmem:[%s2 + $0x100] sm:$0xff]
      %v656 = vld [vmem:[%s2 + $0x108] sm:$0xff]
      %v657 = vld [vmem:[%s2 + $0x110] sm:$0xff]
      %v658 = vld [vmem:[%s2 + $0x118] sm:$0xff]
      %v659 = vld [vmem:[%s2 + $0x120] sm:$0xff]
      %v660 = vld [vmem:[%s2 + $0x128] sm:$0xff]
      %v661 = vld [vmem:[%s2 + $0x130] sm:$0xff]
      %v662 = vld [vmem:[%s2 + $0x138] sm:$0xff]
      %v663 = vld [vmem:[%s2 + $0x140] sm:$0xff]
      %v664 = vld [vmem:[%s2 + $0x148] sm:$0xff]
      %v665 = vld [vmem:[%s2 + $0x150] sm:$0xff]
      %v666 = vld [vmem:[%s2 + $0x158] sm:$0xff]
      %v667 = vld [vmem:[%s2 + $0x160] sm:$0xff]
      %v668 = vld [vmem:[%s2 + $0x168] sm:$0xff]
      %v669 = vld [vmem:[%s2 + $0x170] sm:$0xff]
      %v670 = vld [vmem:[%s2 + $0x178] sm:$0xff]
      %v671 = vld [vmem:[%s2 + $0x180] sm:$0xff]
      %v672 = vld [vmem:[%s2 + $0x188] sm:$0xff]
      %v673 = vld [vmem:[%s2 + $0x190] sm:$0xff]
      %v674 = vld [vmem:[%s2 + $0x198] sm:$0xff]
      %v675 = vld [vmem:[%s2 + $0x1a0] sm:$0xff]
      %v676 = vld [vmem:[%s2 + $0x1a8] sm:$0xff]
      %v677 = vld [vmem:[%s2 + $0x1b0] sm:$0xff]
      %v678 = vld [vmem:[%s2 + $0x1b8] sm:$0xff]
      %v679 = vld [vmem:[%s2 + $0x1c0] sm:$0xff]
      %v680 = vld [vmem:[%s2 + $0x1c8] sm:$0xff]
      %v681 = vld [vmem:[%s2 + $0x1d0] sm:$0xff]
      %v682 = vld [vmem:[%s2 + $0x1d8] sm:$0xff]
      %v683 = vld [vmem:[%s2 + $0x1e0] sm:$0xff]
      %v684 = vld [vmem:[%s2 + $0x1e8] sm:$0xff]
      %v685 = vld [vmem:[%s2 + $0x1f0] sm:$0xff]
      %v686 = vld [vmem:[%s2 + $0x1f8] sm:$0xff]
      %v687 = vld [vmem:[%s2 + $0x200] sm:$0xff]
      %v688 = vld [vmem:[%s2 + $0x208] sm:$0xff]
      %v689 = vld [vmem:[%s2 + $0x210] sm:$0xff]
      %v690 = vld [vmem:[%s2 + $0x218] sm:$0xff]
      %v691 = vld [vmem:[%s2 + $0x220] sm:$0xff]
      %v692 = vld [vmem:[%s2 + $0x228] sm:$0xff]
      %v693 = vld [vmem:[%s2 + $0x230] sm:$0xff]
      %v694 = vld [vmem:[%s2 + $0x238] sm:$0xff]
      %v695 = vld [vmem:[%s2 + $0x240] sm:$0xff]
      %v696 = vld [vmem:[%s2 + $0x248] sm:$0xff]
      %v697 = vld [vmem:[%s2 + $0x250] sm:$0xff]
      %v698 = vld [vmem:[%s2 + $0x258] sm:$0xff]
      %v699 = vld [vmem:[%s2 + $0x260] sm:$0xff]
      %v700 = vld [vmem:[%s2 + $0x268] sm:$0xff]
      %v701 = vld [vmem:[%s2 + $0x270] sm:$0xff]
      %v702 = vld [vmem:[%s2 + $0x278] sm:$0xff]
      %v703 = vld [vmem:[%s2 + $0x280] sm:$0xff]
      %v704 = vld [vmem:[%s2 + $0x288] sm:$0xff]
      %v705 = vld [vmem:[%s2 + $0x290] sm:$0xff]
      %v706 = vld [vmem:[%s2 + $0x298] sm:$0xff]
      %v707 = vld [vmem:[%s2 + $0x2a0] sm:$0xff]
      %v708 = vld [vmem:[%s2 + $0x2a8] sm:$0xff]
      %v709 = vld [vmem:[%s2 + $0x2b0] sm:$0xff]
      %v710 = vld [vmem:[%s2 + $0x2b8] sm:$0xff]
      %v711 = vld [vmem:[%s2 + $0x2c0] sm:$0xff]
      %v712 = vld [vmem:[%s2 + $0x2c8] sm:$0xff]
      %v713 = vld [vmem:[%s2 + $0x2d0] sm:$0xff]
      %v714 = vld [vmem:[%s2 + $0x2d8] sm:$0xff]
      %v715 = vld [vmem:[%s2 + $0x2e0] sm:$0xff]
      %v716 = vld [vmem:[%s2 + $0x2e8] sm:$0xff]
      %v717 = vld [vmem:[%s2 + $0x2f0] sm:$0xff]
      %v718 = vld [vmem:[%s2 + $0x2f8] sm:$0xff]
      %v719 = vld [vmem:[%s2 + $0x300] sm:$0xff]
      %v720 = vld [vmem:[%s2 + $0x308] sm:$0xff]
      %v721 = vld [vmem:[%s2 + $0x310] sm:$0xff]
      %v722 = vld [vmem:[%s2 + $0x318] sm:$0xff]
      %v823 = vunpack.c.l.b16 %v623
      %v824 = vunpack.c.h.b16 %v623
      %v825 = vunpack.c.l.b16 %v624
      %v826 = vunpack.c.h.b16 %v624
      %v827 = vunpack.c.l.b16 %v625
      %v828 = vunpack.c.h.b16 %v625
      %v829 = vunpack.c.l.b16 %v626
      %v830 = vunpack.c.h.b16 %v626
      %v831 = vunpack.c.l.b16 %v627
      %v832 = vunpack.c.h.b16 %v627
      %v833 = vunpack.c.l.b16 %v628
      %v834 = vunpack.c.h.b16 %v628
      %v835 = vunpack.c.l.b16 %v629
      %v836 = vunpack.c.h.b16 %v629
      %v837 = vunpack.c.l.b16 %v630
      %v838 = vunpack.c.h.b16 %v630
      %v839 = vunpack.c.l.b16 %v631
      %v840 = vunpack.c.h.b16 %v631
      %v841 = vunpack.c.l.b16 %v632
      %v842 = vunpack.c.h.b16 %v632
      %v843 = vunpack.c.l.b16 %v633
      %v844 = vunpack.c.h.b16 %v633
      %v845 = vunpack.c.l.b16 %v634
      %v846 = vunpack.c.h.b16 %v634
      %v847 = vunpack.c.l.b16 %v635
      %v848 = vunpack.c.h.b16 %v635
      %v849 = vunpack.c.l.b16 %v636
      %v850 = vunpack.c.h.b16 %v636
      %v851 = vunpack.c.l.b16 %v637
      %v852 = vunpack.c.h.b16 %v637
      %v853 = vunpack.c.l.b16 %v638
      %v854 = vunpack.c.h.b16 %v638
      %v855 = vunpack.c.l.b16 %v639
      %v856 = vunpack.c.h.b16 %v639
      %v857 = vunpack.c.l.b16 %v640
      %v858 = vunpack.c.h.b16 %v640
      %v859 = vunpack.c.l.b16 %v641
      %v860 = vunpack.c.h.b16 %v641
      %v861 = vunpack.c.l.b16 %v642
      %v862 = vunpack.c.h.b16 %v642
      %v863 = vunpack.c.l.b16 %v643
      %v864 = vunpack.c.h.b16 %v643
      %v865 = vunpack.c.l.b16 %v644
      %v866 = vunpack.c.h.b16 %v644
      %v867 = vunpack.c.l.b16 %v645
      %v868 = vunpack.c.h.b16 %v645
      %v869 = vunpack.c.l.b16 %v646
      %v870 = vunpack.c.h.b16 %v646
      %v871 = vunpack.c.l.b16 %v647
      %v872 = vunpack.c.h.b16 %v647
      %v873 = vunpack.c.l.b16 %v648
      %v874 = vunpack.c.h.b16 %v648
      %v875 = vunpack.c.l.b16 %v649
      %v876 = vunpack.c.h.b16 %v649
      %v877 = vunpack.c.l.b16 %v650
      %v878 = vunpack.c.h.b16 %v650
      %v879 = vunpack.c.l.b16 %v651
      %v880 = vunpack.c.h.b16 %v651
      %v881 = vunpack.c.l.b16 %v652
      %v882 = vunpack.c.h.b16 %v652
      %v883 = vunpack.c.l.b16 %v653
      %v884 = vunpack.c.h.b16 %v653
      %v885 = vunpack.c.l.b16 %v654
      %v886 = vunpack.c.h.b16 %v654
      %v887 = vunpack.c.l.b16 %v655
      %v888 = vunpack.c.h.b16 %v655
      %v889 = vunpack.c.l.b16 %v656
      %v890 = vunpack.c.h.b16 %v656
      %v891 = vunpack.c.l.b16 %v657
      %v892 = vunpack.c.h.b16 %v657
      %v893 = vunpack.c.l.b16 %v658
      %v894 = vunpack.c.h.b16 %v658
      %v895 = vunpack.c.l.b16 %v659
      %v896 = vunpack.c.h.b16 %v659
      %v897 = vunpack.c.l.b16 %v660
      %v898 = vunpack.c.h.b16 %v660
      %v899 = vunpack.c.l.b16 %v661
      %v900 = vunpack.c.h.b16 %v661
      %v901 = vunpack.c.l.b16 %v662
      %v902 = vunpack.c.h.b16 %v662
      %v903 = vunpack.c.l.b16 %v663
      %v904 = vunpack.c.h.b16 %v663
      %v905 = vunpack.c.l.b16 %v664
      %v906 = vunpack.c.h.b16 %v664
      %v907 = vunpack.c.l.b16 %v665
      %v908 = vunpack.c.h.b16 %v665
      %v909 = vunpack.c.l.b16 %v666
      %v910 = vunpack.c.h.b16 %v666
      %v911 = vunpack.c.l.b16 %v667
      %v912 = vunpack.c.h.b16 %v667
      %v913 = vunpack.c.l.b16 %v668
      %v914 = vunpack.c.h.b16 %v668
      %v915 = vunpack.c.l.b16 %v669
      %v916 = vunpack.c.h.b16 %v669
      %v917 = vunpack.c.l.b16 %v670
      %v918 = vunpack.c.h.b16 %v670
      %v919 = vunpack.c.l.b16 %v671
      %v920 = vunpack.c.h.b16 %v671
      %v921 = vunpack.c.l.b16 %v672
      %v922 = vunpack.c.h.b16 %v672
      %v923 = vunpack.c.l.b16 %v673
      %v924 = vunpack.c.h.b16 %v673
      %v925 = vunpack.c.l.b16 %v674
      %v926 = vunpack.c.h.b16 %v674
      %v927 = vunpack.c.l.b16 %v675
      %v928 = vunpack.c.h.b16 %v675
      %v929 = vunpack.c.l.b16 %v676
      %v930 = vunpack.c.h.b16 %v676
      %v931 = vunpack.c.l.b16 %v677
      %v932 = vunpack.c.h.b16 %v677
      %v933 = vunpack.c.l.b16 %v678
      %v934 = vunpack.c.h.b16 %v678
      %v935 = vunpack.c.l.b16 %v679
      %v936 = vunpack.c.h.b16 %v679
      %v937 = vunpack.c.l.b16 %v680
      %v938 = vunpack.c.h.b16 %v680
      %v939 = vunpack.c.l.b16 %v681
      %v940 = vunpack.c.h.b16 %v681
      %v941 = vunpack.c.l.b16 %v682
      %v942 = vunpack.c.h.b16 %v682
      %v943 = vunpack.c.l.b16 %v683
      %v944 = vunpack.c.h.b16 %v683
      %v945 = vunpack.c.l.b16 %v684
      %v946 = vunpack.c.h.b16 %v684
      %v947 = vunpack.c.l.b16 %v685
      %v948 = vunpack.c.h.b16 %v685
      %v949 = vunpack.c.l.b16 %v686
      %v950 = vunpack.c.h.b16 %v686
      %v951 = vunpack.c.l.b16 %v687
      %v952 = vunpack.c.h.b16 %v687
      %v953 = vunpack.c.l.b16 %v688
      %v954 = vunpack.c.h.b16 %v688
      %v955 = vunpack.c.l.b16 %v689
      %v956 = vunpack.c.h.b16 %v689
      %v957 = vunpack.c.l.b16 %v690
      %v958 = vunpack.c.h.b16 %v690
      %v959 = vunpack.c.l.b16 %v691
      %v960 = vunpack.c.h.b16 %v691
      %v961 = vunpack.c.l.b16 %v692
      %v962 = vunpack.c.h.b16 %v692
      %v963 = vunpack.c.l.b16 %v693
      %v964 = vunpack.c.h.b16 %v693
      %v965 = vunpack.c.l.b16 %v694
      %v966 = vunpack.c.h.b16 %v694
      %v967 = vunpack.c.l.b16 %v695
      %v968 = vunpack.c.h.b16 %v695
      %v969 = vunpack.c.l.b16 %v696
      %v970 = vunpack.c.h.b16 %v696
      %v971 = vunpack.c.l.b16 %v697
      %v972 = vunpack.c.h.b16 %v697
      %v973 = vunpack.c.l.b16 %v698
      %v974 = vunpack.c.h.b16 %v698
      %v975 = vunpack.c.l.b16 %v699
      %v976 = vunpack.c.h.b16 %v699
      %v977 = vunpack.c.l.b16 %v700
      %v978 = vunpack.c.h.b16 %v700
      %v979 = vunpack.c.l.b16 %v701
      %v980 = vunpack.c.h.b16 %v701
      %v981 = vunpack.c.l.b16 %v702
      %v982 = vunpack.c.h.b16 %v702
      %v983 = vunpack.c.l.b16 %v703
      %v984 = vunpack.c.h.b16 %v703
      %v985 = vunpack.c.l.b16 %v704
      %v986 = vunpack.c.h.b16 %v704
      %v987 = vunpack.c.l.b16 %v705
      %v988 = vunpack.c.h.b16 %v705
      %v989 = vunpack.c.l.b16 %v706
      %v990 = vunpack.c.h.b16 %v706
      %v991 = vunpack.c.l.b16 %v707
      %v992 = vunpack.c.h.b16 %v707
      %v993 = vunpack.c.l.b16 %v708
      %v994 = vunpack.c.h.b16 %v708
      %v995 = vunpack.c.l.b16 %v709
      %v996 = vunpack.c.h.b16 %v709
      %v997 = vunpack.c.l.b16 %v710
      %v998 = vunpack.c.h.b16 %v710
      %v999 = vunpack.c.l.b16 %v711
      %v1000 = vunpack.c.h.b16 %v711
      %v1001 = vunpack.c.l.b16 %v712
      %v1002 = vunpack.c.h.b16 %v712
      %v1003 = vunpack.c.l.b16 %v713
      %v1004 = vunpack.c.h.b16 %v713
      %v1005 = vunpack.c.l.b16 %v714
      %v1006 = vunpack.c.h.b16 %v714
      %v1007 = vunpack.c.l.b16 %v715
      %v1008 = vunpack.c.h.b16 %v715
      %v1009 = vunpack.c.l.b16 %v716
      %v1010 = vunpack.c.h.b16 %v716
      %v1011 = vunpack.c.l.b16 %v717
      %v1012 = vunpack.c.h.b16 %v717
      %v1013 = vunpack.c.l.b16 %v718
      %v1014 = vunpack.c.h.b16 %v718
      %v1015 = vunpack.c.l.b16 %v719
      %v1016 = vunpack.c.h.b16 %v719
      %v1017 = vunpack.c.l.b16 %v720
      %v1018 = vunpack.c.h.b16 %v720
      %v1019 = vunpack.c.l.b16 %v721
      %v1020 = vunpack.c.h.b16 %v721
      %v1021 = vunpack.c.l.b16 %v722
      %v1022 = vunpack.c.h.b16 %v722
      %v1023 = vpack.c.b16 %v827, %v823
      %v1024 = vpack.c.b16 %v828, %v824
      %v1025 = vpack.c.b16 %v829, %v825
      %v1026 = vpack.c.b16 %v830, %v826
      %v1027 = vpack.c.b16 %v835, %v831
      %v1028 = vpack.c.b16 %v836, %v832
      %v1029 = vpack.c.b16 %v837, %v833
      %v1030 = vpack.c.b16 %v838, %v834
      %v1031 = vpack.c.b16 %v843, %v839
      %v1032 = vpack.c.b16 %v844, %v840
      %v1033 = vpack.c.b16 %v845, %v841
      %v1034 = vpack.c.b16 %v846, %v842
      %v1035 = vpack.c.b16 %v851, %v847
      %v1036 = vpack.c.b16 %v852, %v848
      %v1037 = vpack.c.b16 %v853, %v849
      %v1038 = vpack.c.b16 %v854, %v850
      %v1039 = vpack.c.b16 %v859, %v855
      %v1040 = vpack.c.b16 %v860, %v856
      %v1041 = vpack.c.b16 %v861, %v857
      %v1042 = vpack.c.b16 %v862, %v858
      %v1043 = vpack.c.b16 %v867, %v863
      %v1044 = vpack.c.b16 %v868, %v864
      %v1045 = vpack.c.b16 %v869, %v865
      %v1046 = vpack.c.b16 %v870, %v866
      %v1047 = vpack.c.b16 %v875, %v871
      %v1048 = vpack.c.b16 %v876, %v872
      %v1049 = vpack.c.b16 %v877, %v873
      %v1050 = vpack.c.b16 %v878, %v874
      %v1051 = vpack.c.b16 %v883, %v879
      %v1052 = vpack.c.b16 %v884, %v880
      %v1053 = vpack.c.b16 %v885, %v881
      %v1054 = vpack.c.b16 %v886, %v882
      %v1055 = vpack.c.b16 %v891, %v887
      %v1056 = vpack.c.b16 %v892, %v888
      %v1057 = vpack.c.b16 %v893, %v889
      %v1058 = vpack.c.b16 %v894, %v890
      %v1059 = vpack.c.b16 %v899, %v895
      %v1060 = vpack.c.b16 %v900, %v896
      %v1061 = vpack.c.b16 %v901, %v897
      %v1062 = vpack.c.b16 %v902, %v898
      %v1063 = vpack.c.b16 %v907, %v903
      %v1064 = vpack.c.b16 %v908, %v904
      %v1065 = vpack.c.b16 %v909, %v905
      %v1066 = vpack.c.b16 %v910, %v906
      %v1067 = vpack.c.b16 %v915, %v911
      %v1068 = vpack.c.b16 %v916, %v912
      %v1069 = vpack.c.b16 %v917, %v913
      %v1070 = vpack.c.b16 %v918, %v914
      %v1071 = vpack.c.b16 %v923, %v919
      %v1072 = vpack.c.b16 %v924, %v920
      %v1073 = vpack.c.b16 %v925, %v921
      %v1074 = vpack.c.b16 %v926, %v922
      %v1075 = vpack.c.b16 %v931, %v927
      %v1076 = vpack.c.b16 %v932, %v928
      %v1077 = vpack.c.b16 %v933, %v929
      %v1078 = vpack.c.b16 %v934, %v930
      %v1079 = vpack.c.b16 %v939, %v935
      %v1080 = vpack.c.b16 %v940, %v936
      %v1081 = vpack.c.b16 %v941, %v937
      %v1082 = vpack.c.b16 %v942, %v938
      %v1083 = vpack.c.b16 %v947, %v943
      %v1084 = vpack.c.b16 %v948, %v944
      %v1085 = vpack.c.b16 %v949, %v945
      %v1086 = vpack.c.b16 %v950, %v946
      %v1087 = vpack.c.b16 %v955, %v951
      %v1088 = vpack.c.b16 %v956, %v952
      %v1089 = vpack.c.b16 %v957, %v953
      %v1090 = vpack.c.b16 %v958, %v954
      %v1091 = vpack.c.b16 %v963, %v959
      %v1092 = vpack.c.b16 %v964, %v960
      %v1093 = vpack.c.b16 %v965, %v961
      %v1094 = vpack.c.b16 %v966, %v962
      %v1095 = vpack.c.b16 %v971, %v967
      %v1096 = vpack.c.b16 %v972, %v968
      %v1097 = vpack.c.b16 %v973, %v969
      %v1098 = vpack.c.b16 %v974, %v970
      %v1099 = vpack.c.b16 %v979, %v975
      %v1100 = vpack.c.b16 %v980, %v976
      %v1101 = vpack.c.b16 %v981, %v977
      %v1102 = vpack.c.b16 %v982, %v978
      %v1103 = vpack.c.b16 %v987, %v983
      %v1104 = vpack.c.b16 %v988, %v984
      %v1105 = vpack.c.b16 %v989, %v985
      %v1106 = vpack.c.b16 %v990, %v986
      %v1107 = vpack.c.b16 %v995, %v991
      %v1108 = vpack.c.b16 %v996, %v992
      %v1109 = vpack.c.b16 %v997, %v993
      %v1110 = vpack.c.b16 %v998, %v994
      %v1111 = vpack.c.b16 %v1003, %v999
      %v1112 = vpack.c.b16 %v1004, %v1000
      %v1113 = vpack.c.b16 %v1005, %v1001
      %v1114 = vpack.c.b16 %v1006, %v1002
      %v1115 = vpack.c.b16 %v1011, %v1007
      %v1116 = vpack.c.b16 %v1012, %v1008
      %v1117 = vpack.c.b16 %v1013, %v1009
      %v1118 = vpack.c.b16 %v1014, %v1010
      %v1119 = vpack.c.b16 %v1019, %v1015
      %v1120 = vpack.c.b16 %v1020, %v1016
      %v1121 = vpack.c.b16 %v1021, %v1017
      %v1122 = vpack.c.b16 %v1022, %v1018
      %vm1223 = vcmask 130048
      %v1225 = vsel %vm1223, %v418, 0
      %v1228 = vsel %vm1223, %v422, 0
      %v1231 = vsel %vm1223, %v426, 0
      %v1234 = vsel %vm1223, %v430, 0
      %v1237 = vsel %vm1223, %v434, 0
      %v1240 = vsel %vm1223, %v438, 0
      %v1243 = vsel %vm1223, %v442, 0
      %v1246 = vsel %vm1223, %v446, 0
      %v1249 = vsel %vm1223, %v570, 0
      %v1252 = vsel %vm1223, %v574, 0
      %v1255 = vsel %vm1223, %v578, 0
      %v1258 = vsel %vm1223, %v582, 0
      %v1261 = vsel %vm1223, %v586, 0
      %v1264 = vsel %vm1223, %v590, 0
      %v1267 = vsel %vm1223, %v594, 0
      %v1270 = vsel %vm1223, %v598, 0
      %1272 = vmatpush.bf16.msra.mxu0 %v1051
      %1273 = vmatpush.bf16.msra.mxu0 %v1047
      %1274 = vmatpush.bf16.msra.mxu0 %v1043
      %1275 = vmatpush.bf16.msra.mxu0 %v1039
      %1276 = vmatpush.bf16.msra.mxu0 %v1035
      %1277 = vmatpush.bf16.msra.mxu0 %v1031
      %1278 = vmatpush.bf16.msra.mxu0 %v1027
      %1279 = vmatpush.bf16.msra.mxu0 %v1023
      %1280 = vmatmul.bf16.gmra.mxu0 %v415
      %v1281 = vpop.f32.mrf.mxu0
      %v1282 = vadd.f32 0.0, %v1281
      %v1283 = vpop.f32.mrf.mxu0
      %v1284 = vadd.f32 0.0, %v1283
      %1285 = vmatmul.bf16.gmra.mxu0 %v419
      %v1286 = vpop.f32.mrf.mxu0
      %v1287 = vadd.f32 0.0, %v1286
      %v1288 = vpop.f32.mrf.mxu0
      %v1289 = vadd.f32 0.0, %v1288
      %1290 = vmatmul.bf16.gmra.mxu0 %v423
      %v1291 = vpop.f32.mrf.mxu0
      %v1292 = vadd.f32 0.0, %v1291
      %v1293 = vpop.f32.mrf.mxu0
      %v1294 = vadd.f32 0.0, %v1293
      %1295 = vmatmul.bf16.gmra.mxu0 %v427
      %v1296 = vpop.f32.mrf.mxu0
      %v1297 = vadd.f32 0.0, %v1296
      %v1298 = vpop.f32.mrf.mxu0
      %v1299 = vadd.f32 0.0, %v1298
      %1300 = vmatmul.bf16.gmra.mxu0 %v431
      %v1301 = vpop.f32.mrf.mxu0
      %v1302 = vadd.f32 0.0, %v1301
      %v1303 = vpop.f32.mrf.mxu0
      %v1304 = vadd.f32 0.0, %v1303
      %1305 = vmatmul.bf16.gmra.mxu0 %v435
      %v1306 = vpop.f32.mrf.mxu0
      %v1307 = vadd.f32 0.0, %v1306
      %v1308 = vpop.f32.mrf.mxu0
      %v1309 = vadd.f32 0.0, %v1308
      %1310 = vmatmul.bf16.gmra.mxu0 %v439
      %v1311 = vpop.f32.mrf.mxu0
      %v1312 = vadd.f32 0.0, %v1311
      %v1313 = vpop.f32.mrf.mxu0
      %v1314 = vadd.f32 0.0, %v1313
      %1315 = vmatmul.bf16.gmra.mxu0 %v443
      %v1316 = vpop.f32.mrf.mxu0
      %v1317 = vadd.f32 0.0, %v1316
      %v1318 = vpop.f32.mrf.mxu0
      %v1319 = vadd.f32 0.0, %v1318
      %1320 = vmatmul.bf16.gmra.mxu0 %v567
      %v1321 = vpop.f32.mrf.mxu0
      %v1322 = vadd.f32 0.0, %v1321
      %v1323 = vpop.f32.mrf.mxu0
      %v1324 = vadd.f32 0.0, %v1323
      %1325 = vmatmul.bf16.gmra.mxu0 %v571
      %v1326 = vpop.f32.mrf.mxu0
      %v1327 = vadd.f32 0.0, %v1326
      %v1328 = vpop.f32.mrf.mxu0
      %v1329 = vadd.f32 0.0, %v1328
      %1330 = vmatmul.bf16.gmra.mxu0 %v575
      %v1331 = vpop.f32.mrf.mxu0
      %v1332 = vadd.f32 0.0, %v1331
      %v1333 = vpop.f32.mrf.mxu0
      %v1334 = vadd.f32 0.0, %v1333
      %1335 = vmatmul.bf16.gmra.mxu0 %v579
      %v1336 = vpop.f32.mrf.mxu0
      %v1337 = vadd.f32 0.0, %v1336
      %v1338 = vpop.f32.mrf.mxu0
      %v1339 = vadd.f32 0.0, %v1338
      %1340 = vmatmul.bf16.gmra.mxu0 %v583
      %v1341 = vpop.f32.mrf.mxu0
      %v1342 = vadd.f32 0.0, %v1341
      %v1343 = vpop.f32.mrf.mxu0
      %v1344 = vadd.f32 0.0, %v1343
      %1345 = vmatmul.bf16.gmra.mxu0 %v587
      %v1346 = vpop.f32.mrf.mxu0
      %v1347 = vadd.f32 0.0, %v1346
      %v1348 = vpop.f32.mrf.mxu0
      %v1349 = vadd.f32 0.0, %v1348
      %1350 = vmatmul.bf16.gmra.mxu0 %v591
      %v1351 = vpop.f32.mrf.mxu0
      %v1352 = vadd.f32 0.0, %v1351
      %v1353 = vpop.f32.mrf.mxu0
      %v1354 = vadd.f32 0.0, %v1353
      %1355 = vmatmul.bf16.gmra.mxu0 %v595
      %v1356 = vpop.f32.mrf.mxu0
      %v1357 = vadd.f32 0.0, %v1356
      %v1358 = vpop.f32.mrf.mxu0
      %v1359 = vadd.f32 0.0, %v1358
      %1360 = vdwg.mxu0
      %1361 = vmatpush.bf16.msra.mxu0 %v1083
      %1362 = vmatpush.bf16.msra.mxu0 %v1079
      %1363 = vmatpush.bf16.msra.mxu0 %v1075
      %1364 = vmatpush.bf16.msra.mxu0 %v1071
      %1365 = vmatpush.bf16.msra.mxu0 %v1067
      %1366 = vmatpush.bf16.msra.mxu0 %v1063
      %1367 = vmatpush.bf16.msra.mxu0 %v1059
      %1368 = vmatpush.bf16.msra.mxu0 %v1055
      %1369 = vmatmul.bf16.gmra.mxu0 %v416
      %v1370 = vpop.f32.mrf.mxu0
      %v1371 = vadd.f32 %v1282, %v1370
      %v1372 = vpop.f32.mrf.mxu0
      %v1373 = vadd.f32 %v1284, %v1372
      %1374 = vmatmul.bf16.gmra.mxu0 %v420
      %v1375 = vpop.f32.mrf.mxu0
      %v1376 = vadd.f32 %v1287, %v1375
      %v1377 = vpop.f32.mrf.mxu0
      %v1378 = vadd.f32 %v1289, %v1377
      %1379 = vmatmul.bf16.gmra.mxu0 %v424
      %v1380 = vpop.f32.mrf.mxu0
      %v1381 = vadd.f32 %v1292, %v1380
      %v1382 = vpop.f32.mrf.mxu0
      %v1383 = vadd.f32 %v1294, %v1382
      %1384 = vmatmul.bf16.gmra.mxu0 %v428
      %v1385 = vpop.f32.mrf.mxu0
      %v1386 = vadd.f32 %v1297, %v1385
      %v1387 = vpop.f32.mrf.mxu0
      %v1388 = vadd.f32 %v1299, %v1387
      %1389 = vmatmul.bf16.gmra.mxu0 %v432
      %v1390 = vpop.f32.mrf.mxu0
      %v1391 = vadd.f32 %v1302, %v1390
      %v1392 = vpop.f32.mrf.mxu0
      %v1393 = vadd.f32 %v1304, %v1392
      %1394 = vmatmul.bf16.gmra.mxu0 %v436
      %v1395 = vpop.f32.mrf.mxu0
      %v1396 = vadd.f32 %v1307, %v1395
      %v1397 = vpop.f32.mrf.mxu0
      %v1398 = vadd.f32 %v1309, %v1397
      %1399 = vmatmul.bf16.gmra.mxu0 %v440
      %v1400 = vpop.f32.mrf.mxu0
      %v1401 = vadd.f32 %v1312, %v1400
      %v1402 = vpop.f32.mrf.mxu0
      %v1403 = vadd.f32 %v1314, %v1402
      %1404 = vmatmul.bf16.gmra.mxu0 %v444
      %v1405 = vpop.f32.mrf.mxu0
      %v1406 = vadd.f32 %v1317, %v1405
      %v1407 = vpop.f32.mrf.mxu0
      %v1408 = vadd.f32 %v1319, %v1407
      %1409 = vmatmul.bf16.gmra.mxu0 %v568
      %v1410 = vpop.f32.mrf.mxu0
      %v1411 = vadd.f32 %v1322, %v1410
      %v1412 = vpop.f32.mrf.mxu0
      %v1413 = vadd.f32 %v1324, %v1412
      %1414 = vmatmul.bf16.gmra.mxu0 %v572
      %v1415 = vpop.f32.mrf.mxu0
      %v1416 = vadd.f32 %v1327, %v1415
      %v1417 = vpop.f32.mrf.mxu0
      %v1418 = vadd.f32 %v1329, %v1417
      %1419 = vmatmul.bf16.gmra.mxu0 %v576
      %v1420 = vpop.f32.mrf.mxu0
      %v1421 = vadd.f32 %v1332, %v1420
      %v1422 = vpop.f32.mrf.mxu0
      %v1423 = vadd.f32 %v1334, %v1422
      %1424 = vmatmul.bf16.gmra.mxu0 %v580
      %v1425 = vpop.f32.mrf.mxu0
      %v1426 = vadd.f32 %v1337, %v1425
      %v1427 = vpop.f32.mrf.mxu0
      %v1428 = vadd.f32 %v1339, %v1427
      %1429 = vmatmul.bf16.gmra.mxu0 %v584
      %v1430 = vpop.f32.mrf.mxu0
      %v1431 = vadd.f32 %v1342, %v1430
      %v1432 = vpop.f32.mrf.mxu0
      %v1433 = vadd.f32 %v1344, %v1432
      %1434 = vmatmul.bf16.gmra.mxu0 %v588
      %v1435 = vpop.f32.mrf.mxu0
      %v1436 = vadd.f32 %v1347, %v1435
      %v1437 = vpop.f32.mrf.mxu0
      %v1438 = vadd.f32 %v1349, %v1437
      %1439 = vmatmul.bf16.gmra.mxu0 %v592
      %v1440 = vpop.f32.mrf.mxu0
      %v1441 = vadd.f32 %v1352, %v1440
      %v1442 = vpop.f32.mrf.mxu0
      %v1443 = vadd.f32 %v1354, %v1442
      %1444 = vmatmul.bf16.gmra.mxu0 %v596
      %v1445 = vpop.f32.mrf.mxu0
      %v1446 = vadd.f32 %v1357, %v1445
      %v1447 = vpop.f32.mrf.mxu0
      %v1448 = vadd.f32 %v1359, %v1447
      %1449 = vdwg.mxu0
      %1450 = vmatpush.bf16.msra.mxu0 %v1115
      %1451 = vmatpush.bf16.msra.mxu0 %v1111
      %1452 = vmatpush.bf16.msra.mxu0 %v1107
      %1453 = vmatpush.bf16.msra.mxu0 %v1103
      %1454 = vmatpush.bf16.msra.mxu0 %v1099
      %1455 = vmatpush.bf16.msra.mxu0 %v1095
      %1456 = vmatpush.bf16.msra.mxu0 %v1091
      %1457 = vmatpush.bf16.msra.mxu0 %v1087
      %1458 = vmatmul.bf16.gmra.mxu0 %v417
      %v1459 = vpop.f32.mrf.mxu0
      %v1460 = vadd.f32 %v1371, %v1459
      %v1461 = vpop.f32.mrf.mxu0
      %v1462 = vadd.f32 %v1373, %v1461
      %1463 = vmatmul.bf16.gmra.mxu0 %v421
      %v1464 = vpop.f32.mrf.mxu0
      %v1465 = vadd.f32 %v1376, %v1464
      %v1466 = vpop.f32.mrf.mxu0
      %v1467 = vadd.f32 %v1378, %v1466
      %1468 = vmatmul.bf16.gmra.mxu0 %v425
      %v1469 = vpop.f32.mrf.mxu0
      %v1470 = vadd.f32 %v1381, %v1469
      %v1471 = vpop.f32.mrf.mxu0
      %v1472 = vadd.f32 %v1383, %v1471
      %1473 = vmatmul.bf16.gmra.mxu0 %v429
      %v1474 = vpop.f32.mrf.mxu0
      %v1475 = vadd.f32 %v1386, %v1474
      %v1476 = vpop.f32.mrf.mxu0
      %v1477 = vadd.f32 %v1388, %v1476
      %1478 = vmatmul.bf16.gmra.mxu0 %v433
      %v1479 = vpop.f32.mrf.mxu0
      %v1480 = vadd.f32 %v1391, %v1479
      %v1481 = vpop.f32.mrf.mxu0
      %v1482 = vadd.f32 %v1393, %v1481
      %1483 = vmatmul.bf16.gmra.mxu0 %v437
      %v1484 = vpop.f32.mrf.mxu0
      %v1485 = vadd.f32 %v1396, %v1484
      %v1486 = vpop.f32.mrf.mxu0
      %v1487 = vadd.f32 %v1398, %v1486
      %1488 = vmatmul.bf16.gmra.mxu0 %v441
      %v1489 = vpop.f32.mrf.mxu0
      %v1490 = vadd.f32 %v1401, %v1489
      %v1491 = vpop.f32.mrf.mxu0
      %v1492 = vadd.f32 %v1403, %v1491
      %1493 = vmatmul.bf16.gmra.mxu0 %v445
      %v1494 = vpop.f32.mrf.mxu0
      %v1495 = vadd.f32 %v1406, %v1494
      %v1496 = vpop.f32.mrf.mxu0
      %v1497 = vadd.f32 %v1408, %v1496
      %1498 = vmatmul.bf16.gmra.mxu0 %v569
      %v1499 = vpop.f32.mrf.mxu0
      %v1500 = vadd.f32 %v1411, %v1499
      %v1501 = vpop.f32.mrf.mxu0
      %v1502 = vadd.f32 %v1413, %v1501
      %1503 = vmatmul.bf16.gmra.mxu0 %v573
      %v1504 = vpop.f32.mrf.mxu0
      %v1505 = vadd.f32 %v1416, %v1504
      %v1506 = vpop.f32.mrf.mxu0
      %v1507 = vadd.f32 %v1418, %v1506
      %1508 = vmatmul.bf16.gmra.mxu0 %v577
      %v1509 = vpop.f32.mrf.mxu0
      %v1510 = vadd.f32 %v1421, %v1509
      %v1511 = vpop.f32.mrf.mxu0
      %v1512 = vadd.f32 %v1423, %v1511
      %1513 = vmatmul.bf16.gmra.mxu0 %v581
      %v1514 = vpop.f32.mrf.mxu0
      %v1515 = vadd.f32 %v1426, %v1514
      %v1516 = vpop.f32.mrf.mxu0
      %v1517 = vadd.f32 %v1428, %v1516
      %1518 = vmatmul.bf16.gmra.mxu0 %v585
      %v1519 = vpop.f32.mrf.mxu0
      %v1520 = vadd.f32 %v1431, %v1519
      %v1521 = vpop.f32.mrf.mxu0
      %v1522 = vadd.f32 %v1433, %v1521
      %1523 = vmatmul.bf16.gmra.mxu0 %v589
      %v1524 = vpop.f32.mrf.mxu0
      %v1525 = vadd.f32 %v1436, %v1524
      %v1526 = vpop.f32.mrf.mxu0
      %v1527 = vadd.f32 %v1438, %v1526
      %1528 = vmatmul.bf16.gmra.mxu0 %v593
      %v1529 = vpop.f32.mrf.mxu0
      %v1530 = vadd.f32 %v1441, %v1529
      %v1531 = vpop.f32.mrf.mxu0
      %v1532 = vadd.f32 %v1443, %v1531
      %1533 = vmatmul.bf16.gmra.mxu0 %v597
      %v1534 = vpop.f32.mrf.mxu0
      %v1535 = vadd.f32 %v1446, %v1534
      %v1536 = vpop.f32.mrf.mxu0
      %v1537 = vadd.f32 %v1448, %v1536
      %1538 = vdwg.mxu0
      %1539 = vmatpush.bf16.msra.mxu0 0
      %1540 = vmatpush.bf16.msra.mxu0 0
      %1541 = vmatpush.bf16.msra.mxu0 0
      %1542 = vmatpush.bf16.msra.mxu0 0
      %1543 = vmatpush.bf16.msra.mxu0 0
      %1544 = vmatpush.bf16.msra.mxu0 0
      %1545 = vmatpush.bf16.msra.mxu0 0
      %1546 = vmatpush.bf16.msra.mxu0 %v1119
      %1547 = vmatmul.bf16.gmra.mxu0 %v1225
      %v1548 = vpop.f32.mrf.mxu0
      %v1549 = vadd.f32 %v1460, %v1548
      %v1550 = vpop.f32.mrf.mxu0
      %v1551 = vadd.f32 %v1462, %v1550
      %1552 = vmatmul.bf16.gmra.mxu0 %v1228
      %v1553 = vpop.f32.mrf.mxu0
      %v1554 = vadd.f32 %v1465, %v1553
      %v1555 = vpop.f32.mrf.mxu0
      %v1556 = vadd.f32 %v1467, %v1555
      %1557 = vmatmul.bf16.gmra.mxu0 %v1231
      %v1558 = vpop.f32.mrf.mxu0
      %v1559 = vadd.f32 %v1470, %v1558
      %v1560 = vpop.f32.mrf.mxu0
      %v1561 = vadd.f32 %v1472, %v1560
      %1562 = vmatmul.bf16.gmra.mxu0 %v1234
      %v1563 = vpop.f32.mrf.mxu0
      %v1564 = vadd.f32 %v1475, %v1563
      %v1565 = vpop.f32.mrf.mxu0
      %v1566 = vadd.f32 %v1477, %v1565
      %1567 = vmatmul.bf16.gmra.mxu0 %v1237
      %v1568 = vpop.f32.mrf.mxu0
      %v1569 = vadd.f32 %v1480, %v1568
      %v1570 = vpop.f32.mrf.mxu0
      %v1571 = vadd.f32 %v1482, %v1570
      %1572 = vmatmul.bf16.gmra.mxu0 %v1240
      %v1573 = vpop.f32.mrf.mxu0
      %v1574 = vadd.f32 %v1485, %v1573
      %v1575 = vpop.f32.mrf.mxu0
      %v1576 = vadd.f32 %v1487, %v1575
      %1577 = vmatmul.bf16.gmra.mxu0 %v1243
      %v1578 = vpop.f32.mrf.mxu0
      %v1579 = vadd.f32 %v1490, %v1578
      %v1580 = vpop.f32.mrf.mxu0
      %v1581 = vadd.f32 %v1492, %v1580
      %1582 = vmatmul.bf16.gmra.mxu0 %v1246
      %v1583 = vpop.f32.mrf.mxu0
      %v1584 = vadd.f32 %v1495, %v1583
      %v1585 = vpop.f32.mrf.mxu0
      %v1586 = vadd.f32 %v1497, %v1585
      %1587 = vmatmul.bf16.gmra.mxu0 %v1249
      %v1588 = vpop.f32.mrf.mxu0
      %v1589 = vadd.f32 %v1500, %v1588
      %v1590 = vpop.f32.mrf.mxu0
      %v1591 = vadd.f32 %v1502, %v1590
      %1592 = vmatmul.bf16.gmra.mxu0 %v1252
      %v1593 = vpop.f32.mrf.mxu0
      %v1594 = vadd.f32 %v1505, %v1593
      %v1595 = vpop.f32.mrf.mxu0
      %v1596 = vadd.f32 %v1507, %v1595
      %1597 = vmatmul.bf16.gmra.mxu0 %v1255
      %v1598 = vpop.f32.mrf.mxu0
      %v1599 = vadd.f32 %v1510, %v1598
      %v1600 = vpop.f32.mrf.mxu0
      %v1601 = vadd.f32 %v1512, %v1600
      %1602 = vmatmul.bf16.gmra.mxu0 %v1258
      %v1603 = vpop.f32.mrf.mxu0
      %v1604 = vadd.f32 %v1515, %v1603
      %v1605 = vpop.f32.mrf.mxu0
      %v1606 = vadd.f32 %v1517, %v1605
      %1607 = vmatmul.bf16.gmra.mxu0 %v1261
      %v1608 = vpop.f32.mrf.mxu0
      %v1609 = vadd.f32 %v1520, %v1608
      %v1610 = vpop.f32.mrf.mxu0
      %v1611 = vadd.f32 %v1522, %v1610
      %1612 = vmatmul.bf16.gmra.mxu0 %v1264
      %v1613 = vpop.f32.mrf.mxu0
      %v1614 = vadd.f32 %v1525, %v1613
      %v1615 = vpop.f32.mrf.mxu0
      %v1616 = vadd.f32 %v1527, %v1615
      %1617 = vmatmul.bf16.gmra.mxu0 %v1267
      %v1618 = vpop.f32.mrf.mxu0
      %v1619 = vadd.f32 %v1530, %v1618
      %v1620 = vpop.f32.mrf.mxu0
      %v1621 = vadd.f32 %v1532, %v1620
      %1622 = vmatmul.bf16.gmra.mxu0 %v1270
      %v1623 = vpop.f32.mrf.mxu0
      %v1624 = vadd.f32 %v1535, %v1623
      %v1625 = vpop.f32.mrf.mxu0
      %v1626 = vadd.f32 %v1537, %v1625
      %1627 = vdwg.mxu0
      %1628 = vmatpush.bf16.msra.mxu0 %v1052
      %1629 = vmatpush.bf16.msra.mxu0 %v1048
      %1630 = vmatpush.bf16.msra.mxu0 %v1044
      %1631 = vmatpush.bf16.msra.mxu0 %v1040
      %1632 = vmatpush.bf16.msra.mxu0 %v1036
      %1633 = vmatpush.bf16.msra.mxu0 %v1032
      %1634 = vmatpush.bf16.msra.mxu0 %v1028
      %1635 = vmatpush.bf16.msra.mxu0 %v1024
      %1636 = vmatmul.bf16.gmra.mxu0 %v415
      %v1637 = vpop.f32.mrf.mxu0
      %v1638 = vadd.f32 0.0, %v1637
      %v1639 = vpop.f32.mrf.mxu0
      %v1640 = vadd.f32 0.0, %v1639
      %1641 = vmatmul.bf16.gmra.mxu0 %v419
      %v1642 = vpop.f32.mrf.mxu0
      %v1643 = vadd.f32 0.0, %v1642
      %v1644 = vpop.f32.mrf.mxu0
      %v1645 = vadd.f32 0.0, %v1644
      %1646 = vmatmul.bf16.gmra.mxu0 %v423
      %v1647 = vpop.f32.mrf.mxu0
      %v1648 = vadd.f32 0.0, %v1647
      %v1649 = vpop.f32.mrf.mxu0
      %v1650 = vadd.f32 0.0, %v1649
      %1651 = vmatmul.bf16.gmra.mxu0 %v427
      %v1652 = vpop.f32.mrf.mxu0
      %v1653 = vadd.f32 0.0, %v1652
      %v1654 = vpop.f32.mrf.mxu0
      %v1655 = vadd.f32 0.0, %v1654
      %1656 = vmatmul.bf16.gmra.mxu0 %v431
      %v1657 = vpop.f32.mrf.mxu0
      %v1658 = vadd.f32 0.0, %v1657
      %v1659 = vpop.f32.mrf.mxu0
      %v1660 = vadd.f32 0.0, %v1659
      %1661 = vmatmul.bf16.gmra.mxu0 %v435
      %v1662 = vpop.f32.mrf.mxu0
      %v1663 = vadd.f32 0.0, %v1662
      %v1664 = vpop.f32.mrf.mxu0
      %v1665 = vadd.f32 0.0, %v1664
      %1666 = vmatmul.bf16.gmra.mxu0 %v439
      %v1667 = vpop.f32.mrf.mxu0
      %v1668 = vadd.f32 0.0, %v1667
      %v1669 = vpop.f32.mrf.mxu0
      %v1670 = vadd.f32 0.0, %v1669
      %1671 = vmatmul.bf16.gmra.mxu0 %v443
      %v1672 = vpop.f32.mrf.mxu0
      %v1673 = vadd.f32 0.0, %v1672
      %v1674 = vpop.f32.mrf.mxu0
      %v1675 = vadd.f32 0.0, %v1674
      %1676 = vmatmul.bf16.gmra.mxu0 %v567
      %v1677 = vpop.f32.mrf.mxu0
      %v1678 = vadd.f32 0.0, %v1677
      %v1679 = vpop.f32.mrf.mxu0
      %v1680 = vadd.f32 0.0, %v1679
      %1681 = vmatmul.bf16.gmra.mxu0 %v571
      %v1682 = vpop.f32.mrf.mxu0
      %v1683 = vadd.f32 0.0, %v1682
      %v1684 = vpop.f32.mrf.mxu0
      %v1685 = vadd.f32 0.0, %v1684
      %1686 = vmatmul.bf16.gmra.mxu0 %v575
      %v1687 = vpop.f32.mrf.mxu0
      %v1688 = vadd.f32 0.0, %v1687
      %v1689 = vpop.f32.mrf.mxu0
      %v1690 = vadd.f32 0.0, %v1689
      %1691 = vmatmul.bf16.gmra.mxu0 %v579
      %v1692 = vpop.f32.mrf.mxu0
      %v1693 = vadd.f32 0.0, %v1692
      %v1694 = vpop.f32.mrf.mxu0
      %v1695 = vadd.f32 0.0, %v1694
      %1696 = vmatmul.bf16.gmra.mxu0 %v583
      %v1697 = vpop.f32.mrf.mxu0
      %v1698 = vadd.f32 0.0, %v1697
      %v1699 = vpop.f32.mrf.mxu0
      %v1700 = vadd.f32 0.0, %v1699
      %1701 = vmatmul.bf16.gmra.mxu0 %v587
      %v1702 = vpop.f32.mrf.mxu0
      %v1703 = vadd.f32 0.0, %v1702
      %v1704 = vpop.f32.mrf.mxu0
      %v1705 = vadd.f32 0.0, %v1704
      %1706 = vmatmul.bf16.gmra.mxu0 %v591
      %v1707 = vpop.f32.mrf.mxu0
      %v1708 = vadd.f32 0.0, %v1707
      %v1709 = vpop.f32.mrf.mxu0
      %v1710 = vadd.f32 0.0, %v1709
      %1711 = vmatmul.bf16.gmra.mxu0 %v595
      %v1712 = vpop.f32.mrf.mxu0
      %v1713 = vadd.f32 0.0, %v1712
      %v1714 = vpop.f32.mrf.mxu0
      %v1715 = vadd.f32 0.0, %v1714
      %1716 = vdwg.mxu0
      %1717 = vmatpush.bf16.msra.mxu0 %v1084
      %1718 = vmatpush.bf16.msra.mxu0 %v1080
      %1719 = vmatpush.bf16.msra.mxu0 %v1076
      %1720 = vmatpush.bf16.msra.mxu0 %v1072
      %1721 = vmatpush.bf16.msra.mxu0 %v1068
      %1722 = vmatpush.bf16.msra.mxu0 %v1064
      %1723 = vmatpush.bf16.msra.mxu0 %v1060
      %1724 = vmatpush.bf16.msra.mxu0 %v1056
      %1725 = vmatmul.bf16.gmra.mxu0 %v416
      %v1726 = vpop.f32.mrf.mxu0
      %v1727 = vadd.f32 %v1638, %v1726
      %v1728 = vpop.f32.mrf.mxu0
      %v1729 = vadd.f32 %v1640, %v1728
      %1730 = vmatmul.bf16.gmra.mxu0 %v420
      %v1731 = vpop.f32.mrf.mxu0
      %v1732 = vadd.f32 %v1643, %v1731
      %v1733 = vpop.f32.mrf.mxu0
      %v1734 = vadd.f32 %v1645, %v1733
      %1735 = vmatmul.bf16.gmra.mxu0 %v424
      %v1736 = vpop.f32.mrf.mxu0
      %v1737 = vadd.f32 %v1648, %v1736
      %v1738 = vpop.f32.mrf.mxu0
      %v1739 = vadd.f32 %v1650, %v1738
      %1740 = vmatmul.bf16.gmra.mxu0 %v428
      %v1741 = vpop.f32.mrf.mxu0
      %v1742 = vadd.f32 %v1653, %v1741
      %v1743 = vpop.f32.mrf.mxu0
      %v1744 = vadd.f32 %v1655, %v1743
      %1745 = vmatmul.bf16.gmra.mxu0 %v432
      %v1746 = vpop.f32.mrf.mxu0
      %v1747 = vadd.f32 %v1658, %v1746
      %v1748 = vpop.f32.mrf.mxu0
      %v1749 = vadd.f32 %v1660, %v1748
      %1750 = vmatmul.bf16.gmra.mxu0 %v436
      %v1751 = vpop.f32.mrf.mxu0
      %v1752 = vadd.f32 %v1663, %v1751
      %v1753 = vpop.f32.mrf.mxu0
      %v1754 = vadd.f32 %v1665, %v1753
      %1755 = vmatmul.bf16.gmra.mxu0 %v440
      %v1756 = vpop.f32.mrf.mxu0
      %v1757 = vadd.f32 %v1668, %v1756
      %v1758 = vpop.f32.mrf.mxu0
      %v1759 = vadd.f32 %v1670, %v1758
      %1760 = vmatmul.bf16.gmra.mxu0 %v444
      %v1761 = vpop.f32.mrf.mxu0
      %v1762 = vadd.f32 %v1673, %v1761
      %v1763 = vpop.f32.mrf.mxu0
      %v1764 = vadd.f32 %v1675, %v1763
      %1765 = vmatmul.bf16.gmra.mxu0 %v568
      %v1766 = vpop.f32.mrf.mxu0
      %v1767 = vadd.f32 %v1678, %v1766
      %v1768 = vpop.f32.mrf.mxu0
      %v1769 = vadd.f32 %v1680, %v1768
      %1770 = vmatmul.bf16.gmra.mxu0 %v572
      %v1771 = vpop.f32.mrf.mxu0
      %v1772 = vadd.f32 %v1683, %v1771
      %v1773 = vpop.f32.mrf.mxu0
      %v1774 = vadd.f32 %v1685, %v1773
      %1775 = vmatmul.bf16.gmra.mxu0 %v576
      %v1776 = vpop.f32.mrf.mxu0
      %v1777 = vadd.f32 %v1688, %v1776
      %v1778 = vpop.f32.mrf.mxu0
      %v1779 = vadd.f32 %v1690, %v1778
      %1780 = vmatmul.bf16.gmra.mxu0 %v580
      %v1781 = vpop.f32.mrf.mxu0
      %v1782 = vadd.f32 %v1693, %v1781
      %v1783 = vpop.f32.mrf.mxu0
      %v1784 = vadd.f32 %v1695, %v1783
      %1785 = vmatmul.bf16.gmra.mxu0 %v584
      %v1786 = vpop.f32.mrf.mxu0
      %v1787 = vadd.f32 %v1698, %v1786
      %v1788 = vpop.f32.mrf.mxu0
      %v1789 = vadd.f32 %v1700, %v1788
      %1790 = vmatmul.bf16.gmra.mxu0 %v588
      %v1791 = vpop.f32.mrf.mxu0
      %v1792 = vadd.f32 %v1703, %v1791
      %v1793 = vpop.f32.mrf.mxu0
      %v1794 = vadd.f32 %v1705, %v1793
      %1795 = vmatmul.bf16.gmra.mxu0 %v592
      %v1796 = vpop.f32.mrf.mxu0
      %v1797 = vadd.f32 %v1708, %v1796
      %v1798 = vpop.f32.mrf.mxu0
      %v1799 = vadd.f32 %v1710, %v1798
      %1800 = vmatmul.bf16.gmra.mxu0 %v596
      %v1801 = vpop.f32.mrf.mxu0
      %v1802 = vadd.f32 %v1713, %v1801
      %v1803 = vpop.f32.mrf.mxu0
      %v1804 = vadd.f32 %v1715, %v1803
      %1805 = vdwg.mxu0
      %1806 = vmatpush.bf16.msra.mxu0 %v1116
      %1807 = vmatpush.bf16.msra.mxu0 %v1112
      %1808 = vmatpush.bf16.msra.mxu0 %v1108
      %1809 = vmatpush.bf16.msra.mxu0 %v1104
      %1810 = vmatpush.bf16.msra.mxu0 %v1100
      %1811 = vmatpush.bf16.msra.mxu0 %v1096
      %1812 = vmatpush.bf16.msra.mxu0 %v1092
      %1813 = vmatpush.bf16.msra.mxu0 %v1088
      %1814 = vmatmul.bf16.gmra.mxu0 %v417
      %v1815 = vpop.f32.mrf.mxu0
      %v1816 = vadd.f32 %v1727, %v1815
      %v1817 = vpop.f32.mrf.mxu0
      %v1818 = vadd.f32 %v1729, %v1817
      %1819 = vmatmul.bf16.gmra.mxu0 %v421
      %v1820 = vpop.f32.mrf.mxu0
      %v1821 = vadd.f32 %v1732, %v1820
      %v1822 = vpop.f32.mrf.mxu0
      %v1823 = vadd.f32 %v1734, %v1822
      %1824 = vmatmul.bf16.gmra.mxu0 %v425
      %v1825 = vpop.f32.mrf.mxu0
      %v1826 = vadd.f32 %v1737, %v1825
      %v1827 = vpop.f32.mrf.mxu0
      %v1828 = vadd.f32 %v1739, %v1827
      %1829 = vmatmul.bf16.gmra.mxu0 %v429
      %v1830 = vpop.f32.mrf.mxu0
      %v1831 = vadd.f32 %v1742, %v1830
      %v1832 = vpop.f32.mrf.mxu0
      %v1833 = vadd.f32 %v1744, %v1832
      %1834 = vmatmul.bf16.gmra.mxu0 %v433
      %v1835 = vpop.f32.mrf.mxu0
      %v1836 = vadd.f32 %v1747, %v1835
      %v1837 = vpop.f32.mrf.mxu0
      %v1838 = vadd.f32 %v1749, %v1837
      %1839 = vmatmul.bf16.gmra.mxu0 %v437
      %v1840 = vpop.f32.mrf.mxu0
      %v1841 = vadd.f32 %v1752, %v1840
      %v1842 = vpop.f32.mrf.mxu0
      %v1843 = vadd.f32 %v1754, %v1842
      %1844 = vmatmul.bf16.gmra.mxu0 %v441
      %v1845 = vpop.f32.mrf.mxu0
      %v1846 = vadd.f32 %v1757, %v1845
      %v1847 = vpop.f32.mrf.mxu0
      %v1848 = vadd.f32 %v1759, %v1847
      %1849 = vmatmul.bf16.gmra.mxu0 %v445
      %v1850 = vpop.f32.mrf.mxu0
      %v1851 = vadd.f32 %v1762, %v1850
      %v1852 = vpop.f32.mrf.mxu0
      %v1853 = vadd.f32 %v1764, %v1852
      %1854 = vmatmul.bf16.gmra.mxu0 %v569
      %v1855 = vpop.f32.mrf.mxu0
      %v1856 = vadd.f32 %v1767, %v1855
      %v1857 = vpop.f32.mrf.mxu0
      %v1858 = vadd.f32 %v1769, %v1857
      %1859 = vmatmul.bf16.gmra.mxu0 %v573
      %v1860 = vpop.f32.mrf.mxu0
      %v1861 = vadd.f32 %v1772, %v1860
      %v1862 = vpop.f32.mrf.mxu0
      %v1863 = vadd.f32 %v1774, %v1862
      %1864 = vmatmul.bf16.gmra.mxu0 %v577
      %v1865 = vpop.f32.mrf.mxu0
      %v1866 = vadd.f32 %v1777, %v1865
      %v1867 = vpop.f32.mrf.mxu0
      %v1868 = vadd.f32 %v1779, %v1867
      %1869 = vmatmul.bf16.gmra.mxu0 %v581
      %v1870 = vpop.f32.mrf.mxu0
      %v1871 = vadd.f32 %v1782, %v1870
      %v1872 = vpop.f32.mrf.mxu0
      %v1873 = vadd.f32 %v1784, %v1872
      %1874 = vmatmul.bf16.gmra.mxu0 %v585
      %v1875 = vpop.f32.mrf.mxu0
      %v1876 = vadd.f32 %v1787, %v1875
      %v1877 = vpop.f32.mrf.mxu0
      %v1878 = vadd.f32 %v1789, %v1877
      %1879 = vmatmul.bf16.gmra.mxu0 %v589
      %v1880 = vpop.f32.mrf.mxu0
      %v1881 = vadd.f32 %v1792, %v1880
      %v1882 = vpop.f32.mrf.mxu0
      %v1883 = vadd.f32 %v1794, %v1882
      %1884 = vmatmul.bf16.gmra.mxu0 %v593
      %v1885 = vpop.f32.mrf.mxu0
      %v1886 = vadd.f32 %v1797, %v1885
      %v1887 = vpop.f32.mrf.mxu0
      %v1888 = vadd.f32 %v1799, %v1887
      %1889 = vmatmul.bf16.gmra.mxu0 %v597
      %v1890 = vpop.f32.mrf.mxu0
      %v1891 = vadd.f32 %v1802, %v1890
      %v1892 = vpop.f32.mrf.mxu0
      %v1893 = vadd.f32 %v1804, %v1892
      %1894 = vdwg.mxu0
      %1895 = vmatpush.bf16.msra.mxu0 0
      %1896 = vmatpush.bf16.msra.mxu0 0
      %1897 = vmatpush.bf16.msra.mxu0 0
      %1898 = vmatpush.bf16.msra.mxu0 0
      %1899 = vmatpush.bf16.msra.mxu0 0
      %1900 = vmatpush.bf16.msra.mxu0 0
      %1901 = vmatpush.bf16.msra.mxu0 0
      %1902 = vmatpush.bf16.msra.mxu0 %v1120
      %1903 = vmatmul.bf16.gmra.mxu0 %v1225
      %v1904 = vpop.f32.mrf.mxu0
      %v1905 = vadd.f32 %v1816, %v1904
      %v1906 = vpop.f32.mrf.mxu0
      %v1907 = vadd.f32 %v1818, %v1906
      %1908 = vmatmul.bf16.gmra.mxu0 %v1228
      %v1909 = vpop.f32.mrf.mxu0
      %v1910 = vadd.f32 %v1821, %v1909
      %v1911 = vpop.f32.mrf.mxu0
      %v1912 = vadd.f32 %v1823, %v1911
      %1913 = vmatmul.bf16.gmra.mxu0 %v1231
      %v1914 = vpop.f32.mrf.mxu0
      %v1915 = vadd.f32 %v1826, %v1914
      %v1916 = vpop.f32.mrf.mxu0
      %v1917 = vadd.f32 %v1828, %v1916
      %1918 = vmatmul.bf16.gmra.mxu0 %v1234
      %v1919 = vpop.f32.mrf.mxu0
      %v1920 = vadd.f32 %v1831, %v1919
      %v1921 = vpop.f32.mrf.mxu0
      %v1922 = vadd.f32 %v1833, %v1921
      %1923 = vmatmul.bf16.gmra.mxu0 %v1237
      %v1924 = vpop.f32.mrf.mxu0
      %v1925 = vadd.f32 %v1836, %v1924
      %v1926 = vpop.f32.mrf.mxu0
      %v1927 = vadd.f32 %v1838, %v1926
      %1928 = vmatmul.bf16.gmra.mxu0 %v1240
      %v1929 = vpop.f32.mrf.mxu0
      %v1930 = vadd.f32 %v1841, %v1929
      %v1931 = vpop.f32.mrf.mxu0
      %v1932 = vadd.f32 %v1843, %v1931
      %1933 = vmatmul.bf16.gmra.mxu0 %v1243
      %v1934 = vpop.f32.mrf.mxu0
      %v1935 = vadd.f32 %v1846, %v1934
      %v1936 = vpop.f32.mrf.mxu0
      %v1937 = vadd.f32 %v1848, %v1936
      %1938 = vmatmul.bf16.gmra.mxu0 %v1246
      %v1939 = vpop.f32.mrf.mxu0
      %v1940 = vadd.f32 %v1851, %v1939
      %v1941 = vpop.f32.mrf.mxu0
      %v1942 = vadd.f32 %v1853, %v1941
      %1943 = vmatmul.bf16.gmra.mxu0 %v1249
      %v1944 = vpop.f32.mrf.mxu0
      %v1945 = vadd.f32 %v1856, %v1944
      %v1946 = vpop.f32.mrf.mxu0
      %v1947 = vadd.f32 %v1858, %v1946
      %1948 = vmatmul.bf16.gmra.mxu0 %v1252
      %v1949 = vpop.f32.mrf.mxu0
      %v1950 = vadd.f32 %v1861, %v1949
      %v1951 = vpop.f32.mrf.mxu0
      %v1952 = vadd.f32 %v1863, %v1951
      %1953 = vmatmul.bf16.gmra.mxu0 %v1255
      %v1954 = vpop.f32.mrf.mxu0
      %v1955 = vadd.f32 %v1866, %v1954
      %v1956 = vpop.f32.mrf.mxu0
      %v1957 = vadd.f32 %v1868, %v1956
      %1958 = vmatmul.bf16.gmra.mxu0 %v1258
      %v1959 = vpop.f32.mrf.mxu0
      %v1960 = vadd.f32 %v1871, %v1959
      %v1961 = vpop.f32.mrf.mxu0
      %v1962 = vadd.f32 %v1873, %v1961
      %1963 = vmatmul.bf16.gmra.mxu0 %v1261
      %v1964 = vpop.f32.mrf.mxu0
      %v1965 = vadd.f32 %v1876, %v1964
      %v1966 = vpop.f32.mrf.mxu0
      %v1967 = vadd.f32 %v1878, %v1966
      %1968 = vmatmul.bf16.gmra.mxu0 %v1264
      %v1969 = vpop.f32.mrf.mxu0
      %v1970 = vadd.f32 %v1881, %v1969
      %v1971 = vpop.f32.mrf.mxu0
      %v1972 = vadd.f32 %v1883, %v1971
      %1973 = vmatmul.bf16.gmra.mxu0 %v1267
      %v1974 = vpop.f32.mrf.mxu0
      %v1975 = vadd.f32 %v1886, %v1974
      %v1976 = vpop.f32.mrf.mxu0
      %v1977 = vadd.f32 %v1888, %v1976
      %1978 = vmatmul.bf16.gmra.mxu0 %v1270
      %v1979 = vpop.f32.mrf.mxu0
      %v1980 = vadd.f32 %v1891, %v1979
      %v1981 = vpop.f32.mrf.mxu0
      %v1982 = vadd.f32 %v1893, %v1981
      %1983 = vdwg.mxu0
      %1984 = vmatpush.bf16.msra.mxu0 %v1053
      %1985 = vmatpush.bf16.msra.mxu0 %v1049
      %1986 = vmatpush.bf16.msra.mxu0 %v1045
      %1987 = vmatpush.bf16.msra.mxu0 %v1041
      %1988 = vmatpush.bf16.msra.mxu0 %v1037
      %1989 = vmatpush.bf16.msra.mxu0 %v1033
      %1990 = vmatpush.bf16.msra.mxu0 %v1029
      %1991 = vmatpush.bf16.msra.mxu0 %v1025
      %1992 = vmatmul.bf16.gmra.mxu0 %v415
      %v1993 = vpop.f32.mrf.mxu0
      %v1994 = vadd.f32 0.0, %v1993
      %v1995 = vpop.f32.mrf.mxu0
      %v1996 = vadd.f32 0.0, %v1995
      %1997 = vmatmul.bf16.gmra.mxu0 %v419
      %v1998 = vpop.f32.mrf.mxu0
      %v1999 = vadd.f32 0.0, %v1998
      %v2000 = vpop.f32.mrf.mxu0
      %v2001 = vadd.f32 0.0, %v2000
      %2002 = vmatmul.bf16.gmra.mxu0 %v423
      %v2003 = vpop.f32.mrf.mxu0
      %v2004 = vadd.f32 0.0, %v2003
      %v2005 = vpop.f32.mrf.mxu0
      %v2006 = vadd.f32 0.0, %v2005
      %2007 = vmatmul.bf16.gmra.mxu0 %v427
      %v2008 = vpop.f32.mrf.mxu0
      %v2009 = vadd.f32 0.0, %v2008
      %v2010 = vpop.f32.mrf.mxu0
      %v2011 = vadd.f32 0.0, %v2010
      %2012 = vmatmul.bf16.gmra.mxu0 %v431
      %v2013 = vpop.f32.mrf.mxu0
      %v2014 = vadd.f32 0.0, %v2013
      %v2015 = vpop.f32.mrf.mxu0
      %v2016 = vadd.f32 0.0, %v2015
      %2017 = vmatmul.bf16.gmra.mxu0 %v435
      %v2018 = vpop.f32.mrf.mxu0
      %v2019 = vadd.f32 0.0, %v2018
      %v2020 = vpop.f32.mrf.mxu0
      %v2021 = vadd.f32 0.0, %v2020
      %2022 = vmatmul.bf16.gmra.mxu0 %v439
      %v2023 = vpop.f32.mrf.mxu0
      %v2024 = vadd.f32 0.0, %v2023
      %v2025 = vpop.f32.mrf.mxu0
      %v2026 = vadd.f32 0.0, %v2025
      %2027 = vmatmul.bf16.gmra.mxu0 %v443
      %v2028 = vpop.f32.mrf.mxu0
      %v2029 = vadd.f32 0.0, %v2028
      %v2030 = vpop.f32.mrf.mxu0
      %v2031 = vadd.f32 0.0, %v2030
      %2032 = vmatmul.bf16.gmra.mxu0 %v567
      %v2033 = vpop.f32.mrf.mxu0
      %v2034 = vadd.f32 0.0, %v2033
      %v2035 = vpop.f32.mrf.mxu0
      %v2036 = vadd.f32 0.0, %v2035
      %2037 = vmatmul.bf16.gmra.mxu0 %v571
      %v2038 = vpop.f32.mrf.mxu0
      %v2039 = vadd.f32 0.0, %v2038
      %v2040 = vpop.f32.mrf.mxu0
      %v2041 = vadd.f32 0.0, %v2040
      %2042 = vmatmul.bf16.gmra.mxu0 %v575
      %v2043 = vpop.f32.mrf.mxu0
      %v2044 = vadd.f32 0.0, %v2043
      %v2045 = vpop.f32.mrf.mxu0
      %v2046 = vadd.f32 0.0, %v2045
      %2047 = vmatmul.bf16.gmra.mxu0 %v579
      %v2048 = vpop.f32.mrf.mxu0
      %v2049 = vadd.f32 0.0, %v2048
      %v2050 = vpop.f32.mrf.mxu0
      %v2051 = vadd.f32 0.0, %v2050
      %2052 = vmatmul.bf16.gmra.mxu0 %v583
      %v2053 = vpop.f32.mrf.mxu0
      %v2054 = vadd.f32 0.0, %v2053
      %v2055 = vpop.f32.mrf.mxu0
      %v2056 = vadd.f32 0.0, %v2055
      %2057 = vmatmul.bf16.gmra.mxu0 %v587
      %v2058 = vpop.f32.mrf.mxu0
      %v2059 = vadd.f32 0.0, %v2058
      %v2060 = vpop.f32.mrf.mxu0
      %v2061 = vadd.f32 0.0, %v2060
      %2062 = vmatmul.bf16.gmra.mxu0 %v591
      %v2063 = vpop.f32.mrf.mxu0
      %v2064 = vadd.f32 0.0, %v2063
      %v2065 = vpop.f32.mrf.mxu0
      %v2066 = vadd.f32 0.0, %v2065
      %2067 = vmatmul.bf16.gmra.mxu0 %v595
      %v2068 = vpop.f32.mrf.mxu0
      %v2069 = vadd.f32 0.0, %v2068
      %v2070 = vpop.f32.mrf.mxu0
      %v2071 = vadd.f32 0.0, %v2070
      %2072 = vdwg.mxu0
      %2073 = vmatpush.bf16.msra.mxu0 %v1085
      %2074 = vmatpush.bf16.msra.mxu0 %v1081
      %2075 = vmatpush.bf16.msra.mxu0 %v1077
      %2076 = vmatpush.bf16.msra.mxu0 %v1073
      %2077 = vmatpush.bf16.msra.mxu0 %v1069
      %2078 = vmatpush.bf16.msra.mxu0 %v1065
      %2079 = vmatpush.bf16.msra.mxu0 %v1061
      %2080 = vmatpush.bf16.msra.mxu0 %v1057
      %2081 = vmatmul.bf16.gmra.mxu0 %v416
      %v2082 = vpop.f32.mrf.mxu0
      %v2083 = vadd.f32 %v1994, %v2082
      %v2084 = vpop.f32.mrf.mxu0
      %v2085 = vadd.f32 %v1996, %v2084
      %2086 = vmatmul.bf16.gmra.mxu0 %v420
      %v2087 = vpop.f32.mrf.mxu0
      %v2088 = vadd.f32 %v1999, %v2087
      %v2089 = vpop.f32.mrf.mxu0
      %v2090 = vadd.f32 %v2001, %v2089
      %2091 = vmatmul.bf16.gmra.mxu0 %v424
      %v2092 = vpop.f32.mrf.mxu0
      %v2093 = vadd.f32 %v2004, %v2092
      %v2094 = vpop.f32.mrf.mxu0
      %v2095 = vadd.f32 %v2006, %v2094
      %2096 = vmatmul.bf16.gmra.mxu0 %v428
      %v2097 = vpop.f32.mrf.mxu0
      %v2098 = vadd.f32 %v2009, %v2097
      %v2099 = vpop.f32.mrf.mxu0
      %v2100 = vadd.f32 %v2011, %v2099
      %2101 = vmatmul.bf16.gmra.mxu0 %v432
      %v2102 = vpop.f32.mrf.mxu0
      %v2103 = vadd.f32 %v2014, %v2102
      %v2104 = vpop.f32.mrf.mxu0
      %v2105 = vadd.f32 %v2016, %v2104
      %2106 = vmatmul.bf16.gmra.mxu0 %v436
      %v2107 = vpop.f32.mrf.mxu0
      %v2108 = vadd.f32 %v2019, %v2107
      %v2109 = vpop.f32.mrf.mxu0
      %v2110 = vadd.f32 %v2021, %v2109
      %2111 = vmatmul.bf16.gmra.mxu0 %v440
      %v2112 = vpop.f32.mrf.mxu0
      %v2113 = vadd.f32 %v2024, %v2112
      %v2114 = vpop.f32.mrf.mxu0
      %v2115 = vadd.f32 %v2026, %v2114
      %2116 = vmatmul.bf16.gmra.mxu0 %v444
      %v2117 = vpop.f32.mrf.mxu0
      %v2118 = vadd.f32 %v2029, %v2117
      %v2119 = vpop.f32.mrf.mxu0
      %v2120 = vadd.f32 %v2031, %v2119
      %2121 = vmatmul.bf16.gmra.mxu0 %v568
      %v2122 = vpop.f32.mrf.mxu0
      %v2123 = vadd.f32 %v2034, %v2122
      %v2124 = vpop.f32.mrf.mxu0
      %v2125 = vadd.f32 %v2036, %v2124
      %2126 = vmatmul.bf16.gmra.mxu0 %v572
      %v2127 = vpop.f32.mrf.mxu0
      %v2128 = vadd.f32 %v2039, %v2127
      %v2129 = vpop.f32.mrf.mxu0
      %v2130 = vadd.f32 %v2041, %v2129
      %2131 = vmatmul.bf16.gmra.mxu0 %v576
      %v2132 = vpop.f32.mrf.mxu0
      %v2133 = vadd.f32 %v2044, %v2132
      %v2134 = vpop.f32.mrf.mxu0
      %v2135 = vadd.f32 %v2046, %v2134
      %2136 = vmatmul.bf16.gmra.mxu0 %v580
      %v2137 = vpop.f32.mrf.mxu0
      %v2138 = vadd.f32 %v2049, %v2137
      %v2139 = vpop.f32.mrf.mxu0
      %v2140 = vadd.f32 %v2051, %v2139
      %2141 = vmatmul.bf16.gmra.mxu0 %v584
      %v2142 = vpop.f32.mrf.mxu0
      %v2143 = vadd.f32 %v2054, %v2142
      %v2144 = vpop.f32.mrf.mxu0
      %v2145 = vadd.f32 %v2056, %v2144
      %2146 = vmatmul.bf16.gmra.mxu0 %v588
      %v2147 = vpop.f32.mrf.mxu0
      %v2148 = vadd.f32 %v2059, %v2147
      %v2149 = vpop.f32.mrf.mxu0
      %v2150 = vadd.f32 %v2061, %v2149
      %2151 = vmatmul.bf16.gmra.mxu0 %v592
      %v2152 = vpop.f32.mrf.mxu0
      %v2153 = vadd.f32 %v2064, %v2152
      %v2154 = vpop.f32.mrf.mxu0
      %v2155 = vadd.f32 %v2066, %v2154
      %2156 = vmatmul.bf16.gmra.mxu0 %v596
      %v2157 = vpop.f32.mrf.mxu0
      %v2158 = vadd.f32 %v2069, %v2157
      %v2159 = vpop.f32.mrf.mxu0
      %v2160 = vadd.f32 %v2071, %v2159
      %2161 = vdwg.mxu0
      %2162 = vmatpush.bf16.msra.mxu0 %v1117
      %2163 = vmatpush.bf16.msra.mxu0 %v1113
      %2164 = vmatpush.bf16.msra.mxu0 %v1109
      %2165 = vmatpush.bf16.msra.mxu0 %v1105
      %2166 = vmatpush.bf16.msra.mxu0 %v1101
      %2167 = vmatpush.bf16.msra.mxu0 %v1097
      %2168 = vmatpush.bf16.msra.mxu0 %v1093
      %2169 = vmatpush.bf16.msra.mxu0 %v1089
      %2170 = vmatmul.bf16.gmra.mxu0 %v417
      %v2171 = vpop.f32.mrf.mxu0
      %v2172 = vadd.f32 %v2083, %v2171
      %v2173 = vpop.f32.mrf.mxu0
      %v2174 = vadd.f32 %v2085, %v2173
      %2175 = vmatmul.bf16.gmra.mxu0 %v421
      %v2176 = vpop.f32.mrf.mxu0
      %v2177 = vadd.f32 %v2088, %v2176
      %v2178 = vpop.f32.mrf.mxu0
      %v2179 = vadd.f32 %v2090, %v2178
      %2180 = vmatmul.bf16.gmra.mxu0 %v425
      %v2181 = vpop.f32.mrf.mxu0
      %v2182 = vadd.f32 %v2093, %v2181
      %v2183 = vpop.f32.mrf.mxu0
      %v2184 = vadd.f32 %v2095, %v2183
      %2185 = vmatmul.bf16.gmra.mxu0 %v429
      %v2186 = vpop.f32.mrf.mxu0
      %v2187 = vadd.f32 %v2098, %v2186
      %v2188 = vpop.f32.mrf.mxu0
      %v2189 = vadd.f32 %v2100, %v2188
      %2190 = vmatmul.bf16.gmra.mxu0 %v433
      %v2191 = vpop.f32.mrf.mxu0
      %v2192 = vadd.f32 %v2103, %v2191
      %v2193 = vpop.f32.mrf.mxu0
      %v2194 = vadd.f32 %v2105, %v2193
      %2195 = vmatmul.bf16.gmra.mxu0 %v437
      %v2196 = vpop.f32.mrf.mxu0
      %v2197 = vadd.f32 %v2108, %v2196
      %v2198 = vpop.f32.mrf.mxu0
      %v2199 = vadd.f32 %v2110, %v2198
      %2200 = vmatmul.bf16.gmra.mxu0 %v441
      %v2201 = vpop.f32.mrf.mxu0
      %v2202 = vadd.f32 %v2113, %v2201
      %v2203 = vpop.f32.mrf.mxu0
      %v2204 = vadd.f32 %v2115, %v2203
      %2205 = vmatmul.bf16.gmra.mxu0 %v445
      %v2206 = vpop.f32.mrf.mxu0
      %v2207 = vadd.f32 %v2118, %v2206
      %v2208 = vpop.f32.mrf.mxu0
      %v2209 = vadd.f32 %v2120, %v2208
      %2210 = vmatmul.bf16.gmra.mxu0 %v569
      %v2211 = vpop.f32.mrf.mxu0
      %v2212 = vadd.f32 %v2123, %v2211
      %v2213 = vpop.f32.mrf.mxu0
      %v2214 = vadd.f32 %v2125, %v2213
      %2215 = vmatmul.bf16.gmra.mxu0 %v573
      %v2216 = vpop.f32.mrf.mxu0
      %v2217 = vadd.f32 %v2128, %v2216
      %v2218 = vpop.f32.mrf.mxu0
      %v2219 = vadd.f32 %v2130, %v2218
      %2220 = vmatmul.bf16.gmra.mxu0 %v577
      %v2221 = vpop.f32.mrf.mxu0
      %v2222 = vadd.f32 %v2133, %v2221
      %v2223 = vpop.f32.mrf.mxu0
      %v2224 = vadd.f32 %v2135, %v2223
      %2225 = vmatmul.bf16.gmra.mxu0 %v581
      %v2226 = vpop.f32.mrf.mxu0
      %v2227 = vadd.f32 %v2138, %v2226
      %v2228 = vpop.f32.mrf.mxu0
      %v2229 = vadd.f32 %v2140, %v2228
      %2230 = vmatmul.bf16.gmra.mxu0 %v585
      %v2231 = vpop.f32.mrf.mxu0
      %v2232 = vadd.f32 %v2143, %v2231
      %v2233 = vpop.f32.mrf.mxu0
      %v2234 = vadd.f32 %v2145, %v2233
      %2235 = vmatmul.bf16.gmra.mxu0 %v589
      %v2236 = vpop.f32.mrf.mxu0
      %v2237 = vadd.f32 %v2148, %v2236
      %v2238 = vpop.f32.mrf.mxu0
      %v2239 = vadd.f32 %v2150, %v2238
      %2240 = vmatmul.bf16.gmra.mxu0 %v593
      %v2241 = vpop.f32.mrf.mxu0
      %v2242 = vadd.f32 %v2153, %v2241
      %v2243 = vpop.f32.mrf.mxu0
      %v2244 = vadd.f32 %v2155, %v2243
      %2245 = vmatmul.bf16.gmra.mxu0 %v597
      %v2246 = vpop.f32.mrf.mxu0
      %v2247 = vadd.f32 %v2158, %v2246
      %v2248 = vpop.f32.mrf.mxu0
      %v2249 = vadd.f32 %v2160, %v2248
      %2250 = vdwg.mxu0
      %2251 = vmatpush.bf16.msra.mxu0 0
      %2252 = vmatpush.bf16.msra.mxu0 0
      %2253 = vmatpush.bf16.msra.mxu0 0
      %2254 = vmatpush.bf16.msra.mxu0 0
      %2255 = vmatpush.bf16.msra.mxu0 0
      %2256 = vmatpush.bf16.msra.mxu0 0
      %2257 = vmatpush.bf16.msra.mxu0 0
      %2258 = vmatpush.bf16.msra.mxu0 %v1121
      %2259 = vmatmul.bf16.gmra.mxu0 %v1225
      %v2260 = vpop.f32.mrf.mxu0
      %v2261 = vadd.f32 %v2172, %v2260
      %v2262 = vpop.f32.mrf.mxu0
      %v2263 = vadd.f32 %v2174, %v2262
      %2264 = vmatmul.bf16.gmra.mxu0 %v1228
      %v2265 = vpop.f32.mrf.mxu0
      %v2266 = vadd.f32 %v2177, %v2265
      %v2267 = vpop.f32.mrf.mxu0
      %v2268 = vadd.f32 %v2179, %v2267
      %2269 = vmatmul.bf16.gmra.mxu0 %v1231
      %v2270 = vpop.f32.mrf.mxu0
      %v2271 = vadd.f32 %v2182, %v2270
      %v2272 = vpop.f32.mrf.mxu0
      %v2273 = vadd.f32 %v2184, %v2272
      %2274 = vmatmul.bf16.gmra.mxu0 %v1234
      %v2275 = vpop.f32.mrf.mxu0
      %v2276 = vadd.f32 %v2187, %v2275
      %v2277 = vpop.f32.mrf.mxu0
      %v2278 = vadd.f32 %v2189, %v2277
      %2279 = vmatmul.bf16.gmra.mxu0 %v1237
      %v2280 = vpop.f32.mrf.mxu0
      %v2281 = vadd.f32 %v2192, %v2280
      %v2282 = vpop.f32.mrf.mxu0
      %v2283 = vadd.f32 %v2194, %v2282
      %2284 = vmatmul.bf16.gmra.mxu0 %v1240
      %v2285 = vpop.f32.mrf.mxu0
      %v2286 = vadd.f32 %v2197, %v2285
      %v2287 = vpop.f32.mrf.mxu0
      %v2288 = vadd.f32 %v2199, %v2287
      %2289 = vmatmul.bf16.gmra.mxu0 %v1243
      %v2290 = vpop.f32.mrf.mxu0
      %v2291 = vadd.f32 %v2202, %v2290
      %v2292 = vpop.f32.mrf.mxu0
      %v2293 = vadd.f32 %v2204, %v2292
      %2294 = vmatmul.bf16.gmra.mxu0 %v1246
      %v2295 = vpop.f32.mrf.mxu0
      %v2296 = vadd.f32 %v2207, %v2295
      %v2297 = vpop.f32.mrf.mxu0
      %v2298 = vadd.f32 %v2209, %v2297
      %2299 = vmatmul.bf16.gmra.mxu0 %v1249
      %v2300 = vpop.f32.mrf.mxu0
      %v2301 = vadd.f32 %v2212, %v2300
      %v2302 = vpop.f32.mrf.mxu0
      %v2303 = vadd.f32 %v2214, %v2302
      %2304 = vmatmul.bf16.gmra.mxu0 %v1252
      %v2305 = vpop.f32.mrf.mxu0
      %v2306 = vadd.f32 %v2217, %v2305
      %v2307 = vpop.f32.mrf.mxu0
      %v2308 = vadd.f32 %v2219, %v2307
      %2309 = vmatmul.bf16.gmra.mxu0 %v1255
      %v2310 = vpop.f32.mrf.mxu0
      %v2311 = vadd.f32 %v2222, %v2310
      %v2312 = vpop.f32.mrf.mxu0
      %v2313 = vadd.f32 %v2224, %v2312
      %2314 = vmatmul.bf16.gmra.mxu0 %v1258
      %v2315 = vpop.f32.mrf.mxu0
      %v2316 = vadd.f32 %v2227, %v2315
      %v2317 = vpop.f32.mrf.mxu0
      %v2318 = vadd.f32 %v2229, %v2317
      %2319 = vmatmul.bf16.gmra.mxu0 %v1261
      %v2320 = vpop.f32.mrf.mxu0
      %v2321 = vadd.f32 %v2232, %v2320
      %v2322 = vpop.f32.mrf.mxu0
      %v2323 = vadd.f32 %v2234, %v2322
      %2324 = vmatmul.bf16.gmra.mxu0 %v1264
      %v2325 = vpop.f32.mrf.mxu0
      %v2326 = vadd.f32 %v2237, %v2325
      %v2327 = vpop.f32.mrf.mxu0
      %v2328 = vadd.f32 %v2239, %v2327
      %2329 = vmatmul.bf16.gmra.mxu0 %v1267
      %v2330 = vpop.f32.mrf.mxu0
      %v2331 = vadd.f32 %v2242, %v2330
      %v2332 = vpop.f32.mrf.mxu0
      %v2333 = vadd.f32 %v2244, %v2332
      %2334 = vmatmul.bf16.gmra.mxu0 %v1270
      %v2335 = vpop.f32.mrf.mxu0
      %v2336 = vadd.f32 %v2247, %v2335
      %v2337 = vpop.f32.mrf.mxu0
      %v2338 = vadd.f32 %v2249, %v2337
      %2339 = vdwg.mxu0
      %2340 = vmatpush.bf16.msra.mxu0 %v1054
      %2341 = vmatpush.bf16.msra.mxu0 %v1050
      %2342 = vmatpush.bf16.msra.mxu0 %v1046
      %2343 = vmatpush.bf16.msra.mxu0 %v1042
      %2344 = vmatpush.bf16.msra.mxu0 %v1038
      %2345 = vmatpush.bf16.msra.mxu0 %v1034
      %2346 = vmatpush.bf16.msra.mxu0 %v1030
      %2347 = vmatpush.bf16.msra.mxu0 %v1026
      %2348 = vmatmul.bf16.gmra.mxu0 %v415
      %v2349 = vpop.f32.mrf.mxu0
      %v2350 = vadd.f32 0.0, %v2349
      %v2351 = vpop.f32.mrf.mxu0
      %v2352 = vadd.f32 0.0, %v2351
      %2353 = vmatmul.bf16.gmra.mxu0 %v419
      %v2354 = vpop.f32.mrf.mxu0
      %v2355 = vadd.f32 0.0, %v2354
      %v2356 = vpop.f32.mrf.mxu0
      %v2357 = vadd.f32 0.0, %v2356
      %2358 = vmatmul.bf16.gmra.mxu0 %v423
      %v2359 = vpop.f32.mrf.mxu0
      %v2360 = vadd.f32 0.0, %v2359
      %v2361 = vpop.f32.mrf.mxu0
      %v2362 = vadd.f32 0.0, %v2361
      %2363 = vmatmul.bf16.gmra.mxu0 %v427
      %v2364 = vpop.f32.mrf.mxu0
      %v2365 = vadd.f32 0.0, %v2364
      %v2366 = vpop.f32.mrf.mxu0
      %v2367 = vadd.f32 0.0, %v2366
      %2368 = vmatmul.bf16.gmra.mxu0 %v431
      %v2369 = vpop.f32.mrf.mxu0
      %v2370 = vadd.f32 0.0, %v2369
      %v2371 = vpop.f32.mrf.mxu0
      %v2372 = vadd.f32 0.0, %v2371
      %2373 = vmatmul.bf16.gmra.mxu0 %v435
      %v2374 = vpop.f32.mrf.mxu0
      %v2375 = vadd.f32 0.0, %v2374
      %v2376 = vpop.f32.mrf.mxu0
      %v2377 = vadd.f32 0.0, %v2376
      %2378 = vmatmul.bf16.gmra.mxu0 %v439
      %v2379 = vpop.f32.mrf.mxu0
      %v2380 = vadd.f32 0.0, %v2379
      %v2381 = vpop.f32.mrf.mxu0
      %v2382 = vadd.f32 0.0, %v2381
      %2383 = vmatmul.bf16.gmra.mxu0 %v443
      %v2384 = vpop.f32.mrf.mxu0
      %v2385 = vadd.f32 0.0, %v2384
      %v2386 = vpop.f32.mrf.mxu0
      %v2387 = vadd.f32 0.0, %v2386
      %2388 = vmatmul.bf16.gmra.mxu0 %v567
      %v2389 = vpop.f32.mrf.mxu0
      %v2390 = vadd.f32 0.0, %v2389
      %v2391 = vpop.f32.mrf.mxu0
      %v2392 = vadd.f32 0.0, %v2391
      %2393 = vmatmul.bf16.gmra.mxu0 %v571
      %v2394 = vpop.f32.mrf.mxu0
      %v2395 = vadd.f32 0.0, %v2394
      %v2396 = vpop.f32.mrf.mxu0
      %v2397 = vadd.f32 0.0, %v2396
      %2398 = vmatmul.bf16.gmra.mxu0 %v575
      %v2399 = vpop.f32.mrf.mxu0
      %v2400 = vadd.f32 0.0, %v2399
      %v2401 = vpop.f32.mrf.mxu0
      %v2402 = vadd.f32 0.0, %v2401
      %2403 = vmatmul.bf16.gmra.mxu0 %v579
      %v2404 = vpop.f32.mrf.mxu0
      %v2405 = vadd.f32 0.0, %v2404
      %v2406 = vpop.f32.mrf.mxu0
      %v2407 = vadd.f32 0.0, %v2406
      %2408 = vmatmul.bf16.gmra.mxu0 %v583
      %v2409 = vpop.f32.mrf.mxu0
      %v2410 = vadd.f32 0.0, %v2409
      %v2411 = vpop.f32.mrf.mxu0
      %v2412 = vadd.f32 0.0, %v2411
      %2413 = vmatmul.bf16.gmra.mxu0 %v587
      %v2414 = vpop.f32.mrf.mxu0
      %v2415 = vadd.f32 0.0, %v2414
      %v2416 = vpop.f32.mrf.mxu0
      %v2417 = vadd.f32 0.0, %v2416
      %2418 = vmatmul.bf16.gmra.mxu0 %v591
      %v2419 = vpop.f32.mrf.mxu0
      %v2420 = vadd.f32 0.0, %v2419
      %v2421 = vpop.f32.mrf.mxu0
      %v2422 = vadd.f32 0.0, %v2421
      %2423 = vmatmul.bf16.gmra.mxu0 %v595
      %v2424 = vpop.f32.mrf.mxu0
      %v2425 = vadd.f32 0.0, %v2424
      %v2426 = vpop.f32.mrf.mxu0
      %v2427 = vadd.f32 0.0, %v2426
      %2428 = vdwg.mxu0
      %2429 = vmatpush.bf16.msra.mxu0 %v1086
      %2430 = vmatpush.bf16.msra.mxu0 %v1082
      %2431 = vmatpush.bf16.msra.mxu0 %v1078
      %2432 = vmatpush.bf16.msra.mxu0 %v1074
      %2433 = vmatpush.bf16.msra.mxu0 %v1070
      %2434 = vmatpush.bf16.msra.mxu0 %v1066
      %2435 = vmatpush.bf16.msra.mxu0 %v1062
      %2436 = vmatpush.bf16.msra.mxu0 %v1058
      %2437 = vmatmul.bf16.gmra.mxu0 %v416
      %v2438 = vpop.f32.mrf.mxu0
      %v2439 = vadd.f32 %v2350, %v2438
      %v2440 = vpop.f32.mrf.mxu0
      %v2441 = vadd.f32 %v2352, %v2440
      %2442 = vmatmul.bf16.gmra.mxu0 %v420
      %v2443 = vpop.f32.mrf.mxu0
      %v2444 = vadd.f32 %v2355, %v2443
      %v2445 = vpop.f32.mrf.mxu0
      %v2446 = vadd.f32 %v2357, %v2445
      %2447 = vmatmul.bf16.gmra.mxu0 %v424
      %v2448 = vpop.f32.mrf.mxu0
      %v2449 = vadd.f32 %v2360, %v2448
      %v2450 = vpop.f32.mrf.mxu0
      %v2451 = vadd.f32 %v2362, %v2450
      %2452 = vmatmul.bf16.gmra.mxu0 %v428
      %v2453 = vpop.f32.mrf.mxu0
      %v2454 = vadd.f32 %v2365, %v2453
      %v2455 = vpop.f32.mrf.mxu0
      %v2456 = vadd.f32 %v2367, %v2455
      %2457 = vmatmul.bf16.gmra.mxu0 %v432
      %v2458 = vpop.f32.mrf.mxu0
      %v2459 = vadd.f32 %v2370, %v2458
      %v2460 = vpop.f32.mrf.mxu0
      %v2461 = vadd.f32 %v2372, %v2460
      %2462 = vmatmul.bf16.gmra.mxu0 %v436
      %v2463 = vpop.f32.mrf.mxu0
      %v2464 = vadd.f32 %v2375, %v2463
      %v2465 = vpop.f32.mrf.mxu0
      %v2466 = vadd.f32 %v2377, %v2465
      %2467 = vmatmul.bf16.gmra.mxu0 %v440
      %v2468 = vpop.f32.mrf.mxu0
      %v2469 = vadd.f32 %v2380, %v2468
      %v2470 = vpop.f32.mrf.mxu0
      %v2471 = vadd.f32 %v2382, %v2470
      %2472 = vmatmul.bf16.gmra.mxu0 %v444
      %v2473 = vpop.f32.mrf.mxu0
      %v2474 = vadd.f32 %v2385, %v2473
      %v2475 = vpop.f32.mrf.mxu0
      %v2476 = vadd.f32 %v2387, %v2475
      %2477 = vmatmul.bf16.gmra.mxu0 %v568
      %v2478 = vpop.f32.mrf.mxu0
      %v2479 = vadd.f32 %v2390, %v2478
      %v2480 = vpop.f32.mrf.mxu0
      %v2481 = vadd.f32 %v2392, %v2480
      %2482 = vmatmul.bf16.gmra.mxu0 %v572
      %v2483 = vpop.f32.mrf.mxu0
      %v2484 = vadd.f32 %v2395, %v2483
      %v2485 = vpop.f32.mrf.mxu0
      %v2486 = vadd.f32 %v2397, %v2485
      %2487 = vmatmul.bf16.gmra.mxu0 %v576
      %v2488 = vpop.f32.mrf.mxu0
      %v2489 = vadd.f32 %v2400, %v2488
      %v2490 = vpop.f32.mrf.mxu0
      %v2491 = vadd.f32 %v2402, %v2490
      %2492 = vmatmul.bf16.gmra.mxu0 %v580
      %v2493 = vpop.f32.mrf.mxu0
      %v2494 = vadd.f32 %v2405, %v2493
      %v2495 = vpop.f32.mrf.mxu0
      %v2496 = vadd.f32 %v2407, %v2495
      %2497 = vmatmul.bf16.gmra.mxu0 %v584
      %v2498 = vpop.f32.mrf.mxu0
      %v2499 = vadd.f32 %v2410, %v2498
      %v2500 = vpop.f32.mrf.mxu0
      %v2501 = vadd.f32 %v2412, %v2500
      %2502 = vmatmul.bf16.gmra.mxu0 %v588
      %v2503 = vpop.f32.mrf.mxu0
      %v2504 = vadd.f32 %v2415, %v2503
      %v2505 = vpop.f32.mrf.mxu0
      %v2506 = vadd.f32 %v2417, %v2505
      %2507 = vmatmul.bf16.gmra.mxu0 %v592
      %v2508 = vpop.f32.mrf.mxu0
      %v2509 = vadd.f32 %v2420, %v2508
      %v2510 = vpop.f32.mrf.mxu0
      %v2511 = vadd.f32 %v2422, %v2510
      %2512 = vmatmul.bf16.gmra.mxu0 %v596
      %v2513 = vpop.f32.mrf.mxu0
      %v2514 = vadd.f32 %v2425, %v2513
      %v2515 = vpop.f32.mrf.mxu0
      %v2516 = vadd.f32 %v2427, %v2515
      %2517 = vdwg.mxu0
      %2518 = vmatpush.bf16.msra.mxu0 %v1118
      %2519 = vmatpush.bf16.msra.mxu0 %v1114
      %2520 = vmatpush.bf16.msra.mxu0 %v1110
      %2521 = vmatpush.bf16.msra.mxu0 %v1106
      %2522 = vmatpush.bf16.msra.mxu0 %v1102
      %2523 = vmatpush.bf16.msra.mxu0 %v1098
      %2524 = vmatpush.bf16.msra.mxu0 %v1094
      %2525 = vmatpush.bf16.msra.mxu0 %v1090
      %2526 = vmatmul.bf16.gmra.mxu0 %v417
      %v2527 = vpop.f32.mrf.mxu0
      %v2528 = vadd.f32 %v2439, %v2527
      %v2529 = vpop.f32.mrf.mxu0
      %v2530 = vadd.f32 %v2441, %v2529
      %2531 = vmatmul.bf16.gmra.mxu0 %v421
      %v2532 = vpop.f32.mrf.mxu0
      %v2533 = vadd.f32 %v2444, %v2532
      %v2534 = vpop.f32.mrf.mxu0
      %v2535 = vadd.f32 %v2446, %v2534
      %2536 = vmatmul.bf16.gmra.mxu0 %v425
      %v2537 = vpop.f32.mrf.mxu0
      %v2538 = vadd.f32 %v2449, %v2537
      %v2539 = vpop.f32.mrf.mxu0
      %v2540 = vadd.f32 %v2451, %v2539
      %2541 = vmatmul.bf16.gmra.mxu0 %v429
      %v2542 = vpop.f32.mrf.mxu0
      %v2543 = vadd.f32 %v2454, %v2542
      %v2544 = vpop.f32.mrf.mxu0
      %v2545 = vadd.f32 %v2456, %v2544
      %2546 = vmatmul.bf16.gmra.mxu0 %v433
      %v2547 = vpop.f32.mrf.mxu0
      %v2548 = vadd.f32 %v2459, %v2547
      %v2549 = vpop.f32.mrf.mxu0
      %v2550 = vadd.f32 %v2461, %v2549
      %2551 = vmatmul.bf16.gmra.mxu0 %v437
      %v2552 = vpop.f32.mrf.mxu0
      %v2553 = vadd.f32 %v2464, %v2552
      %v2554 = vpop.f32.mrf.mxu0
      %v2555 = vadd.f32 %v2466, %v2554
      %2556 = vmatmul.bf16.gmra.mxu0 %v441
      %v2557 = vpop.f32.mrf.mxu0
      %v2558 = vadd.f32 %v2469, %v2557
      %v2559 = vpop.f32.mrf.mxu0
      %v2560 = vadd.f32 %v2471, %v2559
      %2561 = vmatmul.bf16.gmra.mxu0 %v445
      %v2562 = vpop.f32.mrf.mxu0
      %v2563 = vadd.f32 %v2474, %v2562
      %v2564 = vpop.f32.mrf.mxu0
      %v2565 = vadd.f32 %v2476, %v2564
      %2566 = vmatmul.bf16.gmra.mxu0 %v569
      %v2567 = vpop.f32.mrf.mxu0
      %v2568 = vadd.f32 %v2479, %v2567
      %v2569 = vpop.f32.mrf.mxu0
      %v2570 = vadd.f32 %v2481, %v2569
      %2571 = vmatmul.bf16.gmra.mxu0 %v573
      %v2572 = vpop.f32.mrf.mxu0
      %v2573 = vadd.f32 %v2484, %v2572
      %v2574 = vpop.f32.mrf.mxu0
      %v2575 = vadd.f32 %v2486, %v2574
      %2576 = vmatmul.bf16.gmra.mxu0 %v577
      %v2577 = vpop.f32.mrf.mxu0
      %v2578 = vadd.f32 %v2489, %v2577
      %v2579 = vpop.f32.mrf.mxu0
      %v2580 = vadd.f32 %v2491, %v2579
      %2581 = vmatmul.bf16.gmra.mxu0 %v581
      %v2582 = vpop.f32.mrf.mxu0
      %v2583 = vadd.f32 %v2494, %v2582
      %v2584 = vpop.f32.mrf.mxu0
      %v2585 = vadd.f32 %v2496, %v2584
      %2586 = vmatmul.bf16.gmra.mxu0 %v585
      %v2587 = vpop.f32.mrf.mxu0
      %v2588 = vadd.f32 %v2499, %v2587
      %v2589 = vpop.f32.mrf.mxu0
      %v2590 = vadd.f32 %v2501, %v2589
      %2591 = vmatmul.bf16.gmra.mxu0 %v589
      %v2592 = vpop.f32.mrf.mxu0
      %v2593 = vadd.f32 %v2504, %v2592
      %v2594 = vpop.f32.mrf.mxu0
      %v2595 = vadd.f32 %v2506, %v2594
      %2596 = vmatmul.bf16.gmra.mxu0 %v593
      %v2597 = vpop.f32.mrf.mxu0
      %v2598 = vadd.f32 %v2509, %v2597
      %v2599 = vpop.f32.mrf.mxu0
      %v2600 = vadd.f32 %v2511, %v2599
      %2601 = vmatmul.bf16.gmra.mxu0 %v597
      %v2602 = vpop.f32.mrf.mxu0
      %v2603 = vadd.f32 %v2514, %v2602
      %v2604 = vpop.f32.mrf.mxu0
      %v2605 = vadd.f32 %v2516, %v2604
      %2606 = vdwg.mxu0
      %2607 = vmatpush.bf16.msra.mxu0 0
      %2608 = vmatpush.bf16.msra.mxu0 0
      %2609 = vmatpush.bf16.msra.mxu0 0
      %2610 = vmatpush.bf16.msra.mxu0 0
      %2611 = vmatpush.bf16.msra.mxu0 0
      %2612 = vmatpush.bf16.msra.mxu0 0
      %2613 = vmatpush.bf16.msra.mxu0 0
      %2614 = vmatpush.bf16.msra.mxu0 %v1122
      %2615 = vmatmul.bf16.gmra.mxu0 %v1225
      %v2616 = vpop.f32.mrf.mxu0
      %v2617 = vadd.f32 %v2528, %v2616
      %v2618 = vpop.f32.mrf.mxu0
      %v2619 = vadd.f32 %v2530, %v2618
      %2620 = vmatmul.bf16.gmra.mxu0 %v1228
      %v2621 = vpop.f32.mrf.mxu0
      %v2622 = vadd.f32 %v2533, %v2621
      %v2623 = vpop.f32.mrf.mxu0
      %v2624 = vadd.f32 %v2535, %v2623
      %2625 = vmatmul.bf16.gmra.mxu0 %v1231
      %v2626 = vpop.f32.mrf.mxu0
      %v2627 = vadd.f32 %v2538, %v2626
      %v2628 = vpop.f32.mrf.mxu0
      %v2629 = vadd.f32 %v2540, %v2628
      %2630 = vmatmul.bf16.gmra.mxu0 %v1234
      %v2631 = vpop.f32.mrf.mxu0
      %v2632 = vadd.f32 %v2543, %v2631
      %v2633 = vpop.f32.mrf.mxu0
      %v2634 = vadd.f32 %v2545, %v2633
      %2635 = vmatmul.bf16.gmra.mxu0 %v1237
      %v2636 = vpop.f32.mrf.mxu0
      %v2637 = vadd.f32 %v2548, %v2636
      %v2638 = vpop.f32.mrf.mxu0
      %v2639 = vadd.f32 %v2550, %v2638
      %2640 = vmatmul.bf16.gmra.mxu0 %v1240
      %v2641 = vpop.f32.mrf.mxu0
      %v2642 = vadd.f32 %v2553, %v2641
      %v2643 = vpop.f32.mrf.mxu0
      %v2644 = vadd.f32 %v2555, %v2643
      %2645 = vmatmul.bf16.gmra.mxu0 %v1243
      %v2646 = vpop.f32.mrf.mxu0
      %v2647 = vadd.f32 %v2558, %v2646
      %v2648 = vpop.f32.mrf.mxu0
      %v2649 = vadd.f32 %v2560, %v2648
      %2650 = vmatmul.bf16.gmra.mxu0 %v1246
      %v2651 = vpop.f32.mrf.mxu0
      %v2652 = vadd.f32 %v2563, %v2651
      %v2653 = vpop.f32.mrf.mxu0
      %v2654 = vadd.f32 %v2565, %v2653
      %2655 = vmatmul.bf16.gmra.mxu0 %v1249
      %v2656 = vpop.f32.mrf.mxu0
      %v2657 = vadd.f32 %v2568, %v2656
      %v2658 = vpop.f32.mrf.mxu0
      %v2659 = vadd.f32 %v2570, %v2658
      %2660 = vmatmul.bf16.gmra.mxu0 %v1252
      %v2661 = vpop.f32.mrf.mxu0
      %v2662 = vadd.f32 %v2573, %v2661
      %v2663 = vpop.f32.mrf.mxu0
      %v2664 = vadd.f32 %v2575, %v2663
      %2665 = vmatmul.bf16.gmra.mxu0 %v1255
      %v2666 = vpop.f32.mrf.mxu0
      %v2667 = vadd.f32 %v2578, %v2666
      %v2668 = vpop.f32.mrf.mxu0
      %v2669 = vadd.f32 %v2580, %v2668
      %2670 = vmatmul.bf16.gmra.mxu0 %v1258
      %v2671 = vpop.f32.mrf.mxu0
      %v2672 = vadd.f32 %v2583, %v2671
      %v2673 = vpop.f32.mrf.mxu0
      %v2674 = vadd.f32 %v2585, %v2673
      %2675 = vmatmul.bf16.gmra.mxu0 %v1261
      %v2676 = vpop.f32.mrf.mxu0
      %v2677 = vadd.f32 %v2588, %v2676
      %v2678 = vpop.f32.mrf.mxu0
      %v2679 = vadd.f32 %v2590, %v2678
      %2680 = vmatmul.bf16.gmra.mxu0 %v1264
      %v2681 = vpop.f32.mrf.mxu0
      %v2682 = vadd.f32 %v2593, %v2681
      %v2683 = vpop.f32.mrf.mxu0
      %v2684 = vadd.f32 %v2595, %v2683
      %2685 = vmatmul.bf16.gmra.mxu0 %v1267
      %v2686 = vpop.f32.mrf.mxu0
      %v2687 = vadd.f32 %v2598, %v2686
      %v2688 = vpop.f32.mrf.mxu0
      %v2689 = vadd.f32 %v2600, %v2688
      %2690 = vmatmul.bf16.gmra.mxu0 %v1270
      %v2691 = vpop.f32.mrf.mxu0
      %v2692 = vadd.f32 %v2603, %v2691
      %v2693 = vpop.f32.mrf.mxu0
      %v2694 = vadd.f32 %v2605, %v2693
      %2695 = vdwg.mxu0
      %2696 = vst [vmem:[%s252] sm:$0xff] %v1549
      %2697 = vst [vmem:[%s252 + $0x8] sm:$0xff] %v1905
      %2698 = vst [vmem:[%s252 + $0x10] sm:$0xff] %v2261
      %2699 = vst [vmem:[%s252 + $0x18] sm:$0xff] %v2617
      %2700 = vst [vmem:[%s252 + $0x40] sm:$0xff] %v1551
      %2701 = vst [vmem:[%s252 + $0x48] sm:$0xff] %v1907
      %2702 = vst [vmem:[%s252 + $0x50] sm:$0xff] %v2263
      %2703 = vst [vmem:[%s252 + $0x58] sm:$0xff] %v2619
      %2704 = vst [vmem:[%s252 + $0x80] sm:$0xff] %v1554
      %2705 = vst [vmem:[%s252 + $0x88] sm:$0xff] %v1910
      %2706 = vst [vmem:[%s252 + $0x90] sm:$0xff] %v2266
      %2707 = vst [vmem:[%s252 + $0x98] sm:$0xff] %v2622
      %2708 = vst [vmem:[%s252 + $0xc0] sm:$0xff] %v1556
      %2709 = vst [vmem:[%s252 + $0xc8] sm:$0xff] %v1912
      %2710 = vst [vmem:[%s252 + $0xd0] sm:$0xff] %v2268
      %2711 = vst [vmem:[%s252 + $0xd8] sm:$0xff] %v2624
      %2712 = vst [vmem:[%s252 + $0x100] sm:$0xff] %v1559
      %2713 = vst [vmem:[%s252 + $0x108] sm:$0xff] %v1915
      %2714 = vst [vmem:[%s252 + $0x110] sm:$0xff] %v2271
      %2715 = vst [vmem:[%s252 + $0x118] sm:$0xff] %v2627
      %2716 = vst [vmem:[%s252 + $0x140] sm:$0xff] %v1561
      %2717 = vst [vmem:[%s252 + $0x148] sm:$0xff] %v1917
      %2718 = vst [vmem:[%s252 + $0x150] sm:$0xff] %v2273
      %2719 = vst [vmem:[%s252 + $0x158] sm:$0xff] %v2629
      %2720 = vst [vmem:[%s252 + $0x180] sm:$0xff] %v1564
      %2721 = vst [vmem:[%s252 + $0x188] sm:$0xff] %v1920
      %2722 = vst [vmem:[%s252 + $0x190] sm:$0xff] %v2276
      %2723 = vst [vmem:[%s252 + $0x198] sm:$0xff] %v2632
      %2724 = vst [vmem:[%s252 + $0x1c0] sm:$0xff] %v1566
      %2725 = vst [vmem:[%s252 + $0x1c8] sm:$0xff] %v1922
      %2726 = vst [vmem:[%s252 + $0x1d0] sm:$0xff] %v2278
      %2727 = vst [vmem:[%s252 + $0x1d8] sm:$0xff] %v2634
      %2728 = vst [vmem:[%s252 + $0x200] sm:$0xff] %v1569
      %2729 = vst [vmem:[%s252 + $0x208] sm:$0xff] %v1925
      %2730 = vst [vmem:[%s252 + $0x210] sm:$0xff] %v2281
      %2731 = vst [vmem:[%s252 + $0x218] sm:$0xff] %v2637
      %2732 = vst [vmem:[%s252 + $0x240] sm:$0xff] %v1571
      %2733 = vst [vmem:[%s252 + $0x248] sm:$0xff] %v1927
      %2734 = vst [vmem:[%s252 + $0x250] sm:$0xff] %v2283
      %2735 = vst [vmem:[%s252 + $0x258] sm:$0xff] %v2639
      %2736 = vst [vmem:[%s252 + $0x280] sm:$0xff] %v1574
      %2737 = vst [vmem:[%s252 + $0x288] sm:$0xff] %v1930
      %2738 = vst [vmem:[%s252 + $0x290] sm:$0xff] %v2286
      %2739 = vst [vmem:[%s252 + $0x298] sm:$0xff] %v2642
      %2740 = vst [vmem:[%s252 + $0x2c0] sm:$0xff] %v1576
      %2741 = vst [vmem:[%s252 + $0x2c8] sm:$0xff] %v1932
      %2742 = vst [vmem:[%s252 + $0x2d0] sm:$0xff] %v2288
      %2743 = vst [vmem:[%s252 + $0x2d8] sm:$0xff] %v2644
      %2744 = vst [vmem:[%s252 + $0x300] sm:$0xff] %v1579
      %2745 = vst [vmem:[%s252 + $0x308] sm:$0xff] %v1935
      %2746 = vst [vmem:[%s252 + $0x310] sm:$0xff] %v2291
      %2747 = vst [vmem:[%s252 + $0x318] sm:$0xff] %v2647
      %2748 = vst [vmem:[%s252 + $0x340] sm:$0xff] %v1581
      %2749 = vst [vmem:[%s252 + $0x348] sm:$0xff] %v1937
      %2750 = vst [vmem:[%s252 + $0x350] sm:$0xff] %v2293
      %2751 = vst [vmem:[%s252 + $0x358] sm:$0xff] %v2649
      %2752 = vst [vmem:[%s252 + $0x380] sm:$0xff] %v1584
      %2753 = vst [vmem:[%s252 + $0x388] sm:$0xff] %v1940
      %2754 = vst [vmem:[%s252 + $0x390] sm:$0xff] %v2296
      %2755 = vst [vmem:[%s252 + $0x398] sm:$0xff] %v2652
      %2756 = vst [vmem:[%s252 + $0x3c0] sm:$0xff] %v1586
      %2757 = vst [vmem:[%s252 + $0x3c8] sm:$0xff] %v1942
      %2758 = vst [vmem:[%s252 + $0x3d0] sm:$0xff] %v2298
      %2759 = vst [vmem:[%s252 + $0x3d8] sm:$0xff] %v2654
      %2760 = vst [vmem:[%s252 + $0x20] sm:$0xff] %v1589
      %2761 = vst [vmem:[%s252 + $0x28] sm:$0xff] %v1945
      %2762 = vst [vmem:[%s252 + $0x30] sm:$0xff] %v2301
      %2763 = vst [vmem:[%s252 + $0x38] sm:$0xff] %v2657
      %2764 = vst [vmem:[%s252 + $0x60] sm:$0xff] %v1591
      %2765 = vst [vmem:[%s252 + $0x68] sm:$0xff] %v1947
      %2766 = vst [vmem:[%s252 + $0x70] sm:$0xff] %v2303
      %2767 = vst [vmem:[%s252 + $0x78] sm:$0xff] %v2659
      %2768 = vst [vmem:[%s252 + $0xa0] sm:$0xff] %v1594
      %2769 = vst [vmem:[%s252 + $0xa8] sm:$0xff] %v1950
      %2770 = vst [vmem:[%s252 + $0xb0] sm:$0xff] %v2306
      %2771 = vst [vmem:[%s252 + $0xb8] sm:$0xff] %v2662
      %2772 = vst [vmem:[%s252 + $0xe0] sm:$0xff] %v1596
      %2773 = vst [vmem:[%s252 + $0xe8] sm:$0xff] %v1952
      %2774 = vst [vmem:[%s252 + $0xf0] sm:$0xff] %v2308
      %2775 = vst [vmem:[%s252 + $0xf8] sm:$0xff] %v2664
      %2776 = vst [vmem:[%s252 + $0x120] sm:$0xff] %v1599
      %2777 = vst [vmem:[%s252 + $0x128] sm:$0xff] %v1955
      %2778 = vst [vmem:[%s252 + $0x130] sm:$0xff] %v2311
      %2779 = vst [vmem:[%s252 + $0x138] sm:$0xff] %v2667
      %2780 = vst [vmem:[%s252 + $0x160] sm:$0xff] %v1601
      %2781 = vst [vmem:[%s252 + $0x168] sm:$0xff] %v1957
      %2782 = vst [vmem:[%s252 + $0x170] sm:$0xff] %v2313
      %2783 = vst [vmem:[%s252 + $0x178] sm:$0xff] %v2669
      %2784 = vst [vmem:[%s252 + $0x1a0] sm:$0xff] %v1604
      %2785 = vst [vmem:[%s252 + $0x1a8] sm:$0xff] %v1960
      %2786 = vst [vmem:[%s252 + $0x1b0] sm:$0xff] %v2316
      %2787 = vst [vmem:[%s252 + $0x1b8] sm:$0xff] %v2672
      %2788 = vst [vmem:[%s252 + $0x1e0] sm:$0xff] %v1606
      %2789 = vst [vmem:[%s252 + $0x1e8] sm:$0xff] %v1962
      %2790 = vst [vmem:[%s252 + $0x1f0] sm:$0xff] %v2318
      %2791 = vst [vmem:[%s252 + $0x1f8] sm:$0xff] %v2674
      %2792 = vst [vmem:[%s252 + $0x220] sm:$0xff] %v1609
      %2793 = vst [vmem:[%s252 + $0x228] sm:$0xff] %v1965
      %2794 = vst [vmem:[%s252 + $0x230] sm:$0xff] %v2321
      %2795 = vst [vmem:[%s252 + $0x238] sm:$0xff] %v2677
      %2796 = vst [vmem:[%s252 + $0x260] sm:$0xff] %v1611
      %2797 = vst [vmem:[%s252 + $0x268] sm:$0xff] %v1967
      %2798 = vst [vmem:[%s252 + $0x270] sm:$0xff] %v2323
      %2799 = vst [vmem:[%s252 + $0x278] sm:$0xff] %v2679
      %2800 = vst [vmem:[%s252 + $0x2a0] sm:$0xff] %v1614
      %2801 = vst [vmem:[%s252 + $0x2a8] sm:$0xff] %v1970
      %2802 = vst [vmem:[%s252 + $0x2b0] sm:$0xff] %v2326
      %2803 = vst [vmem:[%s252 + $0x2b8] sm:$0xff] %v2682
      %2804 = vst [vmem:[%s252 + $0x2e0] sm:$0xff] %v1616
      %2805 = vst [vmem:[%s252 + $0x2e8] sm:$0xff] %v1972
      %2806 = vst [vmem:[%s252 + $0x2f0] sm:$0xff] %v2328
      %2807 = vst [vmem:[%s252 + $0x2f8] sm:$0xff] %v2684
      %2808 = vst [vmem:[%s252 + $0x320] sm:$0xff] %v1619
      %2809 = vst [vmem:[%s252 + $0x328] sm:$0xff] %v1975
      %2810 = vst [vmem:[%s252 + $0x330] sm:$0xff] %v2331
      %2811 = vst [vmem:[%s252 + $0x338] sm:$0xff] %v2687
      %2812 = vst [vmem:[%s252 + $0x360] sm:$0xff] %v1621
      %2813 = vst [vmem:[%s252 + $0x368] sm:$0xff] %v1977
      %2814 = vst [vmem:[%s252 + $0x370] sm:$0xff] %v2333
      %2815 = vst [vmem:[%s252 + $0x378] sm:$0xff] %v2689
      %2816 = vst [vmem:[%s252 + $0x3a0] sm:$0xff] %v1624
      %2817 = vst [vmem:[%s252 + $0x3a8] sm:$0xff] %v1980
      %2818 = vst [vmem:[%s252 + $0x3b0] sm:$0xff] %v2336
      %2819 = vst [vmem:[%s252 + $0x3b8] sm:$0xff] %v2692
      %2820 = vst [vmem:[%s252 + $0x3e0] sm:$0xff] %v1626
      %2821 = vst [vmem:[%s252 + $0x3e8] sm:$0xff] %v1982
      %2822 = vst [vmem:[%s252 + $0x3f0] sm:$0xff] %v2338
      %2823 = vst [vmem:[%s252 + $0x3f8] sm:$0xff] %v2694
      %s2824 = smul.u32 16, %s19
      %p2825 = scmp.lt.s32.totalorder %s18, 1
      %s2826 = scalar_select %p2825, %s18, 1
      %p2827 = scmp.lt.s32.totalorder %s2824, 15
      %s2828 = scalar_select %p2827, %s2824, 15
      %s2829 = smul.addr %s2828, 8
      %s2830 = smul.addr %s2826, 128
      %s2831 = sadd.s32 %s2829, %s2830
      %s2832 = smul.addr %s2831, 8
      %s2833 = scalar_lea.vmem %s3, %s2832
      // Predicated region
      $region33: #{_time_stretch.2} parent=31 // pred_check
        %p2834 = pneg %p123
      $region34: #{_time_stretch.2} parent=31 // pred_check_branch
        %2836 = sbr.rel (%p2834) target = $region36
      $region35: #{_time_stretch.2} parent=31 // pred_region
        %s2837 = smul.u32 16, %s19
      $region36: #{_time_stretch.2} parent=31 // pred_fallthru
        _
    $region32: #{_time_stretch.2} parent=5 // pred_fallthru
      _
    %p2838 = scmp.le.s32.totalorder 2, %s9
    // Predicated region
    $region37: #{_time_stretch.2} parent=5 // pred_check
      %p2839 = pneg %p2838
    $region38: #{_time_stretch.2} parent=5 // pred_check_branch
      %2841 = sbr.rel (%p2839) target = $region40
    $region39: #{_time_stretch.2} parent=5 // pred_region
      %s2842 = ssub.s32 %s9, 2
      // Predicated region
      $region41: #{_time_stretch.2} parent=39 // pred_check
        %p2843 = pneg %p129
      $region42: #{_time_stretch.2} parent=39 // pred_check_branch
        %2845 = sbr.rel (%p2843) target = $region44
      $region43: #{_time_stretch.2} parent=39 // pred_region
        %s2846 = smul.u32 16, %s21
        %p2847 = scmp.lt.s32.totalorder %s20, 1
        %s2848 = scalar_select %p2847, %s20, 1
        %p2849 = scmp.lt.s32.totalorder %s2846, 15
        %s2850 = scalar_select %p2849, %s2846, 15
        %s2851 = smul.addr %s2850, 8
        %s2852 = smul.addr %s2848, 128
        %s2853 = sadd.s32 %s2851, %s2852
        %s2854 = smul.addr %s2853, 8
        %s2855 = scalar_lea.vmem %s3, %s2854
      $region44: #{_time_stretch.2} parent=39 // pred_fallthru
        _
    $region40: #{_time_stretch.2} parent=5 // pred_fallthru
      _
  $region6: #{_time_stretch.2} parent=0 // loop_footer
    %s13 = sadd.s32 1, %s9
  $region7: #{_time_stretch.2} parent=0 // loop_footer_branch
    %8 = sbr.rel target = $region3
  $region8: #{_time_stretch.2} parent=0 // loop_exit
    _

// kernel: _time_stretch.3
$region0: #{_time_stretch.3}
  #allocation0 [shape = 'u32[]', space=smem, size = 0x4, offset = 0x4, fixed_abs, tag = 'smem constant byte address 0x4 - core index']
  #allocation1 [shape = 'u32[72,128]{1,0:T(1,128)}', space=vmem, size = 0x9000, scoped, tag = 'internal scratch']
  #allocation2 [shape = 'f32[1,256]{1,0:T(1,128)}', space=vmem, size = 0x400, scoped, tag = 'scratch operand']
  %s0 = inlined_call_operand.vmem [shape: bf16[2,256,512], index: 0, kind: input, shape index: {}]
  %s1 = inlined_call_operand.vmem [shape: bf16[512,512], index: 1, kind: input, shape index: {}]
  %s2 = inlined_call_operand.vmem [shape: f32[1,256], index: 2, kind: input, shape index: {}]
  %s3 = inlined_call_operand.vmem [shape: f32[2,256,256], index: 3, kind: output, shape index: {}]
  %s4 = sld [smem:[#allocation0]]
  $region49: #{_time_stretch.3} parent=0
    _
  %s6 = ssub.s32 1, %s4
  %s7 = scalar_select 0, %s6, %s4
  loop: start=0, step=1, limit=4
  $region2: #{_time_stretch.3} parent=0 // loop_pre_header
    _
  $region3: #{_time_stretch.3} parent=0 // loop_header
    %s9 = sphi 0, %s13
    %p10 = scmp.ge.s32.totalorder %s9, 4
    %s16 = sphi 0, %s28
    %s17 = sphi 0, %s24
    %s18 = sphi 0, %s16
    %s19 = sphi 0, %s17
    %s20 = sphi 0, %s18
    %s21 = sphi 0, %s19
    %s33 = sphi 0, %s35
    %s36 = sphi 0, %s33
    %s37 = sphi 0, %s36
    %s53 = sphi 0, %s37
    %s57 = sphi 0, %s57
    %s59 = sphi 0, %s57
    %s60 = sphi 0, %s59
    %s74 = sphi 0, %s60
    %s78 = sphi 0, %s78
    %s80 = sphi 0, %s78
    %s81 = sphi 0, %s80
    %s95 = sphi 0, %s81
    %s103 = sphi 0, %s105
    %s106 = sphi 0, %s103
    %s107 = sphi 0, %s106
    %s123 = sphi 0, %s107
  $region4: #{_time_stretch.3} parent=0 // loop_header_branch
    %12 = sbr.rel (%p10) target = $region8
  $region5: #{_time_stretch.3} parent=0 // loop_body
    %s14 = ssub.s32 %s9, 1
    %s15 = ssub.s32 %s9, 2
    %s22 = sadd.s32 1, %s17
    %p23 = scmp.ge.s32.totalorder %s22, 1
    %s24 = scalar_select %p23, 0, %s22
    %s25 = sadd.s32 1, %s16
    %s26 = scalar_select %p23, %s25, %s16
    %p27 = scmp.ge.s32.totalorder %s26, 2
    %s28 = scalar_select %p27, 0, %s26
    %s29 = ssub.s32 %s16, %s28
    %s30 = ssub.s32 %s17, %s24
    %s31 = sor.u32 %s29, %s30
    %p32 = scmp.eq.s32.totalorder %s31, 0
    %s34 = sadd.s32 %s33, 1
    %s35 = scalar_select %p32, %s33, %s34
    %p38 = pneg %p32
    %p39 = scmp.eq.s32.totalorder %s9, 1
    %p40 = por %p38, %p39
    %p41 = scmp.ne.s32.totalorder %s33, %s36
    %p42 = scmp.eq.s32.totalorder %s9, 0
    %p43 = por %p41, %p42
    %p44 = scmp.ne.s32.totalorder %s33, %s36
    %p45 = scmp.eq.s32.totalorder %s14, 1
    %p46 = por %p44, %p45
    %p47 = scmp.ne.s32.totalorder %s36, %s37
    %p48 = scmp.eq.s32.totalorder %s14, 0
    %p49 = por %p47, %p48
    %p50 = scmp.ne.s32.totalorder %s36, %s37
    %p51 = scmp.eq.s32.totalorder %s15, 1
    %p52 = por %p50, %p51
    %p54 = scmp.ne.s32.totalorder %s37, %s53
    %p55 = scmp.eq.s32.totalorder %s15, 0
    %p56 = por %p54, %p55
    %s58 = sadd.s32 %s57, 1
    %p61 = scmp.eq.s32.totalorder %s9, 1
    %p62 = scmp.ne.s32.totalorder %s57, %s59
    %p63 = scmp.eq.s32.totalorder %s9, 0
    %p64 = por %p62, %p63
    %p65 = scmp.ne.s32.totalorder %s57, %s59
    %p66 = scmp.eq.s32.totalorder %s14, 1
    %p67 = por %p65, %p66
    %p68 = scmp.ne.s32.totalorder %s59, %s60
    %p69 = scmp.eq.s32.totalorder %s14, 0
    %p70 = por %p68, %p69
    %p71 = scmp.ne.s32.totalorder %s59, %s60
    %p72 = scmp.eq.s32.totalorder %s15, 1
    %p73 = por %p71, %p72
    %p75 = scmp.ne.s32.totalorder %s60, %s74
    %p76 = scmp.eq.s32.totalorder %s15, 0
    %p77 = por %p75, %p76
    %s79 = sadd.s32 %s78, 1
    %p82 = scmp.eq.s32.totalorder %s9, 1
    %p83 = scmp.ne.s32.totalorder %s78, %s80
    %p84 = scmp.eq.s32.totalorder %s9, 0
    %p85 = por %p83, %p84
    %p86 = scmp.ne.s32.totalorder %s78, %s80
    %p87 = scmp.eq.s32.totalorder %s14, 1
    %p88 = por %p86, %p87
    %p89 = scmp.ne.s32.totalorder %s80, %s81
    %p90 = scmp.eq.s32.totalorder %s14, 0
    %p91 = por %p89, %p90
    %p92 = scmp.ne.s32.totalorder %s80, %s81
    %p93 = scmp.eq.s32.totalorder %s15, 1
    %p94 = por %p92, %p93
    %p96 = scmp.ne.s32.totalorder %s81, %s95
    %p97 = scmp.eq.s32.totalorder %s15, 0
    %p98 = por %p96, %p97
    %s99 = ssub.s32 %s16, %s28
    %s100 = ssub.s32 %s17, %s24
    %s101 = sor.u32 %s99, %s100
    %p102 = scmp.eq.s32.totalorder %s101, 0
    %s104 = sadd.s32 %s103, 1
    %s105 = scalar_select %p102, %s103, %s104
    %p108 = pneg %p102
    %p109 = scmp.eq.s32.totalorder %s9, 1
    %p110 = por %p108, %p109
    %p111 = scmp.ne.s32.totalorder %s103, %s106
    %p112 = scmp.eq.s32.totalorder %s9, 0
    %p113 = por %p111, %p112
    %p114 = scmp.ne.s32.totalorder %s103, %s106
    %p115 = scmp.eq.s32.totalorder %s14, 1
    %p116 = por %p114, %p115
    %p117 = scmp.ne.s32.totalorder %s106, %s107
    %p118 = scmp.eq.s32.totalorder %s14, 0
    %p119 = por %p117, %p118
    %p120 = scmp.ne.s32.totalorder %s106, %s107
    %p121 = scmp.eq.s32.totalorder %s15, 1
    %p122 = por %p120, %p121
    %p124 = scmp.ne.s32.totalorder %s107, %s123
    %p125 = scmp.eq.s32.totalorder %s15, 0
    %p126 = por %p124, %p125
    %p127 = scmp.le.s32.totalorder 1, %s9
    %p128 = scmp.lt.s32.totalorder %s9, 3
    %p129 = pnand %p127, %p128
    %p130 = pneg %p129
    // Predicated region
    $region9: #{_time_stretch.3} parent=5 // pred_check
      _
    $region10: #{_time_stretch.3} parent=5 // pred_check_branch
      %132 = sbr.rel (%p129) target = $region12
    $region11: #{_time_stretch.3} parent=5 // pred_region
      %s133 = ssub.s32 %s9, 1
      // Predicated region
      $region13: #{_time_stretch.3} parent=11 // pred_check
        %p134 = pneg %p70
      $region14: #{_time_stretch.3} parent=11 // pred_check_branch
        %136 = sbr.rel (%p134) target = $region16
      $region15: #{_time_stretch.3} parent=11 // pred_region
        _
      $region16: #{_time_stretch.3} parent=11 // pred_fallthru
        _
      // Predicated region
      $region17: #{_time_stretch.3} parent=11 // pred_check
        %p137 = pneg %p91
      $region18: #{_time_stretch.3} parent=11 // pred_check_branch
        %139 = sbr.rel (%p137) target = $region20
      $region19: #{_time_stretch.3} parent=11 // pred_region
        _
      $region20: #{_time_stretch.3} parent=11 // pred_fallthru
        _
    $region12: #{_time_stretch.3} parent=5 // pred_fallthru
      _
    %p140 = scmp.lt.s32.totalorder %s9, 2
    // Predicated region
    $region21: #{_time_stretch.3} parent=5 // pred_check
      %p141 = pneg %p140
    $region22: #{_time_stretch.3} parent=5 // pred_check_branch
      %143 = sbr.rel (%p141) target = $region24
    $region23: #{_time_stretch.3} parent=5 // pred_region
      // Predicated region
      $region25: #{_time_stretch.3} parent=23 // pred_check
        %p144 = pneg %p43
      $region26: #{_time_stretch.3} parent=23 // pred_check_branch
        %146 = sbr.rel (%p144) target = $region28
      $region27: #{_time_stretch.3} parent=23 // pred_region
        %s147 = smul.u32 32, %s17
        %p148 = scmp.lt.s32.totalorder %s16, 1
        %s149 = scalar_select %p148, %s16, 1
        %p150 = scmp.lt.s32.totalorder %s147, 31
        %s151 = scalar_select %p150, %s147, 31
        %s152 = smul.addr %s151, 4
        %s153 = smul.addr %s149, 128
        %s154 = sadd.s32 %s152, %s153
        %s155 = smul.addr %s154, 4
        %s156 = scalar_lea.vmem %s0, %s155
        %s157 = smul.u32 32, %s17
      $region28: #{_time_stretch.3} parent=23 // pred_fallthru
        _
    $region24: #{_time_stretch.3} parent=5 // pred_fallthru
      _
    %p158 = scmp.le.s32.totalorder 1, %s9
    %p159 = scmp.lt.s32.totalorder %s9, 3
    %p160 = pnand %p158, %p159
    %p161 = pneg %p160
    // Predicated region
    $region29: #{_time_stretch.3} parent=5 // pred_check
      _
    $region30: #{_time_stretch.3} parent=5 // pred_check_branch
      %163 = sbr.rel (%p160) target = $region32
    $region31: #{_time_stretch.3} parent=5 // pred_region
      %s164 = ssub.s32 %s9, 1
      %s165 = smul.u32 32, %s19
      %p166 = scmp.lt.s32.totalorder %s18, 1
      %s167 = scalar_select %p166, %s18, 1
      %p168 = scmp.lt.s32.totalorder %s165, 31
      %s169 = scalar_select %p168, %s165, 31
      %s170 = smul.addr %s169, 4
      %s171 = smul.addr %s167, 128
      %s172 = sadd.s32 %s170, %s171
      %s173 = smul.addr %s172, 4
      %s174 = scalar_lea.vmem %s0, %s173
      %p175 = pneg %p49
      %p176 = pneg %p46
      %p177 = pneg %p70
      %p178 = pneg %p67
      %p179 = pneg %p91
      %p180 = pneg %p88
      %p181 = pneg %p119
      %p182 = pneg %p116
      %s183 = smul.u32 32, %s19
      %p184 = scmp.lt.s32.totalorder %s18, 1
      %s185 = scalar_select %p184, %s18, 1
      %p186 = scmp.lt.s32.totalorder %s183, 31
      %s187 = scalar_select %p186, %s183, 31
      %s188 = smul.addr %s187, 2
      %s189 = smul.addr %s185, 64
      %s190 = sadd.s32 %s188, %s189
      %s191 = smul.addr %s190, 8
      %s192 = scalar_lea.vmem %s3, %s191
      %s193 = smul.u32 32, %s19
      %p194 = scmp.lt.s32.totalorder %s18, 1
      %s195 = scalar_select %p194, %s18, 1
      %p196 = scmp.lt.s32.totalorder %s193, 31
      %s197 = scalar_select %p196, %s193, 31
      %s198 = smul.addr %s197, 4
      %s199 = smul.addr %s195, 128
      %s200 = sadd.s32 %s198, %s199
      %s201 = smul.addr %s200, 4
      %s202 = scalar_lea.vmem %s0, %s201
      %s203 = smul.u32 32, %s19
      %s204 = smul.u32 32, %s19
      %p205 = scmp.lt.s32.totalorder %s18, 1
      %s206 = scalar_select %p205, %s18, 1
      %p207 = scmp.lt.s32.totalorder %s204, 31
      %s208 = scalar_select %p207, %s204, 31
      %s209 = smul.addr %s208, 2
      %s210 = smul.addr %s206, 64
      %s211 = sadd.s32 %s209, %s210
      %s212 = smul.addr %s211, 8
      %s213 = scalar_lea.vmem %s3, %s212
      %s214 = smul.u32 32, %s19
      %p215 = scmp.eq.s32.totalorder %s19, 0
      // Predicated region
      $region33: #{_time_stretch.3} parent=31 // pred_check
        %p216 = pneg %p215
      $region34: #{_time_stretch.3} parent=31 // pred_check_branch
        %218 = sbr.rel (%p216) target = $region36
      $region35: #{_time_stretch.3} parent=31 // pred_region
        %v219 = vlaneseq
        %vm220 = vcmp.ge.s32.totalorder %v219, 0
        %vm221 = vcmp.lt.s32.totalorder %v219, 256
        %vm222 = vmand %vm220, %vm221
        %223 = vst.msk [vmem:[#allocation2] sm:$0x3] %vm222, 0.0
      $region36: #{_time_stretch.3} parent=31 // pred_fallthru
        _
      %v224 = vld [vmem:[%s202] sm:$0xff]
      %v225 = vld [vmem:[%s202 + $0x8] sm:$0xff]
      %v226 = vld [vmem:[%s202 + $0x10] sm:$0xff]
      %v227 = vld [vmem:[%s202 + $0x18] sm:$0xff]
      %v228 = vld [vmem:[%s202 + $0x20] sm:$0xff]
      %v229 = vld [vmem:[%s202 + $0x28] sm:$0xff]
      %v230 = vld [vmem:[%s202 + $0x30] sm:$0xff]
      %v231 = vld [vmem:[%s202 + $0x38] sm:$0xff]
      %v232 = vld [vmem:[%s202 + $0x40] sm:$0xff]
      %v233 = vld [vmem:[%s202 + $0x48] sm:$0xff]
      %v234 = vld [vmem:[%s202 + $0x50] sm:$0xff]
      %v235 = vld [vmem:[%s202 + $0x58] sm:$0xff]
      %v236 = vld [vmem:[%s202 + $0x60] sm:$0xff]
      %v237 = vld [vmem:[%s202 + $0x68] sm:$0xff]
      %v238 = vld [vmem:[%s202 + $0x70] sm:$0xff]
      %v239 = vld [vmem:[%s202 + $0x78] sm:$0xff]
      %v240 = vld [vmem:[%s202 + $0x80] sm:$0xff]
      %v241 = vld [vmem:[%s202 + $0x88] sm:$0xff]
      %v242 = vld [vmem:[%s202 + $0x90] sm:$0xff]
      %v243 = vld [vmem:[%s202 + $0x98] sm:$0xff]
      %v244 = vld [vmem:[%s202 + $0xa0] sm:$0xff]
      %v245 = vld [vmem:[%s202 + $0xa8] sm:$0xff]
      %v246 = vld [vmem:[%s202 + $0xb0] sm:$0xff]
      %v247 = vld [vmem:[%s202 + $0xb8] sm:$0xff]
      %v248 = vld [vmem:[%s202 + $0xc0] sm:$0xff]
      %v249 = vld [vmem:[%s202 + $0xc8] sm:$0xff]
      %v250 = vld [vmem:[%s202 + $0xd0] sm:$0xff]
      %v251 = vld [vmem:[%s202 + $0xd8] sm:$0xff]
      %v252 = vld [vmem:[%s202 + $0xe0] sm:$0xff]
      %v253 = vld [vmem:[%s202 + $0xe8] sm:$0xff]
      %v254 = vld [vmem:[%s202 + $0xf0] sm:$0xff]
      %v255 = vld [vmem:[%s202 + $0xf8] sm:$0xff]
      %v256 = vld [vmem:[%s202 + $0x100] sm:$0xff]
      %v257 = vld [vmem:[%s202 + $0x108] sm:$0xff]
      %v258 = vld [vmem:[%s202 + $0x110] sm:$0xff]
      %v259 = vld [vmem:[%s202 + $0x118] sm:$0xff]
      %v260 = vld [vmem:[%s202 + $0x120] sm:$0xff]
      %v261 = vld [vmem:[%s202 + $0x128] sm:$0xff]
      %v262 = vld [vmem:[%s202 + $0x130] sm:$0xff]
      %v263 = vld [vmem:[%s202 + $0x138] sm:$0xff]
      %v264 = vld [vmem:[%s202 + $0x140] sm:$0xff]
      %v265 = vld [vmem:[%s202 + $0x148] sm:$0xff]
      %v266 = vld [vmem:[%s202 + $0x150] sm:$0xff]
      %v267 = vld [vmem:[%s202 + $0x158] sm:$0xff]
      %v268 = vld [vmem:[%s202 + $0x160] sm:$0xff]
      %v269 = vld [vmem:[%s202 + $0x168] sm:$0xff]
      %v270 = vld [vmem:[%s202 + $0x170] sm:$0xff]
      %v271 = vld [vmem:[%s202 + $0x178] sm:$0xff]
      %v272 = vld [vmem:[%s202 + $0x180] sm:$0xff]
      %v273 = vld [vmem:[%s202 + $0x188] sm:$0xff]
      %v274 = vld [vmem:[%s202 + $0x190] sm:$0xff]
      %v275 = vld [vmem:[%s202 + $0x198] sm:$0xff]
      %v276 = vld [vmem:[%s202 + $0x1a0] sm:$0xff]
      %v277 = vld [vmem:[%s202 + $0x1a8] sm:$0xff]
      %v278 = vld [vmem:[%s202 + $0x1b0] sm:$0xff]
      %v279 = vld [vmem:[%s202 + $0x1b8] sm:$0xff]
      %v280 = vld [vmem:[%s202 + $0x1c0] sm:$0xff]
      %v281 = vld [vmem:[%s202 + $0x1c8] sm:$0xff]
      %v282 = vld [vmem:[%s202 + $0x1d0] sm:$0xff]
      %v283 = vld [vmem:[%s202 + $0x1d8] sm:$0xff]
      %v284 = vld [vmem:[%s202 + $0x1e0] sm:$0xff]
      %v285 = vld [vmem:[%s202 + $0x1e8] sm:$0xff]
      %v286 = vld [vmem:[%s202 + $0x1f0] sm:$0xff]
      %v287 = vld [vmem:[%s202 + $0x1f8] sm:$0xff]
      %v288 = vld [vmem:[%s1] sm:$0xff]
      %v289 = vld [vmem:[%s1 + $0x8] sm:$0xff]
      %v290 = vld [vmem:[%s1 + $0x10] sm:$0xff]
      %v291 = vld [vmem:[%s1 + $0x18] sm:$0xff]
      %v292 = vld [vmem:[%s1 + $0x20] sm:$0xff]
      %v293 = vld [vmem:[%s1 + $0x28] sm:$0xff]
      %v294 = vld [vmem:[%s1 + $0x30] sm:$0xff]
      %v295 = vld [vmem:[%s1 + $0x38] sm:$0xff]
      %v296 = vld [vmem:[%s1 + $0x40] sm:$0xff]
      %v297 = vld [vmem:[%s1 + $0x48] sm:$0xff]
      %v298 = vld [vmem:[%s1 + $0x50] sm:$0xff]
      %v299 = vld [vmem:[%s1 + $0x58] sm:$0xff]
      %v300 = vld [vmem:[%s1 + $0x60] sm:$0xff]
      %v301 = vld [vmem:[%s1 + $0x68] sm:$0xff]
      %v302 = vld [vmem:[%s1 + $0x70] sm:$0xff]
      %v303 = vld [vmem:[%s1 + $0x78] sm:$0xff]
      %v304 = vld [vmem:[%s1 + $0x80] sm:$0xff]
      %v305 = vld [vmem:[%s1 + $0x88] sm:$0xff]
      %v306 = vld [vmem:[%s1 + $0x90] sm:$0xff]
      %v307 = vld [vmem:[%s1 + $0x98] sm:$0xff]
      %v308 = vld [vmem:[%s1 + $0xa0] sm:$0xff]
      %v309 = vld [vmem:[%s1 + $0xa8] sm:$0xff]
      %v310 = vld [vmem:[%s1 + $0xb0] sm:$0xff]
      %v311 = vld [vmem:[%s1 + $0xb8] sm:$0xff]
      %v312 = vld [vmem:[%s1 + $0xc0] sm:$0xff]
      %v313 = vld [vmem:[%s1 + $0xc8] sm:$0xff]
      %v314 = vld [vmem:[%s1 + $0xd0] sm:$0xff]
      %v315 = vld [vmem:[%s1 + $0xd8] sm:$0xff]
      %v316 = vld [vmem:[%s1 + $0xe0] sm:$0xff]
      %v317 = vld [vmem:[%s1 + $0xe8] sm:$0xff]
      %v318 = vld [vmem:[%s1 + $0xf0] sm:$0xff]
      %v319 = vld [vmem:[%s1 + $0xf8] sm:$0xff]
      %v320 = vld [vmem:[%s1 + $0x100] sm:$0xff]
      %v321 = vld [vmem:[%s1 + $0x108] sm:$0xff]
      %v322 = vld [vmem:[%s1 + $0x110] sm:$0xff]
      %v323 = vld [vmem:[%s1 + $0x118] sm:$0xff]
      %v324 = vld [vmem:[%s1 + $0x120] sm:$0xff]
      %v325 = vld [vmem:[%s1 + $0x128] sm:$0xff]
      %v326 = vld [vmem:[%s1 + $0x130] sm:$0xff]
      %v327 = vld [vmem:[%s1 + $0x138] sm:$0xff]
      %v328 = vld [vmem:[%s1 + $0x140] sm:$0xff]
      %v329 = vld [vmem:[%s1 + $0x148] sm:$0xff]
      %v330 = vld [vmem:[%s1 + $0x150] sm:$0xff]
      %v331 = vld [vmem:[%s1 + $0x158] sm:$0xff]
      %v332 = vld [vmem:[%s1 + $0x160] sm:$0xff]
      %v333 = vld [vmem:[%s1 + $0x168] sm:$0xff]
      %v334 = vld [vmem:[%s1 + $0x170] sm:$0xff]
      %v335 = vld [vmem:[%s1 + $0x178] sm:$0xff]
      %v336 = vld [vmem:[%s1 + $0x180] sm:$0xff]
      %v337 = vld [vmem:[%s1 + $0x188] sm:$0xff]
      %v338 = vld [vmem:[%s1 + $0x190] sm:$0xff]
      %v339 = vld [vmem:[%s1 + $0x198] sm:$0xff]
      %v340 = vld [vmem:[%s1 + $0x1a0] sm:$0xff]
      %v341 = vld [vmem:[%s1 + $0x1a8] sm:$0xff]
      %v342 = vld [vmem:[%s1 + $0x1b0] sm:$0xff]
      %v343 = vld [vmem:[%s1 + $0x1b8] sm:$0xff]
      %v344 = vld [vmem:[%s1 + $0x1c0] sm:$0xff]
      %v345 = vld [vmem:[%s1 + $0x1c8] sm:$0xff]
      %v346 = vld [vmem:[%s1 + $0x1d0] sm:$0xff]
      %v347 = vld [vmem:[%s1 + $0x1d8] sm:$0xff]
      %v348 = vld [vmem:[%s1 + $0x1e0] sm:$0xff]
      %v349 = vld [vmem:[%s1 + $0x1e8] sm:$0xff]
      %v350 = vld [vmem:[%s1 + $0x1f0] sm:$0xff]
      %v351 = vld [vmem:[%s1 + $0x1f8] sm:$0xff]
      %v352 = vld [vmem:[%s1 + $0x200] sm:$0xff]
      %v353 = vld [vmem:[%s1 + $0x208] sm:$0xff]
      %v354 = vld [vmem:[%s1 + $0x210] sm:$0xff]
      %v355 = vld [vmem:[%s1 + $0x218] sm:$0xff]
      %v356 = vld [vmem:[%s1 + $0x220] sm:$0xff]
      %v357 = vld [vmem:[%s1 + $0x228] sm:$0xff]
      %v358 = vld [vmem:[%s1 + $0x230] sm:$0xff]
      %v359 = vld [vmem:[%s1 + $0x238] sm:$0xff]
      %v360 = vld [vmem:[%s1 + $0x240] sm:$0xff]
      %v361 = vld [vmem:[%s1 + $0x248] sm:$0xff]
      %v362 = vld [vmem:[%s1 + $0x250] sm:$0xff]
      %v363 = vld [vmem:[%s1 + $0x258] sm:$0xff]
      %v364 = vld [vmem:[%s1 + $0x260] sm:$0xff]
      %v365 = vld [vmem:[%s1 + $0x268] sm:$0xff]
      %v366 = vld [vmem:[%s1 + $0x270] sm:$0xff]
      %v367 = vld [vmem:[%s1 + $0x278] sm:$0xff]
      %v368 = vld [vmem:[%s1 + $0x280] sm:$0xff]
      %v369 = vld [vmem:[%s1 + $0x288] sm:$0xff]
      %v370 = vld [vmem:[%s1 + $0x290] sm:$0xff]
      %v371 = vld [vmem:[%s1 + $0x298] sm:$0xff]
      %v372 = vld [vmem:[%s1 + $0x2a0] sm:$0xff]
      %v373 = vld [vmem:[%s1 + $0x2a8] sm:$0xff]
      %v374 = vld [vmem:[%s1 + $0x2b0] sm:$0xff]
      %v375 = vld [vmem:[%s1 + $0x2b8] sm:$0xff]
      %v376 = vld [vmem:[%s1 + $0x2c0] sm:$0xff]
      %v377 = vld [vmem:[%s1 + $0x2c8] sm:$0xff]
      %v378 = vld [vmem:[%s1 + $0x2d0] sm:$0xff]
      %v379 = vld [vmem:[%s1 + $0x2d8] sm:$0xff]
      %v380 = vld [vmem:[%s1 + $0x2e0] sm:$0xff]
      %v381 = vld [vmem:[%s1 + $0x2e8] sm:$0xff]
      %v382 = vld [vmem:[%s1 + $0x2f0] sm:$0xff]
      %v383 = vld [vmem:[%s1 + $0x2f8] sm:$0xff]
      %v384 = vld [vmem:[%s1 + $0x300] sm:$0xff]
      %v385 = vld [vmem:[%s1 + $0x308] sm:$0xff]
      %v386 = vld [vmem:[%s1 + $0x310] sm:$0xff]
      %v387 = vld [vmem:[%s1 + $0x318] sm:$0xff]
      %v388 = vld [vmem:[%s1 + $0x320] sm:$0xff]
      %v389 = vld [vmem:[%s1 + $0x328] sm:$0xff]
      %v390 = vld [vmem:[%s1 + $0x330] sm:$0xff]
      %v391 = vld [vmem:[%s1 + $0x338] sm:$0xff]
      %v392 = vld [vmem:[%s1 + $0x340] sm:$0xff]
      %v393 = vld [vmem:[%s1 + $0x348] sm:$0xff]
      %v394 = vld [vmem:[%s1 + $0x350] sm:$0xff]
      %v395 = vld [vmem:[%s1 + $0x358] sm:$0xff]
      %v396 = vld [vmem:[%s1 + $0x360] sm:$0xff]
      %v397 = vld [vmem:[%s1 + $0x368] sm:$0xff]
      %v398 = vld [vmem:[%s1 + $0x370] sm:$0xff]
      %v399 = vld [vmem:[%s1 + $0x378] sm:$0xff]
      %v400 = vld [vmem:[%s1 + $0x380] sm:$0xff]
      %v401 = vld [vmem:[%s1 + $0x388] sm:$0xff]
      %v402 = vld [vmem:[%s1 + $0x390] sm:$0xff]
      %v403 = vld [vmem:[%s1 + $0x398] sm:$0xff]
      %v404 = vld [vmem:[%s1 + $0x3a0] sm:$0xff]
      %v405 = vld [vmem:[%s1 + $0x3a8] sm:$0xff]
      %v406 = vld [vmem:[%s1 + $0x3b0] sm:$0xff]
      %v407 = vld [vmem:[%s1 + $0x3b8] sm:$0xff]
      %v408 = vld [vmem:[%s1 + $0x3c0] sm:$0xff]
      %v409 = vld [vmem:[%s1 + $0x3c8] sm:$0xff]
      %v410 = vld [vmem:[%s1 + $0x3d0] sm:$0xff]
      %v411 = vld [vmem:[%s1 + $0x3d8] sm:$0xff]
      %v412 = vld [vmem:[%s1 + $0x3e0] sm:$0xff]
      %v413 = vld [vmem:[%s1 + $0x3e8] sm:$0xff]
      %v414 = vld [vmem:[%s1 + $0x3f0] sm:$0xff]
      %v415 = vld [vmem:[%s1 + $0x3f8] sm:$0xff]
      %v480 = vunpack.c.l.b16 %v224
      %v481 = vunpack.c.h.b16 %v224
      %v482 = vunpack.c.l.b16 %v225
      %v483 = vunpack.c.h.b16 %v225
      %v484 = vunpack.c.l.b16 %v226
      %v485 = vunpack.c.h.b16 %v226
      %v486 = vunpack.c.l.b16 %v227
      %v487 = vunpack.c.h.b16 %v227
      %v488 = vunpack.c.l.b16 %v228
      %v489 = vunpack.c.h.b16 %v228
      %v490 = vunpack.c.l.b16 %v229
      %v491 = vunpack.c.h.b16 %v229
      %v492 = vunpack.c.l.b16 %v230
      %v493 = vunpack.c.h.b16 %v230
      %v494 = vunpack.c.l.b16 %v231
      %v495 = vunpack.c.h.b16 %v231
      %v496 = vunpack.c.l.b16 %v232
      %v497 = vunpack.c.h.b16 %v232
      %v498 = vunpack.c.l.b16 %v233
      %v499 = vunpack.c.h.b16 %v233
      %v500 = vunpack.c.l.b16 %v234
      %v501 = vunpack.c.h.b16 %v234
      %v502 = vunpack.c.l.b16 %v235
      %v503 = vunpack.c.h.b16 %v235
      %v504 = vunpack.c.l.b16 %v236
      %v505 = vunpack.c.h.b16 %v236
      %v506 = vunpack.c.l.b16 %v237
      %v507 = vunpack.c.h.b16 %v237
      %v508 = vunpack.c.l.b16 %v238
      %v509 = vunpack.c.h.b16 %v238
      %v510 = vunpack.c.l.b16 %v239
      %v511 = vunpack.c.h.b16 %v239
      %v512 = vunpack.c.l.b16 %v240
      %v513 = vunpack.c.h.b16 %v240
      %v514 = vunpack.c.l.b16 %v241
      %v515 = vunpack.c.h.b16 %v241
      %v516 = vunpack.c.l.b16 %v242
      %v517 = vunpack.c.h.b16 %v242
      %v518 = vunpack.c.l.b16 %v243
      %v519 = vunpack.c.h.b16 %v243
      %v520 = vunpack.c.l.b16 %v244
      %v521 = vunpack.c.h.b16 %v244
      %v522 = vunpack.c.l.b16 %v245
      %v523 = vunpack.c.h.b16 %v245
      %v524 = vunpack.c.l.b16 %v246
      %v525 = vunpack.c.h.b16 %v246
      %v526 = vunpack.c.l.b16 %v247
      %v527 = vunpack.c.h.b16 %v247
      %v528 = vunpack.c.l.b16 %v248
      %v529 = vunpack.c.h.b16 %v248
      %v530 = vunpack.c.l.b16 %v249
      %v531 = vunpack.c.h.b16 %v249
      %v532 = vunpack.c.l.b16 %v250
      %v533 = vunpack.c.h.b16 %v250
      %v534 = vunpack.c.l.b16 %v251
      %v535 = vunpack.c.h.b16 %v251
      %v536 = vunpack.c.l.b16 %v252
      %v537 = vunpack.c.h.b16 %v252
      %v538 = vunpack.c.l.b16 %v253
      %v539 = vunpack.c.h.b16 %v253
      %v540 = vunpack.c.l.b16 %v254
      %v541 = vunpack.c.h.b16 %v254
      %v542 = vunpack.c.l.b16 %v255
      %v543 = vunpack.c.h.b16 %v255
      %v544 = vunpack.c.l.b16 %v256
      %v545 = vunpack.c.h.b16 %v256
      %v546 = vunpack.c.l.b16 %v257
      %v547 = vunpack.c.h.b16 %v257
      %v548 = vunpack.c.l.b16 %v258
      %v549 = vunpack.c.h.b16 %v258
      %v550 = vunpack.c.l.b16 %v259
      %v551 = vunpack.c.h.b16 %v259
      %v552 = vunpack.c.l.b16 %v260
      %v553 = vunpack.c.h.b16 %v260
      %v554 = vunpack.c.l.b16 %v261
      %v555 = vunpack.c.h.b16 %v261
      %v556 = vunpack.c.l.b16 %v262
      %v557 = vunpack.c.h.b16 %v262
      %v558 = vunpack.c.l.b16 %v263
      %v559 = vunpack.c.h.b16 %v263
      %v560 = vunpack.c.l.b16 %v264
      %v561 = vunpack.c.h.b16 %v264
      %v562 = vunpack.c.l.b16 %v265
      %v563 = vunpack.c.h.b16 %v265
      %v564 = vunpack.c.l.b16 %v266
      %v565 = vunpack.c.h.b16 %v266
      %v566 = vunpack.c.l.b16 %v267
      %v567 = vunpack.c.h.b16 %v267
      %v568 = vunpack.c.l.b16 %v268
      %v569 = vunpack.c.h.b16 %v268
      %v570 = vunpack.c.l.b16 %v269
      %v571 = vunpack.c.h.b16 %v269
      %v572 = vunpack.c.l.b16 %v270
      %v573 = vunpack.c.h.b16 %v270
      %v574 = vunpack.c.l.b16 %v271
      %v575 = vunpack.c.h.b16 %v271
      %v576 = vunpack.c.l.b16 %v272
      %v577 = vunpack.c.h.b16 %v272
      %v578 = vunpack.c.l.b16 %v273
      %v579 = vunpack.c.h.b16 %v273
      %v580 = vunpack.c.l.b16 %v274
      %v581 = vunpack.c.h.b16 %v274
      %v582 = vunpack.c.l.b16 %v275
      %v583 = vunpack.c.h.b16 %v275
      %v584 = vunpack.c.l.b16 %v276
      %v585 = vunpack.c.h.b16 %v276
      %v586 = vunpack.c.l.b16 %v277
      %v587 = vunpack.c.h.b16 %v277
      %v588 = vunpack.c.l.b16 %v278
      %v589 = vunpack.c.h.b16 %v278
      %v590 = vunpack.c.l.b16 %v279
      %v591 = vunpack.c.h.b16 %v279
      %v592 = vunpack.c.l.b16 %v280
      %v593 = vunpack.c.h.b16 %v280
      %v594 = vunpack.c.l.b16 %v281
      %v595 = vunpack.c.h.b16 %v281
      %v596 = vunpack.c.l.b16 %v282
      %v597 = vunpack.c.h.b16 %v282
      %v598 = vunpack.c.l.b16 %v283
      %v599 = vunpack.c.h.b16 %v283
      %v600 = vunpack.c.l.b16 %v284
      %v601 = vunpack.c.h.b16 %v284
      %v602 = vunpack.c.l.b16 %v285
      %v603 = vunpack.c.h.b16 %v285
      %v604 = vunpack.c.l.b16 %v286
      %v605 = vunpack.c.h.b16 %v286
      %v606 = vunpack.c.l.b16 %v287
      %v607 = vunpack.c.h.b16 %v287
      %v608 = vpack.c.b16 %v484, %v480
      %v609 = vpack.c.b16 %v485, %v481
      %v610 = vpack.c.b16 %v486, %v482
      %v611 = vpack.c.b16 %v487, %v483
      %v612 = vpack.c.b16 %v492, %v488
      %v613 = vpack.c.b16 %v493, %v489
      %v614 = vpack.c.b16 %v494, %v490
      %v615 = vpack.c.b16 %v495, %v491
      %v616 = vpack.c.b16 %v500, %v496
      %v617 = vpack.c.b16 %v501, %v497
      %v618 = vpack.c.b16 %v502, %v498
      %v619 = vpack.c.b16 %v503, %v499
      %v620 = vpack.c.b16 %v508, %v504
      %v621 = vpack.c.b16 %v509, %v505
      %v622 = vpack.c.b16 %v510, %v506
      %v623 = vpack.c.b16 %v511, %v507
      %v624 = vpack.c.b16 %v516, %v512
      %v625 = vpack.c.b16 %v517, %v513
      %v626 = vpack.c.b16 %v518, %v514
      %v627 = vpack.c.b16 %v519, %v515
      %v628 = vpack.c.b16 %v524, %v520
      %v629 = vpack.c.b16 %v525, %v521
      %v630 = vpack.c.b16 %v526, %v522
      %v631 = vpack.c.b16 %v527, %v523
      %v632 = vpack.c.b16 %v532, %v528
      %v633 = vpack.c.b16 %v533, %v529
      %v634 = vpack.c.b16 %v534, %v530
      %v635 = vpack.c.b16 %v535, %v531
      %v636 = vpack.c.b16 %v540, %v536
      %v637 = vpack.c.b16 %v541, %v537
      %v638 = vpack.c.b16 %v542, %v538
      %v639 = vpack.c.b16 %v543, %v539
      %v640 = vpack.c.b16 %v548, %v544
      %v641 = vpack.c.b16 %v549, %v545
      %v642 = vpack.c.b16 %v550, %v546
      %v643 = vpack.c.b16 %v551, %v547
      %v644 = vpack.c.b16 %v556, %v552
      %v645 = vpack.c.b16 %v557, %v553
      %v646 = vpack.c.b16 %v558, %v554
      %v647 = vpack.c.b16 %v559, %v555
      %v648 = vpack.c.b16 %v564, %v560
      %v649 = vpack.c.b16 %v565, %v561
      %v650 = vpack.c.b16 %v566, %v562
      %v651 = vpack.c.b16 %v567, %v563
      %v652 = vpack.c.b16 %v572, %v568
      %v653 = vpack.c.b16 %v573, %v569
      %v654 = vpack.c.b16 %v574, %v570
      %v655 = vpack.c.b16 %v575, %v571
      %v656 = vpack.c.b16 %v580, %v576
      %v657 = vpack.c.b16 %v581, %v577
      %v658 = vpack.c.b16 %v582, %v578
      %v659 = vpack.c.b16 %v583, %v579
      %v660 = vpack.c.b16 %v588, %v584
      %v661 = vpack.c.b16 %v589, %v585
      %v662 = vpack.c.b16 %v590, %v586
      %v663 = vpack.c.b16 %v591, %v587
      %v664 = vpack.c.b16 %v596, %v592
      %v665 = vpack.c.b16 %v597, %v593
      %v666 = vpack.c.b16 %v598, %v594
      %v667 = vpack.c.b16 %v599, %v595
      %v668 = vpack.c.b16 %v604, %v600
      %v669 = vpack.c.b16 %v605, %v601
      %v670 = vpack.c.b16 %v606, %v602
      %v671 = vpack.c.b16 %v607, %v603
      %v864 = vunpack.c.l.b16 %v288
      %v865 = vunpack.c.h.b16 %v288
      %v866 = vunpack.c.l.b16 %v289
      %v867 = vunpack.c.h.b16 %v289
      %v868 = vunpack.c.l.b16 %v290
      %v869 = vunpack.c.h.b16 %v290
      %v870 = vunpack.c.l.b16 %v291
      %v871 = vunpack.c.h.b16 %v291
      %v872 = vunpack.c.l.b16 %v292
      %v873 = vunpack.c.h.b16 %v292
      %v874 = vunpack.c.l.b16 %v293
      %v875 = vunpack.c.h.b16 %v293
      %v876 = vunpack.c.l.b16 %v294
      %v877 = vunpack.c.h.b16 %v294
      %v878 = vunpack.c.l.b16 %v295
      %v879 = vunpack.c.h.b16 %v295
      %v880 = vunpack.c.l.b16 %v296
      %v881 = vunpack.c.h.b16 %v296
      %v882 = vunpack.c.l.b16 %v297
      %v883 = vunpack.c.h.b16 %v297
      %v884 = vunpack.c.l.b16 %v298
      %v885 = vunpack.c.h.b16 %v298
      %v886 = vunpack.c.l.b16 %v299
      %v887 = vunpack.c.h.b16 %v299
      %v888 = vunpack.c.l.b16 %v300
      %v889 = vunpack.c.h.b16 %v300
      %v890 = vunpack.c.l.b16 %v301
      %v891 = vunpack.c.h.b16 %v301
      %v892 = vunpack.c.l.b16 %v302
      %v893 = vunpack.c.h.b16 %v302
      %v894 = vunpack.c.l.b16 %v303
      %v895 = vunpack.c.h.b16 %v303
      %v896 = vunpack.c.l.b16 %v304
      %v897 = vunpack.c.h.b16 %v304
      %v898 = vunpack.c.l.b16 %v305
      %v899 = vunpack.c.h.b16 %v305
      %v900 = vunpack.c.l.b16 %v306
      %v901 = vunpack.c.h.b16 %v306
      %v902 = vunpack.c.l.b16 %v307
      %v903 = vunpack.c.h.b16 %v307
      %v904 = vunpack.c.l.b16 %v308
      %v905 = vunpack.c.h.b16 %v308
      %v906 = vunpack.c.l.b16 %v309
      %v907 = vunpack.c.h.b16 %v309
      %v908 = vunpack.c.l.b16 %v310
      %v909 = vunpack.c.h.b16 %v310
      %v910 = vunpack.c.l.b16 %v311
      %v911 = vunpack.c.h.b16 %v311
      %v912 = vunpack.c.l.b16 %v312
      %v913 = vunpack.c.h.b16 %v312
      %v914 = vunpack.c.l.b16 %v313
      %v915 = vunpack.c.h.b16 %v313
      %v916 = vunpack.c.l.b16 %v314
      %v917 = vunpack.c.h.b16 %v314
      %v918 = vunpack.c.l.b16 %v315
      %v919 = vunpack.c.h.b16 %v315
      %v920 = vunpack.c.l.b16 %v316
      %v921 = vunpack.c.h.b16 %v316
      %v922 = vunpack.c.l.b16 %v317
      %v923 = vunpack.c.h.b16 %v317
      %v924 = vunpack.c.l.b16 %v318
      %v925 = vunpack.c.h.b16 %v318
      %v926 = vunpack.c.l.b16 %v319
      %v927 = vunpack.c.h.b16 %v319
      %v928 = vunpack.c.l.b16 %v320
      %v929 = vunpack.c.h.b16 %v320
      %v930 = vunpack.c.l.b16 %v321
      %v931 = vunpack.c.h.b16 %v321
      %v932 = vunpack.c.l.b16 %v322
      %v933 = vunpack.c.h.b16 %v322
      %v934 = vunpack.c.l.b16 %v323
      %v935 = vunpack.c.h.b16 %v323
      %v936 = vunpack.c.l.b16 %v324
      %v937 = vunpack.c.h.b16 %v324
      %v938 = vunpack.c.l.b16 %v325
      %v939 = vunpack.c.h.b16 %v325
      %v940 = vunpack.c.l.b16 %v326
      %v941 = vunpack.c.h.b16 %v326
      %v942 = vunpack.c.l.b16 %v327
      %v943 = vunpack.c.h.b16 %v327
      %v944 = vunpack.c.l.b16 %v328
      %v945 = vunpack.c.h.b16 %v328
      %v946 = vunpack.c.l.b16 %v329
      %v947 = vunpack.c.h.b16 %v329
      %v948 = vunpack.c.l.b16 %v330
      %v949 = vunpack.c.h.b16 %v330
      %v950 = vunpack.c.l.b16 %v331
      %v951 = vunpack.c.h.b16 %v331
      %v952 = vunpack.c.l.b16 %v332
      %v953 = vunpack.c.h.b16 %v332
      %v954 = vunpack.c.l.b16 %v333
      %v955 = vunpack.c.h.b16 %v333
      %v956 = vunpack.c.l.b16 %v334
      %v957 = vunpack.c.h.b16 %v334
      %v958 = vunpack.c.l.b16 %v335
      %v959 = vunpack.c.h.b16 %v335
      %v960 = vunpack.c.l.b16 %v336
      %v961 = vunpack.c.h.b16 %v336
      %v962 = vunpack.c.l.b16 %v337
      %v963 = vunpack.c.h.b16 %v337
      %v964 = vunpack.c.l.b16 %v338
      %v965 = vunpack.c.h.b16 %v338
      %v966 = vunpack.c.l.b16 %v339
      %v967 = vunpack.c.h.b16 %v339
      %v968 = vunpack.c.l.b16 %v340
      %v969 = vunpack.c.h.b16 %v340
      %v970 = vunpack.c.l.b16 %v341
      %v971 = vunpack.c.h.b16 %v341
      %v972 = vunpack.c.l.b16 %v342
      %v973 = vunpack.c.h.b16 %v342
      %v974 = vunpack.c.l.b16 %v343
      %v975 = vunpack.c.h.b16 %v343
      %v976 = vunpack.c.l.b16 %v344
      %v977 = vunpack.c.h.b16 %v344
      %v978 = vunpack.c.l.b16 %v345
      %v979 = vunpack.c.h.b16 %v345
      %v980 = vunpack.c.l.b16 %v346
      %v981 = vunpack.c.h.b16 %v346
      %v982 = vunpack.c.l.b16 %v347
      %v983 = vunpack.c.h.b16 %v347
      %v984 = vunpack.c.l.b16 %v348
      %v985 = vunpack.c.h.b16 %v348
      %v986 = vunpack.c.l.b16 %v349
      %v987 = vunpack.c.h.b16 %v349
      %v988 = vunpack.c.l.b16 %v350
      %v989 = vunpack.c.h.b16 %v350
      %v990 = vunpack.c.l.b16 %v351
      %v991 = vunpack.c.h.b16 %v351
      %v992 = vunpack.c.l.b16 %v352
      %v993 = vunpack.c.h.b16 %v352
      %v994 = vunpack.c.l.b16 %v353
      %v995 = vunpack.c.h.b16 %v353
      %v996 = vunpack.c.l.b16 %v354
      %v997 = vunpack.c.h.b16 %v354
      %v998 = vunpack.c.l.b16 %v355
      %v999 = vunpack.c.h.b16 %v355
      %v1000 = vunpack.c.l.b16 %v356
      %v1001 = vunpack.c.h.b16 %v356
      %v1002 = vunpack.c.l.b16 %v357
      %v1003 = vunpack.c.h.b16 %v357
      %v1004 = vunpack.c.l.b16 %v358
      %v1005 = vunpack.c.h.b16 %v358
      %v1006 = vunpack.c.l.b16 %v359
      %v1007 = vunpack.c.h.b16 %v359
      %v1008 = vunpack.c.l.b16 %v360
      %v1009 = vunpack.c.h.b16 %v360
      %v1010 = vunpack.c.l.b16 %v361
      %v1011 = vunpack.c.h.b16 %v361
      %v1012 = vunpack.c.l.b16 %v362
      %v1013 = vunpack.c.h.b16 %v362
      %v1014 = vunpack.c.l.b16 %v363
      %v1015 = vunpack.c.h.b16 %v363
      %v1016 = vunpack.c.l.b16 %v364
      %v1017 = vunpack.c.h.b16 %v364
      %v1018 = vunpack.c.l.b16 %v365
      %v1019 = vunpack.c.h.b16 %v365
      %v1020 = vunpack.c.l.b16 %v366
      %v1021 = vunpack.c.h.b16 %v366
      %v1022 = vunpack.c.l.b16 %v367
      %v1023 = vunpack.c.h.b16 %v367
      %v1024 = vunpack.c.l.b16 %v368
      %v1025 = vunpack.c.h.b16 %v368
      %v1026 = vunpack.c.l.b16 %v369
      %v1027 = vunpack.c.h.b16 %v369
      %v1028 = vunpack.c.l.b16 %v370
      %v1029 = vunpack.c.h.b16 %v370
      %v1030 = vunpack.c.l.b16 %v371
      %v1031 = vunpack.c.h.b16 %v371
      %v1032 = vunpack.c.l.b16 %v372
      %v1033 = vunpack.c.h.b16 %v372
      %v1034 = vunpack.c.l.b16 %v373
      %v1035 = vunpack.c.h.b16 %v373
      %v1036 = vunpack.c.l.b16 %v374
      %v1037 = vunpack.c.h.b16 %v374
      %v1038 = vunpack.c.l.b16 %v375
      %v1039 = vunpack.c.h.b16 %v375
      %v1040 = vunpack.c.l.b16 %v376
      %v1041 = vunpack.c.h.b16 %v376
      %v1042 = vunpack.c.l.b16 %v377
      %v1043 = vunpack.c.h.b16 %v377
      %v1044 = vunpack.c.l.b16 %v378
      %v1045 = vunpack.c.h.b16 %v378
      %v1046 = vunpack.c.l.b16 %v379
      %v1047 = vunpack.c.h.b16 %v379
      %v1048 = vunpack.c.l.b16 %v380
      %v1049 = vunpack.c.h.b16 %v380
      %v1050 = vunpack.c.l.b16 %v381
      %v1051 = vunpack.c.h.b16 %v381
      %v1052 = vunpack.c.l.b16 %v382
      %v1053 = vunpack.c.h.b16 %v382
      %v1054 = vunpack.c.l.b16 %v383
      %v1055 = vunpack.c.h.b16 %v383
      %v1056 = vunpack.c.l.b16 %v384
      %v1057 = vunpack.c.h.b16 %v384
      %v1058 = vunpack.c.l.b16 %v385
      %v1059 = vunpack.c.h.b16 %v385
      %v1060 = vunpack.c.l.b16 %v386
      %v1061 = vunpack.c.h.b16 %v386
      %v1062 = vunpack.c.l.b16 %v387
      %v1063 = vunpack.c.h.b16 %v387
      %v1064 = vunpack.c.l.b16 %v388
      %v1065 = vunpack.c.h.b16 %v388
      %v1066 = vunpack.c.l.b16 %v389
      %v1067 = vunpack.c.h.b16 %v389
      %v1068 = vunpack.c.l.b16 %v390
      %v1069 = vunpack.c.h.b16 %v390
      %v1070 = vunpack.c.l.b16 %v391
      %v1071 = vunpack.c.h.b16 %v391
      %v1072 = vunpack.c.l.b16 %v392
      %v1073 = vunpack.c.h.b16 %v392
      %v1074 = vunpack.c.l.b16 %v393
      %v1075 = vunpack.c.h.b16 %v393
      %v1076 = vunpack.c.l.b16 %v394
      %v1077 = vunpack.c.h.b16 %v394
      %v1078 = vunpack.c.l.b16 %v395
      %v1079 = vunpack.c.h.b16 %v395
      %v1080 = vunpack.c.l.b16 %v396
      %v1081 = vunpack.c.h.b16 %v396
      %v1082 = vunpack.c.l.b16 %v397
      %v1083 = vunpack.c.h.b16 %v397
      %v1084 = vunpack.c.l.b16 %v398
      %v1085 = vunpack.c.h.b16 %v398
      %v1086 = vunpack.c.l.b16 %v399
      %v1087 = vunpack.c.h.b16 %v399
      %v1088 = vunpack.c.l.b16 %v400
      %v1089 = vunpack.c.h.b16 %v400
      %v1090 = vunpack.c.l.b16 %v401
      %v1091 = vunpack.c.h.b16 %v401
      %v1092 = vunpack.c.l.b16 %v402
      %v1093 = vunpack.c.h.b16 %v402
      %v1094 = vunpack.c.l.b16 %v403
      %v1095 = vunpack.c.h.b16 %v403
      %v1096 = vunpack.c.l.b16 %v404
      %v1097 = vunpack.c.h.b16 %v404
      %v1098 = vunpack.c.l.b16 %v405
      %v1099 = vunpack.c.h.b16 %v405
      %v1100 = vunpack.c.l.b16 %v406
      %v1101 = vunpack.c.h.b16 %v406
      %v1102 = vunpack.c.l.b16 %v407
      %v1103 = vunpack.c.h.b16 %v407
      %v1104 = vunpack.c.l.b16 %v408
      %v1105 = vunpack.c.h.b16 %v408
      %v1106 = vunpack.c.l.b16 %v409
      %v1107 = vunpack.c.h.b16 %v409
      %v1108 = vunpack.c.l.b16 %v410
      %v1109 = vunpack.c.h.b16 %v410
      %v1110 = vunpack.c.l.b16 %v411
      %v1111 = vunpack.c.h.b16 %v411
      %v1112 = vunpack.c.l.b16 %v412
      %v1113 = vunpack.c.h.b16 %v412
      %v1114 = vunpack.c.l.b16 %v413
      %v1115 = vunpack.c.h.b16 %v413
      %v1116 = vunpack.c.l.b16 %v414
      %v1117 = vunpack.c.h.b16 %v414
      %v1118 = vunpack.c.l.b16 %v415
      %v1119 = vunpack.c.h.b16 %v415
      %v1120 = vpack.c.b16 %v868, %v864
      %v1121 = vpack.c.b16 %v869, %v865
      %v1122 = vpack.c.b16 %v870, %v866
      %v1123 = vpack.c.b16 %v871, %v867
      %v1124 = vpack.c.b16 %v876, %v872
      %v1125 = vpack.c.b16 %v877, %v873
      %v1126 = vpack.c.b16 %v878, %v874
      %v1127 = vpack.c.b16 %v879, %v875
      %v1128 = vpack.c.b16 %v884, %v880
      %v1129 = vpack.c.b16 %v885, %v881
      %v1130 = vpack.c.b16 %v886, %v882
      %v1131 = vpack.c.b16 %v887, %v883
      %v1132 = vpack.c.b16 %v892, %v888
      %v1133 = vpack.c.b16 %v893, %v889
      %v1134 = vpack.c.b16 %v894, %v890
      %v1135 = vpack.c.b16 %v895, %v891
      %v1136 = vpack.c.b16 %v900, %v896
      %v1137 = vpack.c.b16 %v901, %v897
      %v1138 = vpack.c.b16 %v902, %v898
      %v1139 = vpack.c.b16 %v903, %v899
      %v1140 = vpack.c.b16 %v908, %v904
      %v1141 = vpack.c.b16 %v909, %v905
      %v1142 = vpack.c.b16 %v910, %v906
      %v1143 = vpack.c.b16 %v911, %v907
      %v1144 = vpack.c.b16 %v916, %v912
      %v1145 = vpack.c.b16 %v917, %v913
      %v1146 = vpack.c.b16 %v918, %v914
      %v1147 = vpack.c.b16 %v919, %v915
      %v1148 = vpack.c.b16 %v924, %v920
      %v1149 = vpack.c.b16 %v925, %v921
      %v1150 = vpack.c.b16 %v926, %v922
      %v1151 = vpack.c.b16 %v927, %v923
      %v1152 = vpack.c.b16 %v932, %v928
      %v1153 = vpack.c.b16 %v933, %v929
      %v1154 = vpack.c.b16 %v934, %v930
      %v1155 = vpack.c.b16 %v935, %v931
      %v1156 = vpack.c.b16 %v940, %v936
      %v1157 = vpack.c.b16 %v941, %v937
      %v1158 = vpack.c.b16 %v942, %v938
      %v1159 = vpack.c.b16 %v943, %v939
      %v1160 = vpack.c.b16 %v948, %v944
      %v1161 = vpack.c.b16 %v949, %v945
      %v1162 = vpack.c.b16 %v950, %v946
      %v1163 = vpack.c.b16 %v951, %v947
      %v1164 = vpack.c.b16 %v956, %v952
      %v1165 = vpack.c.b16 %v957, %v953
      %v1166 = vpack.c.b16 %v958, %v954
      %v1167 = vpack.c.b16 %v959, %v955
      %v1168 = vpack.c.b16 %v964, %v960
      %v1169 = vpack.c.b16 %v965, %v961
      %v1170 = vpack.c.b16 %v966, %v962
      %v1171 = vpack.c.b16 %v967, %v963
      %v1172 = vpack.c.b16 %v972, %v968
      %v1173 = vpack.c.b16 %v973, %v969
      %v1174 = vpack.c.b16 %v974, %v970
      %v1175 = vpack.c.b16 %v975, %v971
      %v1176 = vpack.c.b16 %v980, %v976
      %v1177 = vpack.c.b16 %v981, %v977
      %v1178 = vpack.c.b16 %v982, %v978
      %v1179 = vpack.c.b16 %v983, %v979
      %v1180 = vpack.c.b16 %v988, %v984
      %v1181 = vpack.c.b16 %v989, %v985
      %v1182 = vpack.c.b16 %v990, %v986
      %v1183 = vpack.c.b16 %v991, %v987
      %v1184 = vpack.c.b16 %v996, %v992
      %v1185 = vpack.c.b16 %v997, %v993
      %v1186 = vpack.c.b16 %v998, %v994
      %v1187 = vpack.c.b16 %v999, %v995
      %v1188 = vpack.c.b16 %v1004, %v1000
      %v1189 = vpack.c.b16 %v1005, %v1001
      %v1190 = vpack.c.b16 %v1006, %v1002
      %v1191 = vpack.c.b16 %v1007, %v1003
      %v1192 = vpack.c.b16 %v1012, %v1008
      %v1193 = vpack.c.b16 %v1013, %v1009
      %v1194 = vpack.c.b16 %v1014, %v1010
      %v1195 = vpack.c.b16 %v1015, %v1011
      %v1196 = vpack.c.b16 %v1020, %v1016
      %v1197 = vpack.c.b16 %v1021, %v1017
      %v1198 = vpack.c.b16 %v1022, %v1018
      %v1199 = vpack.c.b16 %v1023, %v1019
      %v1200 = vpack.c.b16 %v1028, %v1024
      %v1201 = vpack.c.b16 %v1029, %v1025
      %v1202 = vpack.c.b16 %v1030, %v1026
      %v1203 = vpack.c.b16 %v1031, %v1027
      %v1204 = vpack.c.b16 %v1036, %v1032
      %v1205 = vpack.c.b16 %v1037, %v1033
      %v1206 = vpack.c.b16 %v1038, %v1034
      %v1207 = vpack.c.b16 %v1039, %v1035
      %v1208 = vpack.c.b16 %v1044, %v1040
      %v1209 = vpack.c.b16 %v1045, %v1041
      %v1210 = vpack.c.b16 %v1046, %v1042
      %v1211 = vpack.c.b16 %v1047, %v1043
      %v1212 = vpack.c.b16 %v1052, %v1048
      %v1213 = vpack.c.b16 %v1053, %v1049
      %v1214 = vpack.c.b16 %v1054, %v1050
      %v1215 = vpack.c.b16 %v1055, %v1051
      %v1216 = vpack.c.b16 %v1060, %v1056
      %v1217 = vpack.c.b16 %v1061, %v1057
      %v1218 = vpack.c.b16 %v1062, %v1058
      %v1219 = vpack.c.b16 %v1063, %v1059
      %v1220 = vpack.c.b16 %v1068, %v1064
      %v1221 = vpack.c.b16 %v1069, %v1065
      %v1222 = vpack.c.b16 %v1070, %v1066
      %v1223 = vpack.c.b16 %v1071, %v1067
      %v1224 = vpack.c.b16 %v1076, %v1072
      %v1225 = vpack.c.b16 %v1077, %v1073
      %v1226 = vpack.c.b16 %v1078, %v1074
      %v1227 = vpack.c.b16 %v1079, %v1075
      %v1228 = vpack.c.b16 %v1084, %v1080
      %v1229 = vpack.c.b16 %v1085, %v1081
      %v1230 = vpack.c.b16 %v1086, %v1082
      %v1231 = vpack.c.b16 %v1087, %v1083
      %v1232 = vpack.c.b16 %v1092, %v1088
      %v1233 = vpack.c.b16 %v1093, %v1089
      %v1234 = vpack.c.b16 %v1094, %v1090
      %v1235 = vpack.c.b16 %v1095, %v1091
      %v1236 = vpack.c.b16 %v1100, %v1096
      %v1237 = vpack.c.b16 %v1101, %v1097
      %v1238 = vpack.c.b16 %v1102, %v1098
      %v1239 = vpack.c.b16 %v1103, %v1099
      %v1240 = vpack.c.b16 %v1108, %v1104
      %v1241 = vpack.c.b16 %v1109, %v1105
      %v1242 = vpack.c.b16 %v1110, %v1106
      %v1243 = vpack.c.b16 %v1111, %v1107
      %v1244 = vpack.c.b16 %v1116, %v1112
      %v1245 = vpack.c.b16 %v1117, %v1113
      %v1246 = vpack.c.b16 %v1118, %v1114
      %v1247 = vpack.c.b16 %v1119, %v1115
      %1376 = vmatpush.bf16.msra.mxu0 %v1148
      %1377 = vmatpush.bf16.msra.mxu0 %v1144
      %1378 = vmatpush.bf16.msra.mxu0 %v1140
      %1379 = vmatpush.bf16.msra.mxu0 %v1136
      %1380 = vmatpush.bf16.msra.mxu0 %v1132
      %1381 = vmatpush.bf16.msra.mxu0 %v1128
      %1382 = vmatpush.bf16.msra.mxu0 %v1124
      %1383 = vmatpush.bf16.msra.mxu0 %v1120
      %1384 = vmatmul.bf16.gmra.mxu0 %v608
      %v1385 = vpop.f32.mrf.mxu0
      %v1386 = vadd.f32 0.0, %v1385
      %v1387 = vpop.f32.mrf.mxu0
      %v1388 = vadd.f32 0.0, %v1387
      %1389 = vmatmul.bf16.gmra.mxu0 %v612
      %v1390 = vpop.f32.mrf.mxu0
      %v1391 = vadd.f32 0.0, %v1390
      %v1392 = vpop.f32.mrf.mxu0
      %v1393 = vadd.f32 0.0, %v1392
      %1394 = vmatmul.bf16.gmra.mxu0 %v616
      %v1395 = vpop.f32.mrf.mxu0
      %v1396 = vadd.f32 0.0, %v1395
      %v1397 = vpop.f32.mrf.mxu0
      %v1398 = vadd.f32 0.0, %v1397
      %1399 = vmatmul.bf16.gmra.mxu0 %v620
      %v1400 = vpop.f32.mrf.mxu0
      %v1401 = vadd.f32 0.0, %v1400
      %v1402 = vpop.f32.mrf.mxu0
      %v1403 = vadd.f32 0.0, %v1402
      %1404 = vmatmul.bf16.gmra.mxu0 %v624
      %v1405 = vpop.f32.mrf.mxu0
      %v1406 = vadd.f32 0.0, %v1405
      %v1407 = vpop.f32.mrf.mxu0
      %v1408 = vadd.f32 0.0, %v1407
      %1409 = vmatmul.bf16.gmra.mxu0 %v628
      %v1410 = vpop.f32.mrf.mxu0
      %v1411 = vadd.f32 0.0, %v1410
      %v1412 = vpop.f32.mrf.mxu0
      %v1413 = vadd.f32 0.0, %v1412
      %1414 = vmatmul.bf16.gmra.mxu0 %v632
      %v1415 = vpop.f32.mrf.mxu0
      %v1416 = vadd.f32 0.0, %v1415
      %v1417 = vpop.f32.mrf.mxu0
      %v1418 = vadd.f32 0.0, %v1417
      %1419 = vmatmul.bf16.gmra.mxu0 %v636
      %v1420 = vpop.f32.mrf.mxu0
      %v1421 = vadd.f32 0.0, %v1420
      %v1422 = vpop.f32.mrf.mxu0
      %v1423 = vadd.f32 0.0, %v1422
      %1424 = vmatmul.bf16.gmra.mxu0 %v640
      %v1425 = vpop.f32.mrf.mxu0
      %v1426 = vadd.f32 0.0, %v1425
      %v1427 = vpop.f32.mrf.mxu0
      %v1428 = vadd.f32 0.0, %v1427
      %1429 = vmatmul.bf16.gmra.mxu0 %v644
      %v1430 = vpop.f32.mrf.mxu0
      %v1431 = vadd.f32 0.0, %v1430
      %v1432 = vpop.f32.mrf.mxu0
      %v1433 = vadd.f32 0.0, %v1432
      %1434 = vmatmul.bf16.gmra.mxu0 %v648
      %v1435 = vpop.f32.mrf.mxu0
      %v1436 = vadd.f32 0.0, %v1435
      %v1437 = vpop.f32.mrf.mxu0
      %v1438 = vadd.f32 0.0, %v1437
      %1439 = vmatmul.bf16.gmra.mxu0 %v652
      %v1440 = vpop.f32.mrf.mxu0
      %v1441 = vadd.f32 0.0, %v1440
      %v1442 = vpop.f32.mrf.mxu0
      %v1443 = vadd.f32 0.0, %v1442
      %1444 = vmatmul.bf16.gmra.mxu0 %v656
      %v1445 = vpop.f32.mrf.mxu0
      %v1446 = vadd.f32 0.0, %v1445
      %v1447 = vpop.f32.mrf.mxu0
      %v1448 = vadd.f32 0.0, %v1447
      %1449 = vmatmul.bf16.gmra.mxu0 %v660
      %v1450 = vpop.f32.mrf.mxu0
      %v1451 = vadd.f32 0.0, %v1450
      %v1452 = vpop.f32.mrf.mxu0
      %v1453 = vadd.f32 0.0, %v1452
      %1454 = vmatmul.bf16.gmra.mxu0 %v664
      %v1455 = vpop.f32.mrf.mxu0
      %v1456 = vadd.f32 0.0, %v1455
      %v1457 = vpop.f32.mrf.mxu0
      %v1458 = vadd.f32 0.0, %v1457
      %1459 = vmatmul.bf16.gmra.mxu0 %v668
      %v1460 = vpop.f32.mrf.mxu0
      %v1461 = vadd.f32 0.0, %v1460
      %v1462 = vpop.f32.mrf.mxu0
      %v1463 = vadd.f32 0.0, %v1462
      %1464 = vdwg.mxu0
      %1465 = vmatpush.bf16.msra.mxu0 %v1180
      %1466 = vmatpush.bf16.msra.mxu0 %v1176
      %1467 = vmatpush.bf16.msra.mxu0 %v1172
      %1468 = vmatpush.bf16.msra.mxu0 %v1168
      %1469 = vmatpush.bf16.msra.mxu0 %v1164
      %1470 = vmatpush.bf16.msra.mxu0 %v1160
      %1471 = vmatpush.bf16.msra.mxu0 %v1156
      %1472 = vmatpush.bf16.msra.mxu0 %v1152
      %1473 = vmatmul.bf16.gmra.mxu0 %v609
      %v1474 = vpop.f32.mrf.mxu0
      %v1475 = vadd.f32 %v1386, %v1474
      %v1476 = vpop.f32.mrf.mxu0
      %v1477 = vadd.f32 %v1388, %v1476
      %1478 = vmatmul.bf16.gmra.mxu0 %v613
      %v1479 = vpop.f32.mrf.mxu0
      %v1480 = vadd.f32 %v1391, %v1479
      %v1481 = vpop.f32.mrf.mxu0
      %v1482 = vadd.f32 %v1393, %v1481
      %1483 = vmatmul.bf16.gmra.mxu0 %v617
      %v1484 = vpop.f32.mrf.mxu0
      %v1485 = vadd.f32 %v1396, %v1484
      %v1486 = vpop.f32.mrf.mxu0
      %v1487 = vadd.f32 %v1398, %v1486
      %1488 = vmatmul.bf16.gmra.mxu0 %v621
      %v1489 = vpop.f32.mrf.mxu0
      %v1490 = vadd.f32 %v1401, %v1489
      %v1491 = vpop.f32.mrf.mxu0
      %v1492 = vadd.f32 %v1403, %v1491
      %1493 = vmatmul.bf16.gmra.mxu0 %v625
      %v1494 = vpop.f32.mrf.mxu0
      %v1495 = vadd.f32 %v1406, %v1494
      %v1496 = vpop.f32.mrf.mxu0
      %v1497 = vadd.f32 %v1408, %v1496
      %1498 = vmatmul.bf16.gmra.mxu0 %v629
      %v1499 = vpop.f32.mrf.mxu0
      %v1500 = vadd.f32 %v1411, %v1499
      %v1501 = vpop.f32.mrf.mxu0
      %v1502 = vadd.f32 %v1413, %v1501
      %1503 = vmatmul.bf16.gmra.mxu0 %v633
      %v1504 = vpop.f32.mrf.mxu0
      %v1505 = vadd.f32 %v1416, %v1504
      %v1506 = vpop.f32.mrf.mxu0
      %v1507 = vadd.f32 %v1418, %v1506
      %1508 = vmatmul.bf16.gmra.mxu0 %v637
      %v1509 = vpop.f32.mrf.mxu0
      %v1510 = vadd.f32 %v1421, %v1509
      %v1511 = vpop.f32.mrf.mxu0
      %v1512 = vadd.f32 %v1423, %v1511
      %1513 = vmatmul.bf16.gmra.mxu0 %v641
      %v1514 = vpop.f32.mrf.mxu0
      %v1515 = vadd.f32 %v1426, %v1514
      %v1516 = vpop.f32.mrf.mxu0
      %v1517 = vadd.f32 %v1428, %v1516
      %1518 = vmatmul.bf16.gmra.mxu0 %v645
      %v1519 = vpop.f32.mrf.mxu0
      %v1520 = vadd.f32 %v1431, %v1519
      %v1521 = vpop.f32.mrf.mxu0
      %v1522 = vadd.f32 %v1433, %v1521
      %1523 = vmatmul.bf16.gmra.mxu0 %v649
      %v1524 = vpop.f32.mrf.mxu0
      %v1525 = vadd.f32 %v1436, %v1524
      %v1526 = vpop.f32.mrf.mxu0
      %v1527 = vadd.f32 %v1438, %v1526
      %1528 = vmatmul.bf16.gmra.mxu0 %v653
      %v1529 = vpop.f32.mrf.mxu0
      %v1530 = vadd.f32 %v1441, %v1529
      %v1531 = vpop.f32.mrf.mxu0
      %v1532 = vadd.f32 %v1443, %v1531
      %1533 = vmatmul.bf16.gmra.mxu0 %v657
      %v1534 = vpop.f32.mrf.mxu0
      %v1535 = vadd.f32 %v1446, %v1534
      %v1536 = vpop.f32.mrf.mxu0
      %v1537 = vadd.f32 %v1448, %v1536
      %1538 = vmatmul.bf16.gmra.mxu0 %v661
      %v1539 = vpop.f32.mrf.mxu0
      %v1540 = vadd.f32 %v1451, %v1539
      %v1541 = vpop.f32.mrf.mxu0
      %v1542 = vadd.f32 %v1453, %v1541
      %1543 = vmatmul.bf16.gmra.mxu0 %v665
      %v1544 = vpop.f32.mrf.mxu0
      %v1545 = vadd.f32 %v1456, %v1544
      %v1546 = vpop.f32.mrf.mxu0
      %v1547 = vadd.f32 %v1458, %v1546
      %1548 = vmatmul.bf16.gmra.mxu0 %v669
      %v1549 = vpop.f32.mrf.mxu0
      %v1550 = vadd.f32 %v1461, %v1549
      %v1551 = vpop.f32.mrf.mxu0
      %v1552 = vadd.f32 %v1463, %v1551
      %1553 = vdwg.mxu0
      %1554 = vmatpush.bf16.msra.mxu0 %v1212
      %1555 = vmatpush.bf16.msra.mxu0 %v1208
      %1556 = vmatpush.bf16.msra.mxu0 %v1204
      %1557 = vmatpush.bf16.msra.mxu0 %v1200
      %1558 = vmatpush.bf16.msra.mxu0 %v1196
      %1559 = vmatpush.bf16.msra.mxu0 %v1192
      %1560 = vmatpush.bf16.msra.mxu0 %v1188
      %1561 = vmatpush.bf16.msra.mxu0 %v1184
      %1562 = vmatmul.bf16.gmra.mxu0 %v610
      %v1563 = vpop.f32.mrf.mxu0
      %v1564 = vadd.f32 %v1475, %v1563
      %v1565 = vpop.f32.mrf.mxu0
      %v1566 = vadd.f32 %v1477, %v1565
      %1567 = vmatmul.bf16.gmra.mxu0 %v614
      %v1568 = vpop.f32.mrf.mxu0
      %v1569 = vadd.f32 %v1480, %v1568
      %v1570 = vpop.f32.mrf.mxu0
      %v1571 = vadd.f32 %v1482, %v1570
      %1572 = vmatmul.bf16.gmra.mxu0 %v618
      %v1573 = vpop.f32.mrf.mxu0
      %v1574 = vadd.f32 %v1485, %v1573
      %v1575 = vpop.f32.mrf.mxu0
      %v1576 = vadd.f32 %v1487, %v1575
      %1577 = vmatmul.bf16.gmra.mxu0 %v622
      %v1578 = vpop.f32.mrf.mxu0
      %v1579 = vadd.f32 %v1490, %v1578
      %v1580 = vpop.f32.mrf.mxu0
      %v1581 = vadd.f32 %v1492, %v1580
      %1582 = vmatmul.bf16.gmra.mxu0 %v626
      %v1583 = vpop.f32.mrf.mxu0
      %v1584 = vadd.f32 %v1495, %v1583
      %v1585 = vpop.f32.mrf.mxu0
      %v1586 = vadd.f32 %v1497, %v1585
      %1587 = vmatmul.bf16.gmra.mxu0 %v630
      %v1588 = vpop.f32.mrf.mxu0
      %v1589 = vadd.f32 %v1500, %v1588
      %v1590 = vpop.f32.mrf.mxu0
      %v1591 = vadd.f32 %v1502, %v1590
      %1592 = vmatmul.bf16.gmra.mxu0 %v634
      %v1593 = vpop.f32.mrf.mxu0
      %v1594 = vadd.f32 %v1505, %v1593
      %v1595 = vpop.f32.mrf.mxu0
      %v1596 = vadd.f32 %v1507, %v1595
      %1597 = vmatmul.bf16.gmra.mxu0 %v638
      %v1598 = vpop.f32.mrf.mxu0
      %v1599 = vadd.f32 %v1510, %v1598
      %v1600 = vpop.f32.mrf.mxu0
      %v1601 = vadd.f32 %v1512, %v1600
      %1602 = vmatmul.bf16.gmra.mxu0 %v642
      %v1603 = vpop.f32.mrf.mxu0
      %v1604 = vadd.f32 %v1515, %v1603
      %v1605 = vpop.f32.mrf.mxu0
      %v1606 = vadd.f32 %v1517, %v1605
      %1607 = vmatmul.bf16.gmra.mxu0 %v646
      %v1608 = vpop.f32.mrf.mxu0
      %v1609 = vadd.f32 %v1520, %v1608
      %v1610 = vpop.f32.mrf.mxu0
      %v1611 = vadd.f32 %v1522, %v1610
      %1612 = vmatmul.bf16.gmra.mxu0 %v650
      %v1613 = vpop.f32.mrf.mxu0
      %v1614 = vadd.f32 %v1525, %v1613
      %v1615 = vpop.f32.mrf.mxu0
      %v1616 = vadd.f32 %v1527, %v1615
      %1617 = vmatmul.bf16.gmra.mxu0 %v654
      %v1618 = vpop.f32.mrf.mxu0
      %v1619 = vadd.f32 %v1530, %v1618
      %v1620 = vpop.f32.mrf.mxu0
      %v1621 = vadd.f32 %v1532, %v1620
      %1622 = vmatmul.bf16.gmra.mxu0 %v658
      %v1623 = vpop.f32.mrf.mxu0
      %v1624 = vadd.f32 %v1535, %v1623
      %v1625 = vpop.f32.mrf.mxu0
      %v1626 = vadd.f32 %v1537, %v1625
      %1627 = vmatmul.bf16.gmra.mxu0 %v662
      %v1628 = vpop.f32.mrf.mxu0
      %v1629 = vadd.f32 %v1540, %v1628
      %v1630 = vpop.f32.mrf.mxu0
      %v1631 = vadd.f32 %v1542, %v1630
      %1632 = vmatmul.bf16.gmra.mxu0 %v666
      %v1633 = vpop.f32.mrf.mxu0
      %v1634 = vadd.f32 %v1545, %v1633
      %v1635 = vpop.f32.mrf.mxu0
      %v1636 = vadd.f32 %v1547, %v1635
      %1637 = vmatmul.bf16.gmra.mxu0 %v670
      %v1638 = vpop.f32.mrf.mxu0
      %v1639 = vadd.f32 %v1550, %v1638
      %v1640 = vpop.f32.mrf.mxu0
      %v1641 = vadd.f32 %v1552, %v1640
      %1642 = vdwg.mxu0
      %1643 = vmatpush.bf16.msra.mxu0 %v1244
      %1644 = vmatpush.bf16.msra.mxu0 %v1240
      %1645 = vmatpush.bf16.msra.mxu0 %v1236
      %1646 = vmatpush.bf16.msra.mxu0 %v1232
      %1647 = vmatpush.bf16.msra.mxu0 %v1228
      %1648 = vmatpush.bf16.msra.mxu0 %v1224
      %1649 = vmatpush.bf16.msra.mxu0 %v1220
      %1650 = vmatpush.bf16.msra.mxu0 %v1216
      %1651 = vmatmul.bf16.gmra.mxu0 %v611
      %v1652 = vpop.f32.mrf.mxu0
      %v1653 = vadd.f32 %v1564, %v1652
      %v1654 = vpop.f32.mrf.mxu0
      %v1655 = vadd.f32 %v1566, %v1654
      %1656 = vmatmul.bf16.gmra.mxu0 %v615
      %v1657 = vpop.f32.mrf.mxu0
      %v1658 = vadd.f32 %v1569, %v1657
      %v1659 = vpop.f32.mrf.mxu0
      %v1660 = vadd.f32 %v1571, %v1659
      %1661 = vmatmul.bf16.gmra.mxu0 %v619
      %v1662 = vpop.f32.mrf.mxu0
      %v1663 = vadd.f32 %v1574, %v1662
      %v1664 = vpop.f32.mrf.mxu0
      %v1665 = vadd.f32 %v1576, %v1664
      %1666 = vmatmul.bf16.gmra.mxu0 %v623
      %v1667 = vpop.f32.mrf.mxu0
      %v1668 = vadd.f32 %v1579, %v1667
      %v1669 = vpop.f32.mrf.mxu0
      %v1670 = vadd.f32 %v1581, %v1669
      %1671 = vmatmul.bf16.gmra.mxu0 %v627
      %v1672 = vpop.f32.mrf.mxu0
      %v1673 = vadd.f32 %v1584, %v1672
      %v1674 = vpop.f32.mrf.mxu0
      %v1675 = vadd.f32 %v1586, %v1674
      %1676 = vmatmul.bf16.gmra.mxu0 %v631
      %v1677 = vpop.f32.mrf.mxu0
      %v1678 = vadd.f32 %v1589, %v1677
      %v1679 = vpop.f32.mrf.mxu0
      %v1680 = vadd.f32 %v1591, %v1679
      %1681 = vmatmul.bf16.gmra.mxu0 %v635
      %v1682 = vpop.f32.mrf.mxu0
      %v1683 = vadd.f32 %v1594, %v1682
      %v1684 = vpop.f32.mrf.mxu0
      %v1685 = vadd.f32 %v1596, %v1684
      %1686 = vmatmul.bf16.gmra.mxu0 %v639
      %v1687 = vpop.f32.mrf.mxu0
      %v1688 = vadd.f32 %v1599, %v1687
      %v1689 = vpop.f32.mrf.mxu0
      %v1690 = vadd.f32 %v1601, %v1689
      %1691 = vmatmul.bf16.gmra.mxu0 %v643
      %v1692 = vpop.f32.mrf.mxu0
      %v1693 = vadd.f32 %v1604, %v1692
      %v1694 = vpop.f32.mrf.mxu0
      %v1695 = vadd.f32 %v1606, %v1694
      %1696 = vmatmul.bf16.gmra.mxu0 %v647
      %v1697 = vpop.f32.mrf.mxu0
      %v1698 = vadd.f32 %v1609, %v1697
      %v1699 = vpop.f32.mrf.mxu0
      %v1700 = vadd.f32 %v1611, %v1699
      %1701 = vmatmul.bf16.gmra.mxu0 %v651
      %v1702 = vpop.f32.mrf.mxu0
      %v1703 = vadd.f32 %v1614, %v1702
      %v1704 = vpop.f32.mrf.mxu0
      %v1705 = vadd.f32 %v1616, %v1704
      %1706 = vmatmul.bf16.gmra.mxu0 %v655
      %v1707 = vpop.f32.mrf.mxu0
      %v1708 = vadd.f32 %v1619, %v1707
      %v1709 = vpop.f32.mrf.mxu0
      %v1710 = vadd.f32 %v1621, %v1709
      %1711 = vmatmul.bf16.gmra.mxu0 %v659
      %v1712 = vpop.f32.mrf.mxu0
      %v1713 = vadd.f32 %v1624, %v1712
      %v1714 = vpop.f32.mrf.mxu0
      %v1715 = vadd.f32 %v1626, %v1714
      %1716 = vmatmul.bf16.gmra.mxu0 %v663
      %v1717 = vpop.f32.mrf.mxu0
      %v1718 = vadd.f32 %v1629, %v1717
      %v1719 = vpop.f32.mrf.mxu0
      %v1720 = vadd.f32 %v1631, %v1719
      %1721 = vmatmul.bf16.gmra.mxu0 %v667
      %v1722 = vpop.f32.mrf.mxu0
      %v1723 = vadd.f32 %v1634, %v1722
      %v1724 = vpop.f32.mrf.mxu0
      %v1725 = vadd.f32 %v1636, %v1724
      %1726 = vmatmul.bf16.gmra.mxu0 %v671
      %v1727 = vpop.f32.mrf.mxu0
      %v1728 = vadd.f32 %v1639, %v1727
      %v1729 = vpop.f32.mrf.mxu0
      %v1730 = vadd.f32 %v1641, %v1729
      %1731 = vdwg.mxu0
      %1732 = vmatpush.bf16.msra.mxu0 %v1149
      %1733 = vmatpush.bf16.msra.mxu0 %v1145
      %1734 = vmatpush.bf16.msra.mxu0 %v1141
      %1735 = vmatpush.bf16.msra.mxu0 %v1137
      %1736 = vmatpush.bf16.msra.mxu0 %v1133
      %1737 = vmatpush.bf16.msra.mxu0 %v1129
      %1738 = vmatpush.bf16.msra.mxu0 %v1125
      %1739 = vmatpush.bf16.msra.mxu0 %v1121
      %1740 = vmatmul.bf16.gmra.mxu0 %v608
      %v1741 = vpop.f32.mrf.mxu0
      %v1742 = vadd.f32 0.0, %v1741
      %v1743 = vpop.f32.mrf.mxu0
      %v1744 = vadd.f32 0.0, %v1743
      %1745 = vmatmul.bf16.gmra.mxu0 %v612
      %v1746 = vpop.f32.mrf.mxu0
      %v1747 = vadd.f32 0.0, %v1746
      %v1748 = vpop.f32.mrf.mxu0
      %v1749 = vadd.f32 0.0, %v1748
      %1750 = vmatmul.bf16.gmra.mxu0 %v616
      %v1751 = vpop.f32.mrf.mxu0
      %v1752 = vadd.f32 0.0, %v1751
      %v1753 = vpop.f32.mrf.mxu0
      %v1754 = vadd.f32 0.0, %v1753
      %1755 = vmatmul.bf16.gmra.mxu0 %v620
      %v1756 = vpop.f32.mrf.mxu0
      %v1757 = vadd.f32 0.0, %v1756
      %v1758 = vpop.f32.mrf.mxu0
      %v1759 = vadd.f32 0.0, %v1758
      %1760 = vmatmul.bf16.gmra.mxu0 %v624
      %v1761 = vpop.f32.mrf.mxu0
      %v1762 = vadd.f32 0.0, %v1761
      %v1763 = vpop.f32.mrf.mxu0
      %v1764 = vadd.f32 0.0, %v1763
      %1765 = vmatmul.bf16.gmra.mxu0 %v628
      %v1766 = vpop.f32.mrf.mxu0
      %v1767 = vadd.f32 0.0, %v1766
      %v1768 = vpop.f32.mrf.mxu0
      %v1769 = vadd.f32 0.0, %v1768
      %1770 = vmatmul.bf16.gmra.mxu0 %v632
      %v1771 = vpop.f32.mrf.mxu0
      %v1772 = vadd.f32 0.0, %v1771
      %v1773 = vpop.f32.mrf.mxu0
      %v1774 = vadd.f32 0.0, %v1773
      %1775 = vmatmul.bf16.gmra.mxu0 %v636
      %v1776 = vpop.f32.mrf.mxu0
      %v1777 = vadd.f32 0.0, %v1776
      %v1778 = vpop.f32.mrf.mxu0
      %v1779 = vadd.f32 0.0, %v1778
      %1780 = vmatmul.bf16.gmra.mxu0 %v640
      %v1781 = vpop.f32.mrf.mxu0
      %v1782 = vadd.f32 0.0, %v1781
      %v1783 = vpop.f32.mrf.mxu0
      %v1784 = vadd.f32 0.0, %v1783
      %1785 = vmatmul.bf16.gmra.mxu0 %v644
      %v1786 = vpop.f32.mrf.mxu0
      %v1787 = vadd.f32 0.0, %v1786
      %v1788 = vpop.f32.mrf.mxu0
      %v1789 = vadd.f32 0.0, %v1788
      %1790 = vmatmul.bf16.gmra.mxu0 %v648
      %v1791 = vpop.f32.mrf.mxu0
      %v1792 = vadd.f32 0.0, %v1791
      %v1793 = vpop.f32.mrf.mxu0
      %v1794 = vadd.f32 0.0, %v1793
      %1795 = vmatmul.bf16.gmra.mxu0 %v652
      %v1796 = vpop.f32.mrf.mxu0
      %v1797 = vadd.f32 0.0, %v1796
      %v1798 = vpop.f32.mrf.mxu0
      %v1799 = vadd.f32 0.0, %v1798
      %1800 = vmatmul.bf16.gmra.mxu0 %v656
      %v1801 = vpop.f32.mrf.mxu0
      %v1802 = vadd.f32 0.0, %v1801
      %v1803 = vpop.f32.mrf.mxu0
      %v1804 = vadd.f32 0.0, %v1803
      %1805 = vmatmul.bf16.gmra.mxu0 %v660
      %v1806 = vpop.f32.mrf.mxu0
      %v1807 = vadd.f32 0.0, %v1806
      %v1808 = vpop.f32.mrf.mxu0
      %v1809 = vadd.f32 0.0, %v1808
      %1810 = vmatmul.bf16.gmra.mxu0 %v664
      %v1811 = vpop.f32.mrf.mxu0
      %v1812 = vadd.f32 0.0, %v1811
      %v1813 = vpop.f32.mrf.mxu0
      %v1814 = vadd.f32 0.0, %v1813
      %1815 = vmatmul.bf16.gmra.mxu0 %v668
      %v1816 = vpop.f32.mrf.mxu0
      %v1817 = vadd.f32 0.0, %v1816
      %v1818 = vpop.f32.mrf.mxu0
      %v1819 = vadd.f32 0.0, %v1818
      %1820 = vdwg.mxu0
      %1821 = vmatpush.bf16.msra.mxu0 %v1181
      %1822 = vmatpush.bf16.msra.mxu0 %v1177
      %1823 = vmatpush.bf16.msra.mxu0 %v1173
      %1824 = vmatpush.bf16.msra.mxu0 %v1169
      %1825 = vmatpush.bf16.msra.mxu0 %v1165
      %1826 = vmatpush.bf16.msra.mxu0 %v1161
      %1827 = vmatpush.bf16.msra.mxu0 %v1157
      %1828 = vmatpush.bf16.msra.mxu0 %v1153
      %1829 = vmatmul.bf16.gmra.mxu0 %v609
      %v1830 = vpop.f32.mrf.mxu0
      %v1831 = vadd.f32 %v1742, %v1830
      %v1832 = vpop.f32.mrf.mxu0
      %v1833 = vadd.f32 %v1744, %v1832
      %1834 = vmatmul.bf16.gmra.mxu0 %v613
      %v1835 = vpop.f32.mrf.mxu0
      %v1836 = vadd.f32 %v1747, %v1835
      %v1837 = vpop.f32.mrf.mxu0
      %v1838 = vadd.f32 %v1749, %v1837
      %1839 = vmatmul.bf16.gmra.mxu0 %v617
      %v1840 = vpop.f32.mrf.mxu0
      %v1841 = vadd.f32 %v1752, %v1840
      %v1842 = vpop.f32.mrf.mxu0
      %v1843 = vadd.f32 %v1754, %v1842
      %1844 = vmatmul.bf16.gmra.mxu0 %v621
      %v1845 = vpop.f32.mrf.mxu0
      %v1846 = vadd.f32 %v1757, %v1845
      %v1847 = vpop.f32.mrf.mxu0
      %v1848 = vadd.f32 %v1759, %v1847
      %1849 = vmatmul.bf16.gmra.mxu0 %v625
      %v1850 = vpop.f32.mrf.mxu0
      %v1851 = vadd.f32 %v1762, %v1850
      %v1852 = vpop.f32.mrf.mxu0
      %v1853 = vadd.f32 %v1764, %v1852
      %1854 = vmatmul.bf16.gmra.mxu0 %v629
      %v1855 = vpop.f32.mrf.mxu0
      %v1856 = vadd.f32 %v1767, %v1855
      %v1857 = vpop.f32.mrf.mxu0
      %v1858 = vadd.f32 %v1769, %v1857
      %1859 = vmatmul.bf16.gmra.mxu0 %v633
      %v1860 = vpop.f32.mrf.mxu0
      %v1861 = vadd.f32 %v1772, %v1860
      %v1862 = vpop.f32.mrf.mxu0
      %v1863 = vadd.f32 %v1774, %v1862
      %1864 = vmatmul.bf16.gmra.mxu0 %v637
      %v1865 = vpop.f32.mrf.mxu0
      %v1866 = vadd.f32 %v1777, %v1865
      %v1867 = vpop.f32.mrf.mxu0
      %v1868 = vadd.f32 %v1779, %v1867
      %1869 = vmatmul.bf16.gmra.mxu0 %v641
      %v1870 = vpop.f32.mrf.mxu0
      %v1871 = vadd.f32 %v1782, %v1870
      %v1872 = vpop.f32.mrf.mxu0
      %v1873 = vadd.f32 %v1784, %v1872
      %1874 = vmatmul.bf16.gmra.mxu0 %v645
      %v1875 = vpop.f32.mrf.mxu0
      %v1876 = vadd.f32 %v1787, %v1875
      %v1877 = vpop.f32.mrf.mxu0
      %v1878 = vadd.f32 %v1789, %v1877
      %1879 = vmatmul.bf16.gmra.mxu0 %v649
      %v1880 = vpop.f32.mrf.mxu0
      %v1881 = vadd.f32 %v1792, %v1880
      %v1882 = vpop.f32.mrf.mxu0
      %v1883 = vadd.f32 %v1794, %v1882
      %1884 = vmatmul.bf16.gmra.mxu0 %v653
      %v1885 = vpop.f32.mrf.mxu0
      %v1886 = vadd.f32 %v1797, %v1885
      %v1887 = vpop.f32.mrf.mxu0
      %v1888 = vadd.f32 %v1799, %v1887
      %1889 = vmatmul.bf16.gmra.mxu0 %v657
      %v1890 = vpop.f32.mrf.mxu0
      %v1891 = vadd.f32 %v1802, %v1890
      %v1892 = vpop.f32.mrf.mxu0
      %v1893 = vadd.f32 %v1804, %v1892
      %1894 = vmatmul.bf16.gmra.mxu0 %v661
      %v1895 = vpop.f32.mrf.mxu0
      %v1896 = vadd.f32 %v1807, %v1895
      %v1897 = vpop.f32.mrf.mxu0
      %v1898 = vadd.f32 %v1809, %v1897
      %1899 = vmatmul.bf16.gmra.mxu0 %v665
      %v1900 = vpop.f32.mrf.mxu0
      %v1901 = vadd.f32 %v1812, %v1900
      %v1902 = vpop.f32.mrf.mxu0
      %v1903 = vadd.f32 %v1814, %v1902
      %1904 = vmatmul.bf16.gmra.mxu0 %v669
      %v1905 = vpop.f32.mrf.mxu0
      %v1906 = vadd.f32 %v1817, %v1905
      %v1907 = vpop.f32.mrf.mxu0
      %v1908 = vadd.f32 %v1819, %v1907
      %1909 = vdwg.mxu0
      %1910 = vmatpush.bf16.msra.mxu0 %v1213
      %1911 = vmatpush.bf16.msra.mxu0 %v1209
      %1912 = vmatpush.bf16.msra.mxu0 %v1205
      %1913 = vmatpush.bf16.msra.mxu0 %v1201
      %1914 = vmatpush.bf16.msra.mxu0 %v1197
      %1915 = vmatpush.bf16.msra.mxu0 %v1193
      %1916 = vmatpush.bf16.msra.mxu0 %v1189
      %1917 = vmatpush.bf16.msra.mxu0 %v1185
      %1918 = vmatmul.bf16.gmra.mxu0 %v610
      %v1919 = vpop.f32.mrf.mxu0
      %v1920 = vadd.f32 %v1831, %v1919
      %v1921 = vpop.f32.mrf.mxu0
      %v1922 = vadd.f32 %v1833, %v1921
      %1923 = vmatmul.bf16.gmra.mxu0 %v614
      %v1924 = vpop.f32.mrf.mxu0
      %v1925 = vadd.f32 %v1836, %v1924
      %v1926 = vpop.f32.mrf.mxu0
      %v1927 = vadd.f32 %v1838, %v1926
      %1928 = vmatmul.bf16.gmra.mxu0 %v618
      %v1929 = vpop.f32.mrf.mxu0
      %v1930 = vadd.f32 %v1841, %v1929
      %v1931 = vpop.f32.mrf.mxu0
      %v1932 = vadd.f32 %v1843, %v1931
      %1933 = vmatmul.bf16.gmra.mxu0 %v622
      %v1934 = vpop.f32.mrf.mxu0
      %v1935 = vadd.f32 %v1846, %v1934
      %v1936 = vpop.f32.mrf.mxu0
      %v1937 = vadd.f32 %v1848, %v1936
      %1938 = vmatmul.bf16.gmra.mxu0 %v626
      %v1939 = vpop.f32.mrf.mxu0
      %v1940 = vadd.f32 %v1851, %v1939
      %v1941 = vpop.f32.mrf.mxu0
      %v1942 = vadd.f32 %v1853, %v1941
      %1943 = vmatmul.bf16.gmra.mxu0 %v630
      %v1944 = vpop.f32.mrf.mxu0
      %v1945 = vadd.f32 %v1856, %v1944
      %v1946 = vpop.f32.mrf.mxu0
      %v1947 = vadd.f32 %v1858, %v1946
      %1948 = vmatmul.bf16.gmra.mxu0 %v634
      %v1949 = vpop.f32.mrf.mxu0
      %v1950 = vadd.f32 %v1861, %v1949
      %v1951 = vpop.f32.mrf.mxu0
      %v1952 = vadd.f32 %v1863, %v1951
      %1953 = vmatmul.bf16.gmra.mxu0 %v638
      %v1954 = vpop.f32.mrf.mxu0
      %v1955 = vadd.f32 %v1866, %v1954
      %v1956 = vpop.f32.mrf.mxu0
      %v1957 = vadd.f32 %v1868, %v1956
      %1958 = vmatmul.bf16.gmra.mxu0 %v642
      %v1959 = vpop.f32.mrf.mxu0
      %v1960 = vadd.f32 %v1871, %v1959
      %v1961 = vpop.f32.mrf.mxu0
      %v1962 = vadd.f32 %v1873, %v1961
      %1963 = vmatmul.bf16.gmra.mxu0 %v646
      %v1964 = vpop.f32.mrf.mxu0
      %v1965 = vadd.f32 %v1876, %v1964
      %v1966 = vpop.f32.mrf.mxu0
      %v1967 = vadd.f32 %v1878, %v1966
      %1968 = vmatmul.bf16.gmra.mxu0 %v650
      %v1969 = vpop.f32.mrf.mxu0
      %v1970 = vadd.f32 %v1881, %v1969
      %v1971 = vpop.f32.mrf.mxu0
      %v1972 = vadd.f32 %v1883, %v1971
      %1973 = vmatmul.bf16.gmra.mxu0 %v654
      %v1974 = vpop.f32.mrf.mxu0
      %v1975 = vadd.f32 %v1886, %v1974
      %v1976 = vpop.f32.mrf.mxu0
      %v1977 = vadd.f32 %v1888, %v1976
      %1978 = vmatmul.bf16.gmra.mxu0 %v658
      %v1979 = vpop.f32.mrf.mxu0
      %v1980 = vadd.f32 %v1891, %v1979
      %v1981 = vpop.f32.mrf.mxu0
      %v1982 = vadd.f32 %v1893, %v1981
      %1983 = vmatmul.bf16.gmra.mxu0 %v662
      %v1984 = vpop.f32.mrf.mxu0
      %v1985 = vadd.f32 %v1896, %v1984
      %v1986 = vpop.f32.mrf.mxu0
      %v1987 = vadd.f32 %v1898, %v1986
      %1988 = vmatmul.bf16.gmra.mxu0 %v666
      %v1989 = vpop.f32.mrf.mxu0
      %v1990 = vadd.f32 %v1901, %v1989
      %v1991 = vpop.f32.mrf.mxu0
      %v1992 = vadd.f32 %v1903, %v1991
      %1993 = vmatmul.bf16.gmra.mxu0 %v670
      %v1994 = vpop.f32.mrf.mxu0
      %v1995 = vadd.f32 %v1906, %v1994
      %v1996 = vpop.f32.mrf.mxu0
      %v1997 = vadd.f32 %v1908, %v1996
      %1998 = vdwg.mxu0
      %1999 = vmatpush.bf16.msra.mxu0 %v1245
      %2000 = vmatpush.bf16.msra.mxu0 %v1241
      %2001 = vmatpush.bf16.msra.mxu0 %v1237
      %2002 = vmatpush.bf16.msra.mxu0 %v1233
      %2003 = vmatpush.bf16.msra.mxu0 %v1229
      %2004 = vmatpush.bf16.msra.mxu0 %v1225
      %2005 = vmatpush.bf16.msra.mxu0 %v1221
      %2006 = vmatpush.bf16.msra.mxu0 %v1217
      %2007 = vmatmul.bf16.gmra.mxu0 %v611
      %v2008 = vpop.f32.mrf.mxu0
      %v2009 = vadd.f32 %v1920, %v2008
      %v2010 = vpop.f32.mrf.mxu0
      %v2011 = vadd.f32 %v1922, %v2010
      %2012 = vmatmul.bf16.gmra.mxu0 %v615
      %v2013 = vpop.f32.mrf.mxu0
      %v2014 = vadd.f32 %v1925, %v2013
      %v2015 = vpop.f32.mrf.mxu0
      %v2016 = vadd.f32 %v1927, %v2015
      %2017 = vmatmul.bf16.gmra.mxu0 %v619
      %v2018 = vpop.f32.mrf.mxu0
      %v2019 = vadd.f32 %v1930, %v2018
      %v2020 = vpop.f32.mrf.mxu0
      %v2021 = vadd.f32 %v1932, %v2020
      %2022 = vmatmul.bf16.gmra.mxu0 %v623
      %v2023 = vpop.f32.mrf.mxu0
      %v2024 = vadd.f32 %v1935, %v2023
      %v2025 = vpop.f32.mrf.mxu0
      %v2026 = vadd.f32 %v1937, %v2025
      %2027 = vmatmul.bf16.gmra.mxu0 %v627
      %v2028 = vpop.f32.mrf.mxu0
      %v2029 = vadd.f32 %v1940, %v2028
      %v2030 = vpop.f32.mrf.mxu0
      %v2031 = vadd.f32 %v1942, %v2030
      %2032 = vmatmul.bf16.gmra.mxu0 %v631
      %v2033 = vpop.f32.mrf.mxu0
      %v2034 = vadd.f32 %v1945, %v2033
      %v2035 = vpop.f32.mrf.mxu0
      %v2036 = vadd.f32 %v1947, %v2035
      %2037 = vmatmul.bf16.gmra.mxu0 %v635
      %v2038 = vpop.f32.mrf.mxu0
      %v2039 = vadd.f32 %v1950, %v2038
      %v2040 = vpop.f32.mrf.mxu0
      %v2041 = vadd.f32 %v1952, %v2040
      %2042 = vmatmul.bf16.gmra.mxu0 %v639
      %v2043 = vpop.f32.mrf.mxu0
      %v2044 = vadd.f32 %v1955, %v2043
      %v2045 = vpop.f32.mrf.mxu0
      %v2046 = vadd.f32 %v1957, %v2045
      %2047 = vmatmul.bf16.gmra.mxu0 %v643
      %v2048 = vpop.f32.mrf.mxu0
      %v2049 = vadd.f32 %v1960, %v2048
      %v2050 = vpop.f32.mrf.mxu0
      %v2051 = vadd.f32 %v1962, %v2050
      %2052 = vmatmul.bf16.gmra.mxu0 %v647
      %v2053 = vpop.f32.mrf.mxu0
      %v2054 = vadd.f32 %v1965, %v2053
      %v2055 = vpop.f32.mrf.mxu0
      %v2056 = vadd.f32 %v1967, %v2055
      %2057 = vmatmul.bf16.gmra.mxu0 %v651
      %v2058 = vpop.f32.mrf.mxu0
      %v2059 = vadd.f32 %v1970, %v2058
      %v2060 = vpop.f32.mrf.mxu0
      %v2061 = vadd.f32 %v1972, %v2060
      %2062 = vmatmul.bf16.gmra.mxu0 %v655
      %v2063 = vpop.f32.mrf.mxu0
      %v2064 = vadd.f32 %v1975, %v2063
      %v2065 = vpop.f32.mrf.mxu0
      %v2066 = vadd.f32 %v1977, %v2065
      %2067 = vmatmul.bf16.gmra.mxu0 %v659
      %v2068 = vpop.f32.mrf.mxu0
      %v2069 = vadd.f32 %v1980, %v2068
      %v2070 = vpop.f32.mrf.mxu0
      %v2071 = vadd.f32 %v1982, %v2070
      %2072 = vmatmul.bf16.gmra.mxu0 %v663
      %v2073 = vpop.f32.mrf.mxu0
      %v2074 = vadd.f32 %v1985, %v2073
      %v2075 = vpop.f32.mrf.mxu0
      %v2076 = vadd.f32 %v1987, %v2075
      %2077 = vmatmul.bf16.gmra.mxu0 %v667
      %v2078 = vpop.f32.mrf.mxu0
      %v2079 = vadd.f32 %v1990, %v2078
      %v2080 = vpop.f32.mrf.mxu0
      %v2081 = vadd.f32 %v1992, %v2080
      %2082 = vmatmul.bf16.gmra.mxu0 %v671
      %v2083 = vpop.f32.mrf.mxu0
      %v2084 = vadd.f32 %v1995, %v2083
      %v2085 = vpop.f32.mrf.mxu0
      %v2086 = vadd.f32 %v1997, %v2085
      %2087 = vdwg.mxu0
      %2088 = vmatpush.bf16.msra.mxu0 %v1150
      %2089 = vmatpush.bf16.msra.mxu0 %v1146
      %2090 = vmatpush.bf16.msra.mxu0 %v1142
      %2091 = vmatpush.bf16.msra.mxu0 %v1138
      %2092 = vmatpush.bf16.msra.mxu0 %v1134
      %2093 = vmatpush.bf16.msra.mxu0 %v1130
      %2094 = vmatpush.bf16.msra.mxu0 %v1126
      %2095 = vmatpush.bf16.msra.mxu0 %v1122
      %2096 = vmatmul.bf16.gmra.mxu0 %v608
      %v2097 = vpop.f32.mrf.mxu0
      %v2098 = vadd.f32 0.0, %v2097
      %v2099 = vpop.f32.mrf.mxu0
      %v2100 = vadd.f32 0.0, %v2099
      %2101 = vmatmul.bf16.gmra.mxu0 %v612
      %v2102 = vpop.f32.mrf.mxu0
      %v2103 = vadd.f32 0.0, %v2102
      %v2104 = vpop.f32.mrf.mxu0
      %v2105 = vadd.f32 0.0, %v2104
      %2106 = vmatmul.bf16.gmra.mxu0 %v616
      %v2107 = vpop.f32.mrf.mxu0
      %v2108 = vadd.f32 0.0, %v2107
      %v2109 = vpop.f32.mrf.mxu0
      %v2110 = vadd.f32 0.0, %v2109
      %2111 = vmatmul.bf16.gmra.mxu0 %v620
      %v2112 = vpop.f32.mrf.mxu0
      %v2113 = vadd.f32 0.0, %v2112
      %v2114 = vpop.f32.mrf.mxu0
      %v2115 = vadd.f32 0.0, %v2114
      %2116 = vmatmul.bf16.gmra.mxu0 %v624
      %v2117 = vpop.f32.mrf.mxu0
      %v2118 = vadd.f32 0.0, %v2117
      %v2119 = vpop.f32.mrf.mxu0
      %v2120 = vadd.f32 0.0, %v2119
      %2121 = vmatmul.bf16.gmra.mxu0 %v628
      %v2122 = vpop.f32.mrf.mxu0
      %v2123 = vadd.f32 0.0, %v2122
      %v2124 = vpop.f32.mrf.mxu0
      %v2125 = vadd.f32 0.0, %v2124
      %2126 = vmatmul.bf16.gmra.mxu0 %v632
      %v2127 = vpop.f32.mrf.mxu0
      %v2128 = vadd.f32 0.0, %v2127
      %v2129 = vpop.f32.mrf.mxu0
      %v2130 = vadd.f32 0.0, %v2129
      %2131 = vmatmul.bf16.gmra.mxu0 %v636
      %v2132 = vpop.f32.mrf.mxu0
      %v2133 = vadd.f32 0.0, %v2132
      %v2134 = vpop.f32.mrf.mxu0
      %v2135 = vadd.f32 0.0, %v2134
      %2136 = vmatmul.bf16.gmra.mxu0 %v640
      %v2137 = vpop.f32.mrf.mxu0
      %v2138 = vadd.f32 0.0, %v2137
      %v2139 = vpop.f32.mrf.mxu0
      %v2140 = vadd.f32 0.0, %v2139
      %2141 = vmatmul.bf16.gmra.mxu0 %v644
      %v2142 = vpop.f32.mrf.mxu0
      %v2143 = vadd.f32 0.0, %v2142
      %v2144 = vpop.f32.mrf.mxu0
      %v2145 = vadd.f32 0.0, %v2144
      %2146 = vmatmul.bf16.gmra.mxu0 %v648
      %v2147 = vpop.f32.mrf.mxu0
      %v2148 = vadd.f32 0.0, %v2147
      %v2149 = vpop.f32.mrf.mxu0
      %v2150 = vadd.f32 0.0, %v2149
      %2151 = vmatmul.bf16.gmra.mxu0 %v652
      %v2152 = vpop.f32.mrf.mxu0
      %v2153 = vadd.f32 0.0, %v2152
      %v2154 = vpop.f32.mrf.mxu0
      %v2155 = vadd.f32 0.0, %v2154
      %2156 = vmatmul.bf16.gmra.mxu0 %v656
      %v2157 = vpop.f32.mrf.mxu0
      %v2158 = vadd.f32 0.0, %v2157
      %v2159 = vpop.f32.mrf.mxu0
      %v2160 = vadd.f32 0.0, %v2159
      %2161 = vmatmul.bf16.gmra.mxu0 %v660
      %v2162 = vpop.f32.mrf.mxu0
      %v2163 = vadd.f32 0.0, %v2162
      %v2164 = vpop.f32.mrf.mxu0
      %v2165 = vadd.f32 0.0, %v2164
      %2166 = vmatmul.bf16.gmra.mxu0 %v664
      %v2167 = vpop.f32.mrf.mxu0
      %v2168 = vadd.f32 0.0, %v2167
      %v2169 = vpop.f32.mrf.mxu0
      %v2170 = vadd.f32 0.0, %v2169
      %2171 = vmatmul.bf16.gmra.mxu0 %v668
      %v2172 = vpop.f32.mrf.mxu0
      %v2173 = vadd.f32 0.0, %v2172
      %v2174 = vpop.f32.mrf.mxu0
      %v2175 = vadd.f32 0.0, %v2174
      %2176 = vdwg.mxu0
      %2177 = vmatpush.bf16.msra.mxu0 %v1182
      %2178 = vmatpush.bf16.msra.mxu0 %v1178
      %2179 = vmatpush.bf16.msra.mxu0 %v1174
      %2180 = vmatpush.bf16.msra.mxu0 %v1170
      %2181 = vmatpush.bf16.msra.mxu0 %v1166
      %2182 = vmatpush.bf16.msra.mxu0 %v1162
      %2183 = vmatpush.bf16.msra.mxu0 %v1158
      %2184 = vmatpush.bf16.msra.mxu0 %v1154
      %2185 = vmatmul.bf16.gmra.mxu0 %v609
      %v2186 = vpop.f32.mrf.mxu0
      %v2187 = vadd.f32 %v2098, %v2186
      %v2188 = vpop.f32.mrf.mxu0
      %v2189 = vadd.f32 %v2100, %v2188
      %2190 = vmatmul.bf16.gmra.mxu0 %v613
      %v2191 = vpop.f32.mrf.mxu0
      %v2192 = vadd.f32 %v2103, %v2191
      %v2193 = vpop.f32.mrf.mxu0
      %v2194 = vadd.f32 %v2105, %v2193
      %2195 = vmatmul.bf16.gmra.mxu0 %v617
      %v2196 = vpop.f32.mrf.mxu0
      %v2197 = vadd.f32 %v2108, %v2196
      %v2198 = vpop.f32.mrf.mxu0
      %v2199 = vadd.f32 %v2110, %v2198
      %2200 = vmatmul.bf16.gmra.mxu0 %v621
      %v2201 = vpop.f32.mrf.mxu0
      %v2202 = vadd.f32 %v2113, %v2201
      %v2203 = vpop.f32.mrf.mxu0
      %v2204 = vadd.f32 %v2115, %v2203
      %2205 = vmatmul.bf16.gmra.mxu0 %v625
      %v2206 = vpop.f32.mrf.mxu0
      %v2207 = vadd.f32 %v2118, %v2206
      %v2208 = vpop.f32.mrf.mxu0
      %v2209 = vadd.f32 %v2120, %v2208
      %2210 = vmatmul.bf16.gmra.mxu0 %v629
      %v2211 = vpop.f32.mrf.mxu0
      %v2212 = vadd.f32 %v2123, %v2211
      %v2213 = vpop.f32.mrf.mxu0
      %v2214 = vadd.f32 %v2125, %v2213
      %2215 = vmatmul.bf16.gmra.mxu0 %v633
      %v2216 = vpop.f32.mrf.mxu0
      %v2217 = vadd.f32 %v2128, %v2216
      %v2218 = vpop.f32.mrf.mxu0
      %v2219 = vadd.f32 %v2130, %v2218
      %2220 = vmatmul.bf16.gmra.mxu0 %v637
      %v2221 = vpop.f32.mrf.mxu0
      %v2222 = vadd.f32 %v2133, %v2221
      %v2223 = vpop.f32.mrf.mxu0
      %v2224 = vadd.f32 %v2135, %v2223
      %2225 = vmatmul.bf16.gmra.mxu0 %v641
      %v2226 = vpop.f32.mrf.mxu0
      %v2227 = vadd.f32 %v2138, %v2226
      %v2228 = vpop.f32.mrf.mxu0
      %v2229 = vadd.f32 %v2140, %v2228
      %2230 = vmatmul.bf16.gmra.mxu0 %v645
      %v2231 = vpop.f32.mrf.mxu0
      %v2232 = vadd.f32 %v2143, %v2231
      %v2233 = vpop.f32.mrf.mxu0
      %v2234 = vadd.f32 %v2145, %v2233
      %2235 = vmatmul.bf16.gmra.mxu0 %v649
      %v2236 = vpop.f32.mrf.mxu0
      %v2237 = vadd.f32 %v2148, %v2236
      %v2238 = vpop.f32.mrf.mxu0
      %v2239 = vadd.f32 %v2150, %v2238
      %2240 = vmatmul.bf16.gmra.mxu0 %v653
      %v2241 = vpop.f32.mrf.mxu0
      %v2242 = vadd.f32 %v2153, %v2241
      %v2243 = vpop.f32.mrf.mxu0
      %v2244 = vadd.f32 %v2155, %v2243
      %2245 = vmatmul.bf16.gmra.mxu0 %v657
      %v2246 = vpop.f32.mrf.mxu0
      %v2247 = vadd.f32 %v2158, %v2246
      %v2248 = vpop.f32.mrf.mxu0
      %v2249 = vadd.f32 %v2160, %v2248
      %2250 = vmatmul.bf16.gmra.mxu0 %v661
      %v2251 = vpop.f32.mrf.mxu0
      %v2252 = vadd.f32 %v2163, %v2251
      %v2253 = vpop.f32.mrf.mxu0
      %v2254 = vadd.f32 %v2165, %v2253
      %2255 = vmatmul.bf16.gmra.mxu0 %v665
      %v2256 = vpop.f32.mrf.mxu0
      %v2257 = vadd.f32 %v2168, %v2256
      %v2258 = vpop.f32.mrf.mxu0
      %v2259 = vadd.f32 %v2170, %v2258
      %2260 = vmatmul.bf16.gmra.mxu0 %v669
      %v2261 = vpop.f32.mrf.mxu0
      %v2262 = vadd.f32 %v2173, %v2261
      %v2263 = vpop.f32.mrf.mxu0
      %v2264 = vadd.f32 %v2175, %v2263
      %2265 = vdwg.mxu0
      %2266 = vmatpush.bf16.msra.mxu0 %v1214
      %2267 = vmatpush.bf16.msra.mxu0 %v1210
      %2268 = vmatpush.bf16.msra.mxu0 %v1206
      %2269 = vmatpush.bf16.msra.mxu0 %v1202
      %2270 = vmatpush.bf16.msra.mxu0 %v1198
      %2271 = vmatpush.bf16.msra.mxu0 %v1194
      %2272 = vmatpush.bf16.msra.mxu0 %v1190
      %2273 = vmatpush.bf16.msra.mxu0 %v1186
      %2274 = vmatmul.bf16.gmra.mxu0 %v610
      %v2275 = vpop.f32.mrf.mxu0
      %v2276 = vadd.f32 %v2187, %v2275
      %v2277 = vpop.f32.mrf.mxu0
      %v2278 = vadd.f32 %v2189, %v2277
      %2279 = vmatmul.bf16.gmra.mxu0 %v614
      %v2280 = vpop.f32.mrf.mxu0
      %v2281 = vadd.f32 %v2192, %v2280
      %v2282 = vpop.f32.mrf.mxu0
      %v2283 = vadd.f32 %v2194, %v2282
      %2284 = vmatmul.bf16.gmra.mxu0 %v618
      %v2285 = vpop.f32.mrf.mxu0
      %v2286 = vadd.f32 %v2197, %v2285
      %v2287 = vpop.f32.mrf.mxu0
      %v2288 = vadd.f32 %v2199, %v2287
      %2289 = vmatmul.bf16.gmra.mxu0 %v622
      %v2290 = vpop.f32.mrf.mxu0
      %v2291 = vadd.f32 %v2202, %v2290
      %v2292 = vpop.f32.mrf.mxu0
      %v2293 = vadd.f32 %v2204, %v2292
      %2294 = vmatmul.bf16.gmra.mxu0 %v626
      %v2295 = vpop.f32.mrf.mxu0
      %v2296 = vadd.f32 %v2207, %v2295
      %v2297 = vpop.f32.mrf.mxu0
      %v2298 = vadd.f32 %v2209, %v2297
      %2299 = vmatmul.bf16.gmra.mxu0 %v630
      %v2300 = vpop.f32.mrf.mxu0
      %v2301 = vadd.f32 %v2212, %v2300
      %v2302 = vpop.f32.mrf.mxu0
      %v2303 = vadd.f32 %v2214, %v2302
      %2304 = vmatmul.bf16.gmra.mxu0 %v634
      %v2305 = vpop.f32.mrf.mxu0
      %v2306 = vadd.f32 %v2217, %v2305
      %v2307 = vpop.f32.mrf.mxu0
      %v2308 = vadd.f32 %v2219, %v2307
      %2309 = vmatmul.bf16.gmra.mxu0 %v638
      %v2310 = vpop.f32.mrf.mxu0
      %v2311 = vadd.f32 %v2222, %v2310
      %v2312 = vpop.f32.mrf.mxu0
      %v2313 = vadd.f32 %v2224, %v2312
      %2314 = vmatmul.bf16.gmra.mxu0 %v642
      %v2315 = vpop.f32.mrf.mxu0
      %v2316 = vadd.f32 %v2227, %v2315
      %v2317 = vpop.f32.mrf.mxu0
      %v2318 = vadd.f32 %v2229, %v2317
      %2319 = vmatmul.bf16.gmra.mxu0 %v646
      %v2320 = vpop.f32.mrf.mxu0
      %v2321 = vadd.f32 %v2232, %v2320
      %v2322 = vpop.f32.mrf.mxu0
      %v2323 = vadd.f32 %v2234, %v2322
      %2324 = vmatmul.bf16.gmra.mxu0 %v650
      %v2325 = vpop.f32.mrf.mxu0
      %v2326 = vadd.f32 %v2237, %v2325
      %v2327 = vpop.f32.mrf.mxu0
      %v2328 = vadd.f32 %v2239, %v2327
      %2329 = vmatmul.bf16.gmra.mxu0 %v654
      %v2330 = vpop.f32.mrf.mxu0
      %v2331 = vadd.f32 %v2242, %v2330
      %v2332 = vpop.f32.mrf.mxu0
      %v2333 = vadd.f32 %v2244, %v2332
      %2334 = vmatmul.bf16.gmra.mxu0 %v658
      %v2335 = vpop.f32.mrf.mxu0
      %v2336 = vadd.f32 %v2247, %v2335
      %v2337 = vpop.f32.mrf.mxu0
      %v2338 = vadd.f32 %v2249, %v2337
      %2339 = vmatmul.bf16.gmra.mxu0 %v662
      %v2340 = vpop.f32.mrf.mxu0
      %v2341 = vadd.f32 %v2252, %v2340
      %v2342 = vpop.f32.mrf.mxu0
      %v2343 = vadd.f32 %v2254, %v2342
      %2344 = vmatmul.bf16.gmra.mxu0 %v666
      %v2345 = vpop.f32.mrf.mxu0
      %v2346 = vadd.f32 %v2257, %v2345
      %v2347 = vpop.f32.mrf.mxu0
      %v2348 = vadd.f32 %v2259, %v2347
      %2349 = vmatmul.bf16.gmra.mxu0 %v670
      %v2350 = vpop.f32.mrf.mxu0
      %v2351 = vadd.f32 %v2262, %v2350
      %v2352 = vpop.f32.mrf.mxu0
      %v2353 = vadd.f32 %v2264, %v2352
      %2354 = vdwg.mxu0
      %2355 = vmatpush.bf16.msra.mxu0 %v1246
      %2356 = vmatpush.bf16.msra.mxu0 %v1242
      %2357 = vmatpush.bf16.msra.mxu0 %v1238
      %2358 = vmatpush.bf16.msra.mxu0 %v1234
      %2359 = vmatpush.bf16.msra.mxu0 %v1230
      %2360 = vmatpush.bf16.msra.mxu0 %v1226
      %2361 = vmatpush.bf16.msra.mxu0 %v1222
      %2362 = vmatpush.bf16.msra.mxu0 %v1218
      %2363 = vmatmul.bf16.gmra.mxu0 %v611
      %v2364 = vpop.f32.mrf.mxu0
      %v2365 = vadd.f32 %v2276, %v2364
      %v2366 = vpop.f32.mrf.mxu0
      %v2367 = vadd.f32 %v2278, %v2366
      %2368 = vmatmul.bf16.gmra.mxu0 %v615
      %v2369 = vpop.f32.mrf.mxu0
      %v2370 = vadd.f32 %v2281, %v2369
      %v2371 = vpop.f32.mrf.mxu0
      %v2372 = vadd.f32 %v2283, %v2371
      %2373 = vmatmul.bf16.gmra.mxu0 %v619
      %v2374 = vpop.f32.mrf.mxu0
      %v2375 = vadd.f32 %v2286, %v2374
      %v2376 = vpop.f32.mrf.mxu0
      %v2377 = vadd.f32 %v2288, %v2376
      %2378 = vmatmul.bf16.gmra.mxu0 %v623
      %v2379 = vpop.f32.mrf.mxu0
      %v2380 = vadd.f32 %v2291, %v2379
      %v2381 = vpop.f32.mrf.mxu0
      %v2382 = vadd.f32 %v2293, %v2381
      %2383 = vmatmul.bf16.gmra.mxu0 %v627
      %v2384 = vpop.f32.mrf.mxu0
      %v2385 = vadd.f32 %v2296, %v2384
      %v2386 = vpop.f32.mrf.mxu0
      %v2387 = vadd.f32 %v2298, %v2386
      %2388 = vmatmul.bf16.gmra.mxu0 %v631
      %v2389 = vpop.f32.mrf.mxu0
      %v2390 = vadd.f32 %v2301, %v2389
      %v2391 = vpop.f32.mrf.mxu0
      %v2392 = vadd.f32 %v2303, %v2391
      %2393 = vmatmul.bf16.gmra.mxu0 %v635
      %v2394 = vpop.f32.mrf.mxu0
      %v2395 = vadd.f32 %v2306, %v2394
      %v2396 = vpop.f32.mrf.mxu0
      %v2397 = vadd.f32 %v2308, %v2396
      %2398 = vmatmul.bf16.gmra.mxu0 %v639
      %v2399 = vpop.f32.mrf.mxu0
      %v2400 = vadd.f32 %v2311, %v2399
      %v2401 = vpop.f32.mrf.mxu0
      %v2402 = vadd.f32 %v2313, %v2401
      %2403 = vmatmul.bf16.gmra.mxu0 %v643
      %v2404 = vpop.f32.mrf.mxu0
      %v2405 = vadd.f32 %v2316, %v2404
      %v2406 = vpop.f32.mrf.mxu0
      %v2407 = vadd.f32 %v2318, %v2406
      %2408 = vmatmul.bf16.gmra.mxu0 %v647
      %v2409 = vpop.f32.mrf.mxu0
      %v2410 = vadd.f32 %v2321, %v2409
      %v2411 = vpop.f32.mrf.mxu0
      %v2412 = vadd.f32 %v2323, %v2411
      %2413 = vmatmul.bf16.gmra.mxu0 %v651
      %v2414 = vpop.f32.mrf.mxu0
      %v2415 = vadd.f32 %v2326, %v2414
      %v2416 = vpop.f32.mrf.mxu0
      %v2417 = vadd.f32 %v2328, %v2416
      %2418 = vmatmul.bf16.gmra.mxu0 %v655
      %v2419 = vpop.f32.mrf.mxu0
      %v2420 = vadd.f32 %v2331, %v2419
      %v2421 = vpop.f32.mrf.mxu0
      %v2422 = vadd.f32 %v2333, %v2421
      %2423 = vmatmul.bf16.gmra.mxu0 %v659
      %v2424 = vpop.f32.mrf.mxu0
      %v2425 = vadd.f32 %v2336, %v2424
      %v2426 = vpop.f32.mrf.mxu0
      %v2427 = vadd.f32 %v2338, %v2426
      %2428 = vmatmul.bf16.gmra.mxu0 %v663
      %v2429 = vpop.f32.mrf.mxu0
      %v2430 = vadd.f32 %v2341, %v2429
      %v2431 = vpop.f32.mrf.mxu0
      %v2432 = vadd.f32 %v2343, %v2431
      %2433 = vmatmul.bf16.gmra.mxu0 %v667
      %v2434 = vpop.f32.mrf.mxu0
      %v2435 = vadd.f32 %v2346, %v2434
      %v2436 = vpop.f32.mrf.mxu0
      %v2437 = vadd.f32 %v2348, %v2436
      %2438 = vmatmul.bf16.gmra.mxu0 %v671
      %v2439 = vpop.f32.mrf.mxu0
      %v2440 = vadd.f32 %v2351, %v2439
      %v2441 = vpop.f32.mrf.mxu0
      %v2442 = vadd.f32 %v2353, %v2441
      %2443 = vdwg.mxu0
      %2444 = vmatpush.bf16.msra.mxu0 %v1151
      %2445 = vmatpush.bf16.msra.mxu0 %v1147
      %2446 = vmatpush.bf16.msra.mxu0 %v1143
      %2447 = vmatpush.bf16.msra.mxu0 %v1139
      %2448 = vmatpush.bf16.msra.mxu0 %v1135
      %2449 = vmatpush.bf16.msra.mxu0 %v1131
      %2450 = vmatpush.bf16.msra.mxu0 %v1127
      %2451 = vmatpush.bf16.msra.mxu0 %v1123
      %2452 = vmatmul.bf16.gmra.mxu0 %v608
      %v2453 = vpop.f32.mrf.mxu0
      %v2454 = vadd.f32 0.0, %v2453
      %v2455 = vpop.f32.mrf.mxu0
      %v2456 = vadd.f32 0.0, %v2455
      %2457 = vmatmul.bf16.gmra.mxu0 %v612
      %v2458 = vpop.f32.mrf.mxu0
      %v2459 = vadd.f32 0.0, %v2458
      %v2460 = vpop.f32.mrf.mxu0
      %v2461 = vadd.f32 0.0, %v2460
      %2462 = vmatmul.bf16.gmra.mxu0 %v616
      %v2463 = vpop.f32.mrf.mxu0
      %v2464 = vadd.f32 0.0, %v2463
      %v2465 = vpop.f32.mrf.mxu0
      %v2466 = vadd.f32 0.0, %v2465
      %2467 = vmatmul.bf16.gmra.mxu0 %v620
      %v2468 = vpop.f32.mrf.mxu0
      %v2469 = vadd.f32 0.0, %v2468
      %v2470 = vpop.f32.mrf.mxu0
      %v2471 = vadd.f32 0.0, %v2470
      %2472 = vmatmul.bf16.gmra.mxu0 %v624
      %v2473 = vpop.f32.mrf.mxu0
      %v2474 = vadd.f32 0.0, %v2473
      %v2475 = vpop.f32.mrf.mxu0
      %v2476 = vadd.f32 0.0, %v2475
      %2477 = vmatmul.bf16.gmra.mxu0 %v628
      %v2478 = vpop.f32.mrf.mxu0
      %v2479 = vadd.f32 0.0, %v2478
      %v2480 = vpop.f32.mrf.mxu0
      %v2481 = vadd.f32 0.0, %v2480
      %2482 = vmatmul.bf16.gmra.mxu0 %v632
      %v2483 = vpop.f32.mrf.mxu0
      %v2484 = vadd.f32 0.0, %v2483
      %v2485 = vpop.f32.mrf.mxu0
      %v2486 = vadd.f32 0.0, %v2485
      %2487 = vmatmul.bf16.gmra.mxu0 %v636
      %v2488 = vpop.f32.mrf.mxu0
      %v2489 = vadd.f32 0.0, %v2488
      %v2490 = vpop.f32.mrf.mxu0
      %v2491 = vadd.f32 0.0, %v2490
      %2492 = vmatmul.bf16.gmra.mxu0 %v640
      %v2493 = vpop.f32.mrf.mxu0
      %v2494 = vadd.f32 0.0, %v2493
      %v2495 = vpop.f32.mrf.mxu0
      %v2496 = vadd.f32 0.0, %v2495
      %2497 = vmatmul.bf16.gmra.mxu0 %v644
      %v2498 = vpop.f32.mrf.mxu0
      %v2499 = vadd.f32 0.0, %v2498
      %v2500 = vpop.f32.mrf.mxu0
      %v2501 = vadd.f32 0.0, %v2500
      %2502 = vmatmul.bf16.gmra.mxu0 %v648
      %v2503 = vpop.f32.mrf.mxu0
      %v2504 = vadd.f32 0.0, %v2503
      %v2505 = vpop.f32.mrf.mxu0
      %v2506 = vadd.f32 0.0, %v2505
      %2507 = vmatmul.bf16.gmra.mxu0 %v652
      %v2508 = vpop.f32.mrf.mxu0
      %v2509 = vadd.f32 0.0, %v2508
      %v2510 = vpop.f32.mrf.mxu0
      %v2511 = vadd.f32 0.0, %v2510
      %2512 = vmatmul.bf16.gmra.mxu0 %v656
      %v2513 = vpop.f32.mrf.mxu0
      %v2514 = vadd.f32 0.0, %v2513
      %v2515 = vpop.f32.mrf.mxu0
      %v2516 = vadd.f32 0.0, %v2515
      %2517 = vmatmul.bf16.gmra.mxu0 %v660
      %v2518 = vpop.f32.mrf.mxu0
      %v2519 = vadd.f32 0.0, %v2518
      %v2520 = vpop.f32.mrf.mxu0
      %v2521 = vadd.f32 0.0, %v2520
      %2522 = vmatmul.bf16.gmra.mxu0 %v664
      %v2523 = vpop.f32.mrf.mxu0
      %v2524 = vadd.f32 0.0, %v2523
      %v2525 = vpop.f32.mrf.mxu0
      %v2526 = vadd.f32 0.0, %v2525
      %2527 = vmatmul.bf16.gmra.mxu0 %v668
      %v2528 = vpop.f32.mrf.mxu0
      %v2529 = vadd.f32 0.0, %v2528
      %v2530 = vpop.f32.mrf.mxu0
      %v2531 = vadd.f32 0.0, %v2530
      %2532 = vdwg.mxu0
      %2533 = vmatpush.bf16.msra.mxu0 %v1183
      %2534 = vmatpush.bf16.msra.mxu0 %v1179
      %2535 = vmatpush.bf16.msra.mxu0 %v1175
      %2536 = vmatpush.bf16.msra.mxu0 %v1171
      %2537 = vmatpush.bf16.msra.mxu0 %v1167
      %2538 = vmatpush.bf16.msra.mxu0 %v1163
      %2539 = vmatpush.bf16.msra.mxu0 %v1159
      %2540 = vmatpush.bf16.msra.mxu0 %v1155
      %2541 = vmatmul.bf16.gmra.mxu0 %v609
      %v2542 = vpop.f32.mrf.mxu0
      %v2543 = vadd.f32 %v2454, %v2542
      %v2544 = vpop.f32.mrf.mxu0
      %v2545 = vadd.f32 %v2456, %v2544
      %2546 = vmatmul.bf16.gmra.mxu0 %v613
      %v2547 = vpop.f32.mrf.mxu0
      %v2548 = vadd.f32 %v2459, %v2547
      %v2549 = vpop.f32.mrf.mxu0
      %v2550 = vadd.f32 %v2461, %v2549
      %2551 = vmatmul.bf16.gmra.mxu0 %v617
      %v2552 = vpop.f32.mrf.mxu0
      %v2553 = vadd.f32 %v2464, %v2552
      %v2554 = vpop.f32.mrf.mxu0
      %v2555 = vadd.f32 %v2466, %v2554
      %2556 = vmatmul.bf16.gmra.mxu0 %v621
      %v2557 = vpop.f32.mrf.mxu0
      %v2558 = vadd.f32 %v2469, %v2557
      %v2559 = vpop.f32.mrf.mxu0
      %v2560 = vadd.f32 %v2471, %v2559
      %2561 = vmatmul.bf16.gmra.mxu0 %v625
      %v2562 = vpop.f32.mrf.mxu0
      %v2563 = vadd.f32 %v2474, %v2562
      %v2564 = vpop.f32.mrf.mxu0
      %v2565 = vadd.f32 %v2476, %v2564
      %2566 = vmatmul.bf16.gmra.mxu0 %v629
      %v2567 = vpop.f32.mrf.mxu0
      %v2568 = vadd.f32 %v2479, %v2567
      %v2569 = vpop.f32.mrf.mxu0
      %v2570 = vadd.f32 %v2481, %v2569
      %2571 = vmatmul.bf16.gmra.mxu0 %v633
      %v2572 = vpop.f32.mrf.mxu0
      %v2573 = vadd.f32 %v2484, %v2572
      %v2574 = vpop.f32.mrf.mxu0
      %v2575 = vadd.f32 %v2486, %v2574
      %2576 = vmatmul.bf16.gmra.mxu0 %v637
      %v2577 = vpop.f32.mrf.mxu0
      %v2578 = vadd.f32 %v2489, %v2577
      %v2579 = vpop.f32.mrf.mxu0
      %v2580 = vadd.f32 %v2491, %v2579
      %2581 = vmatmul.bf16.gmra.mxu0 %v641
      %v2582 = vpop.f32.mrf.mxu0
      %v2583 = vadd.f32 %v2494, %v2582
      %v2584 = vpop.f32.mrf.mxu0
      %v2585 = vadd.f32 %v2496, %v2584
      %2586 = vmatmul.bf16.gmra.mxu0 %v645
      %v2587 = vpop.f32.mrf.mxu0
      %v2588 = vadd.f32 %v2499, %v2587
      %v2589 = vpop.f32.mrf.mxu0
      %v2590 = vadd.f32 %v2501, %v2589
      %2591 = vmatmul.bf16.gmra.mxu0 %v649
      %v2592 = vpop.f32.mrf.mxu0
      %v2593 = vadd.f32 %v2504, %v2592
      %v2594 = vpop.f32.mrf.mxu0
      %v2595 = vadd.f32 %v2506, %v2594
      %2596 = vmatmul.bf16.gmra.mxu0 %v653
      %v2597 = vpop.f32.mrf.mxu0
      %v2598 = vadd.f32 %v2509, %v2597
      %v2599 = vpop.f32.mrf.mxu0
      %v2600 = vadd.f32 %v2511, %v2599
      %2601 = vmatmul.bf16.gmra.mxu0 %v657
      %v2602 = vpop.f32.mrf.mxu0
      %v2603 = vadd.f32 %v2514, %v2602
      %v2604 = vpop.f32.mrf.mxu0
      %v2605 = vadd.f32 %v2516, %v2604
      %2606 = vmatmul.bf16.gmra.mxu0 %v661
      %v2607 = vpop.f32.mrf.mxu0
      %v2608 = vadd.f32 %v2519, %v2607
      %v2609 = vpop.f32.mrf.mxu0
      %v2610 = vadd.f32 %v2521, %v2609
      %2611 = vmatmul.bf16.gmra.mxu0 %v665
      %v2612 = vpop.f32.mrf.mxu0
      %v2613 = vadd.f32 %v2524, %v2612
      %v2614 = vpop.f32.mrf.mxu0
      %v2615 = vadd.f32 %v2526, %v2614
      %2616 = vmatmul.bf16.gmra.mxu0 %v669
      %v2617 = vpop.f32.mrf.mxu0
      %v2618 = vadd.f32 %v2529, %v2617
      %v2619 = vpop.f32.mrf.mxu0
      %v2620 = vadd.f32 %v2531, %v2619
      %2621 = vdwg.mxu0
      %2622 = vmatpush.bf16.msra.mxu0 %v1215
      %2623 = vmatpush.bf16.msra.mxu0 %v1211
      %2624 = vmatpush.bf16.msra.mxu0 %v1207
      %2625 = vmatpush.bf16.msra.mxu0 %v1203
      %2626 = vmatpush.bf16.msra.mxu0 %v1199
      %2627 = vmatpush.bf16.msra.mxu0 %v1195
      %2628 = vmatpush.bf16.msra.mxu0 %v1191
      %2629 = vmatpush.bf16.msra.mxu0 %v1187
      %2630 = vmatmul.bf16.gmra.mxu0 %v610
      %v2631 = vpop.f32.mrf.mxu0
      %v2632 = vadd.f32 %v2543, %v2631
      %v2633 = vpop.f32.mrf.mxu0
      %v2634 = vadd.f32 %v2545, %v2633
      %2635 = vmatmul.bf16.gmra.mxu0 %v614
      %v2636 = vpop.f32.mrf.mxu0
      %v2637 = vadd.f32 %v2548, %v2636
      %v2638 = vpop.f32.mrf.mxu0
      %v2639 = vadd.f32 %v2550, %v2638
      %2640 = vmatmul.bf16.gmra.mxu0 %v618
      %v2641 = vpop.f32.mrf.mxu0
      %v2642 = vadd.f32 %v2553, %v2641
      %v2643 = vpop.f32.mrf.mxu0
      %v2644 = vadd.f32 %v2555, %v2643
      %2645 = vmatmul.bf16.gmra.mxu0 %v622
      %v2646 = vpop.f32.mrf.mxu0
      %v2647 = vadd.f32 %v2558, %v2646
      %v2648 = vpop.f32.mrf.mxu0
      %v2649 = vadd.f32 %v2560, %v2648
      %2650 = vmatmul.bf16.gmra.mxu0 %v626
      %v2651 = vpop.f32.mrf.mxu0
      %v2652 = vadd.f32 %v2563, %v2651
      %v2653 = vpop.f32.mrf.mxu0
      %v2654 = vadd.f32 %v2565, %v2653
      %2655 = vmatmul.bf16.gmra.mxu0 %v630
      %v2656 = vpop.f32.mrf.mxu0
      %v2657 = vadd.f32 %v2568, %v2656
      %v2658 = vpop.f32.mrf.mxu0
      %v2659 = vadd.f32 %v2570, %v2658
      %2660 = vmatmul.bf16.gmra.mxu0 %v634
      %v2661 = vpop.f32.mrf.mxu0
      %v2662 = vadd.f32 %v2573, %v2661
      %v2663 = vpop.f32.mrf.mxu0
      %v2664 = vadd.f32 %v2575, %v2663
      %2665 = vmatmul.bf16.gmra.mxu0 %v638
      %v2666 = vpop.f32.mrf.mxu0
      %v2667 = vadd.f32 %v2578, %v2666
      %v2668 = vpop.f32.mrf.mxu0
      %v2669 = vadd.f32 %v2580, %v2668
      %2670 = vmatmul.bf16.gmra.mxu0 %v642
      %v2671 = vpop.f32.mrf.mxu0
      %v2672 = vadd.f32 %v2583, %v2671
      %v2673 = vpop.f32.mrf.mxu0
      %v2674 = vadd.f32 %v2585, %v2673
      %2675 = vmatmul.bf16.gmra.mxu0 %v646
      %v2676 = vpop.f32.mrf.mxu0
      %v2677 = vadd.f32 %v2588, %v2676
      %v2678 = vpop.f32.mrf.mxu0
      %v2679 = vadd.f32 %v2590, %v2678
      %2680 = vmatmul.bf16.gmra.mxu0 %v650
      %v2681 = vpop.f32.mrf.mxu0
      %v2682 = vadd.f32 %v2593, %v2681
      %v2683 = vpop.f32.mrf.mxu0
      %v2684 = vadd.f32 %v2595, %v2683
      %2685 = vmatmul.bf16.gmra.mxu0 %v654
      %v2686 = vpop.f32.mrf.mxu0
      %v2687 = vadd.f32 %v2598, %v2686
      %v2688 = vpop.f32.mrf.mxu0
      %v2689 = vadd.f32 %v2600, %v2688
      %2690 = vmatmul.bf16.gmra.mxu0 %v658
      %v2691 = vpop.f32.mrf.mxu0
      %v2692 = vadd.f32 %v2603, %v2691
      %v2693 = vpop.f32.mrf.mxu0
      %v2694 = vadd.f32 %v2605, %v2693
      %2695 = vmatmul.bf16.gmra.mxu0 %v662
      %v2696 = vpop.f32.mrf.mxu0
      %v2697 = vadd.f32 %v2608, %v2696
      %v2698 = vpop.f32.mrf.mxu0
      %v2699 = vadd.f32 %v2610, %v2698
      %2700 = vmatmul.bf16.gmra.mxu0 %v666
      %v2701 = vpop.f32.mrf.mxu0
      %v2702 = vadd.f32 %v2613, %v2701
      %v2703 = vpop.f32.mrf.mxu0
      %v2704 = vadd.f32 %v2615, %v2703
      %2705 = vmatmul.bf16.gmra.mxu0 %v670
      %v2706 = vpop.f32.mrf.mxu0
      %v2707 = vadd.f32 %v2618, %v2706
      %v2708 = vpop.f32.mrf.mxu0
      %v2709 = vadd.f32 %v2620, %v2708
      %2710 = vdwg.mxu0
      %2711 = vmatpush.bf16.msra.mxu0 %v1247
      %2712 = vmatpush.bf16.msra.mxu0 %v1243
      %2713 = vmatpush.bf16.msra.mxu0 %v1239
      %2714 = vmatpush.bf16.msra.mxu0 %v1235
      %2715 = vmatpush.bf16.msra.mxu0 %v1231
      %2716 = vmatpush.bf16.msra.mxu0 %v1227
      %2717 = vmatpush.bf16.msra.mxu0 %v1223
      %2718 = vmatpush.bf16.msra.mxu0 %v1219
      %2719 = vmatmul.bf16.gmra.mxu0 %v611
      %v2720 = vpop.f32.mrf.mxu0
      %v2721 = vadd.f32 %v2632, %v2720
      %v2722 = vpop.f32.mrf.mxu0
      %v2723 = vadd.f32 %v2634, %v2722
      %2724 = vmatmul.bf16.gmra.mxu0 %v615
      %v2725 = vpop.f32.mrf.mxu0
      %v2726 = vadd.f32 %v2637, %v2725
      %v2727 = vpop.f32.mrf.mxu0
      %v2728 = vadd.f32 %v2639, %v2727
      %2729 = vmatmul.bf16.gmra.mxu0 %v619
      %v2730 = vpop.f32.mrf.mxu0
      %v2731 = vadd.f32 %v2642, %v2730
      %v2732 = vpop.f32.mrf.mxu0
      %v2733 = vadd.f32 %v2644, %v2732
      %2734 = vmatmul.bf16.gmra.mxu0 %v623
      %v2735 = vpop.f32.mrf.mxu0
      %v2736 = vadd.f32 %v2647, %v2735
      %v2737 = vpop.f32.mrf.mxu0
      %v2738 = vadd.f32 %v2649, %v2737
      %2739 = vmatmul.bf16.gmra.mxu0 %v627
      %v2740 = vpop.f32.mrf.mxu0
      %v2741 = vadd.f32 %v2652, %v2740
      %v2742 = vpop.f32.mrf.mxu0
      %v2743 = vadd.f32 %v2654, %v2742
      %2744 = vmatmul.bf16.gmra.mxu0 %v631
      %v2745 = vpop.f32.mrf.mxu0
      %v2746 = vadd.f32 %v2657, %v2745
      %v2747 = vpop.f32.mrf.mxu0
      %v2748 = vadd.f32 %v2659, %v2747
      %2749 = vmatmul.bf16.gmra.mxu0 %v635
      %v2750 = vpop.f32.mrf.mxu0
      %v2751 = vadd.f32 %v2662, %v2750
      %v2752 = vpop.f32.mrf.mxu0
      %v2753 = vadd.f32 %v2664, %v2752
      %2754 = vmatmul.bf16.gmra.mxu0 %v639
      %v2755 = vpop.f32.mrf.mxu0
      %v2756 = vadd.f32 %v2667, %v2755
      %v2757 = vpop.f32.mrf.mxu0
      %v2758 = vadd.f32 %v2669, %v2757
      %2759 = vmatmul.bf16.gmra.mxu0 %v643
      %v2760 = vpop.f32.mrf.mxu0
      %v2761 = vadd.f32 %v2672, %v2760
      %v2762 = vpop.f32.mrf.mxu0
      %v2763 = vadd.f32 %v2674, %v2762
      %2764 = vmatmul.bf16.gmra.mxu0 %v647
      %v2765 = vpop.f32.mrf.mxu0
      %v2766 = vadd.f32 %v2677, %v2765
      %v2767 = vpop.f32.mrf.mxu0
      %v2768 = vadd.f32 %v2679, %v2767
      %2769 = vmatmul.bf16.gmra.mxu0 %v651
      %v2770 = vpop.f32.mrf.mxu0
      %v2771 = vadd.f32 %v2682, %v2770
      %v2772 = vpop.f32.mrf.mxu0
      %v2773 = vadd.f32 %v2684, %v2772
      %2774 = vmatmul.bf16.gmra.mxu0 %v655
      %v2775 = vpop.f32.mrf.mxu0
      %v2776 = vadd.f32 %v2687, %v2775
      %v2777 = vpop.f32.mrf.mxu0
      %v2778 = vadd.f32 %v2689, %v2777
      %2779 = vmatmul.bf16.gmra.mxu0 %v659
      %v2780 = vpop.f32.mrf.mxu0
      %v2781 = vadd.f32 %v2692, %v2780
      %v2782 = vpop.f32.mrf.mxu0
      %v2783 = vadd.f32 %v2694, %v2782
      %2784 = vmatmul.bf16.gmra.mxu0 %v663
      %v2785 = vpop.f32.mrf.mxu0
      %v2786 = vadd.f32 %v2697, %v2785
      %v2787 = vpop.f32.mrf.mxu0
      %v2788 = vadd.f32 %v2699, %v2787
      %2789 = vmatmul.bf16.gmra.mxu0 %v667
      %v2790 = vpop.f32.mrf.mxu0
      %v2791 = vadd.f32 %v2702, %v2790
      %v2792 = vpop.f32.mrf.mxu0
      %v2793 = vadd.f32 %v2704, %v2792
      %2794 = vmatmul.bf16.gmra.mxu0 %v671
      %v2795 = vpop.f32.mrf.mxu0
      %v2796 = vadd.f32 %v2707, %v2795
      %v2797 = vpop.f32.mrf.mxu0
      %v2798 = vadd.f32 %v2709, %v2797
      %2799 = vdwg.mxu0
      %v2800 = vrot.slane %v2365, 7
      %v2801 = vrot.slane %v2721, 7
      %v2802 = vrot.slane %v2367, 7
      %v2803 = vrot.slane %v2723, 7
      %v2804 = vrot.slane %v2370, 7
      %v2805 = vrot.slane %v2726, 7
      %v2806 = vrot.slane %v2372, 7
      %v2807 = vrot.slane %v2728, 7
      %v2808 = vrot.slane %v2375, 7
      %v2809 = vrot.slane %v2731, 7
      %v2810 = vrot.slane %v2377, 7
      %v2811 = vrot.slane %v2733, 7
      %v2812 = vrot.slane %v2380, 7
      %v2813 = vrot.slane %v2736, 7
      %v2814 = vrot.slane %v2382, 7
      %v2815 = vrot.slane %v2738, 7
      %v2816 = vrot.slane %v2385, 7
      %v2817 = vrot.slane %v2741, 7
      %v2818 = vrot.slane %v2387, 7
      %v2819 = vrot.slane %v2743, 7
      %v2820 = vrot.slane %v2390, 7
      %v2821 = vrot.slane %v2746, 7
      %v2822 = vrot.slane %v2392, 7
      %v2823 = vrot.slane %v2748, 7
      %v2824 = vrot.slane %v2395, 7
      %v2825 = vrot.slane %v2751, 7
      %v2826 = vrot.slane %v2397, 7
      %v2827 = vrot.slane %v2753, 7
      %v2828 = vrot.slane %v2400, 7
      %v2829 = vrot.slane %v2756, 7
      %v2830 = vrot.slane %v2402, 7
      %v2831 = vrot.slane %v2758, 7
      %v2832 = vrot.slane %v2405, 7
      %v2833 = vrot.slane %v2761, 7
      %v2834 = vrot.slane %v2407, 7
      %v2835 = vrot.slane %v2763, 7
      %v2836 = vrot.slane %v2410, 7
      %v2837 = vrot.slane %v2766, 7
      %v2838 = vrot.slane %v2412, 7
      %v2839 = vrot.slane %v2768, 7
      %v2840 = vrot.slane %v2415, 7
      %v2841 = vrot.slane %v2771, 7
      %v2842 = vrot.slane %v2417, 7
      %v2843 = vrot.slane %v2773, 7
      %v2844 = vrot.slane %v2420, 7
      %v2845 = vrot.slane %v2776, 7
      %v2846 = vrot.slane %v2422, 7
      %v2847 = vrot.slane %v2778, 7
      %v2848 = vrot.slane %v2425, 7
      %v2849 = vrot.slane %v2781, 7
      %v2850 = vrot.slane %v2427, 7
      %v2851 = vrot.slane %v2783, 7
      %v2852 = vrot.slane %v2430, 7
      %v2853 = vrot.slane %v2786, 7
      %v2854 = vrot.slane %v2432, 7
      %v2855 = vrot.slane %v2788, 7
      %v2856 = vrot.slane %v2435, 7
      %v2857 = vrot.slane %v2791, 7
      %v2858 = vrot.slane %v2437, 7
      %v2859 = vrot.slane %v2793, 7
      %v2860 = vrot.slane %v2440, 7
      %v2861 = vrot.slane %v2796, 7
      %v2862 = vrot.slane %v2442, 7
      %v2863 = vrot.slane %v2798, 7
      %v2864 = vlaneseq
      %v2865 = vshrl.u32 %v2864, 7
      %vm2866 = vcmp.lt.s32.totalorder %v2865, 1
      %v2867 = vsel %vm2866, %v2860, %v2862
      %v2868 = vsel %vm2866, %v2861, %v2863
      %v2869 = vsel %vm2866, %v2858, %v2860
      %v2870 = vsel %vm2866, %v2859, %v2861
      %v2871 = vsel %vm2866, %v2856, %v2858
      %v2872 = vsel %vm2866, %v2857, %v2859
      %v2873 = vsel %vm2866, %v2854, %v2856
      %v2874 = vsel %vm2866, %v2855, %v2857
      %v2875 = vsel %vm2866, %v2852, %v2854
      %v2876 = vsel %vm2866, %v2853, %v2855
      %v2877 = vsel %vm2866, %v2850, %v2852
      %v2878 = vsel %vm2866, %v2851, %v2853
      %v2879 = vsel %vm2866, %v2848, %v2850
      %v2880 = vsel %vm2866, %v2849, %v2851
      %v2881 = vsel %vm2866, %v2846, %v2848
      %v2882 = vsel %vm2866, %v2847, %v2849
      %v2883 = vsel %vm2866, %v2844, %v2846
      %v2884 = vsel %vm2866, %v2845, %v2847
      %v2885 = vsel %vm2866, %v2842, %v2844
      %v2886 = vsel %vm2866, %v2843, %v2845
      %v2887 = vsel %vm2866, %v2840, %v2842
      %v2888 = vsel %vm2866, %v2841, %v2843
      %v2889 = vsel %vm2866, %v2838, %v2840
      %v2890 = vsel %vm2866, %v2839, %v2841
      %v2891 = vsel %vm2866, %v2836, %v2838
      %v2892 = vsel %vm2866, %v2837, %v2839
      %v2893 = vsel %vm2866, %v2834, %v2836
      %v2894 = vsel %vm2866, %v2835, %v2837
      %v2895 = vsel %vm2866, %v2832, %v2834
      %v2896 = vsel %vm2866, %v2833, %v2835
      %v2897 = vsel %vm2866, %v2830, %v2832
      %v2898 = vsel %vm2866, %v2831, %v2833
      %v2899 = vsel %vm2866, %v2828, %v2830
      %v2900 = vsel %vm2866, %v2829, %v2831
      %v2901 = vsel %vm2866, %v2826, %v2828
      %v2902 = vsel %vm2866, %v2827, %v2829
      %v2903 = vsel %vm2866, %v2824, %v2826
      %v2904 = vsel %vm2866, %v2825, %v2827
      %v2905 = vsel %vm2866, %v2822, %v2824
      %v2906 = vsel %vm2866, %v2823, %v2825
      %v2907 = vsel %vm2866, %v2820, %v2822
      %v2908 = vsel %vm2866, %v2821, %v2823
      %v2909 = vsel %vm2866, %v2818, %v2820
      %v2910 = vsel %vm2866, %v2819, %v2821
      %v2911 = vsel %vm2866, %v2816, %v2818
      %v2912 = vsel %vm2866, %v2817, %v2819
      %v2913 = vsel %vm2866, %v2814, %v2816
      %v2914 = vsel %vm2866, %v2815, %v2817
      %v2915 = vsel %vm2866, %v2812, %v2814
      %v2916 = vsel %vm2866, %v2813, %v2815
      %v2917 = vsel %vm2866, %v2810, %v2812
      %v2918 = vsel %vm2866, %v2811, %v2813
      %v2919 = vsel %vm2866, %v2808, %v2810
      %v2920 = vsel %vm2866, %v2809, %v2811
      %v2921 = vsel %vm2866, %v2806, %v2808
      %v2922 = vsel %vm2866, %v2807, %v2809
      %v2923 = vsel %vm2866, %v2804, %v2806
      %v2924 = vsel %vm2866, %v2805, %v2807
      %v2925 = vsel %vm2866, %v2802, %v2804
      %v2926 = vsel %vm2866, %v2803, %v2805
      %v2927 = vsel %vm2866, %v2800, %v2802
      %v2928 = vsel %vm2866, %v2801, %v2803
      %v2929 = vsel %vm2866, %v2862, %v2800
      %v2930 = vsel %vm2866, %v2863, %v2801
      %v2931 = vadd.s32 %v2865, 8
      %v2932 = vadd.s32 %v2865, 16
      %v2933 = vadd.s32 %v2865, 24
      %v2934 = vadd.s32 %v2865, 32
      %v2935 = vadd.s32 %v2865, 40
      %v2936 = vadd.s32 %v2865, 48
      %v2937 = vadd.s32 %v2865, 56
      %v2938 = vadd.s32 %v2865, 64
      %v2939 = vadd.s32 %v2865, 72
      %v2940 = vadd.s32 %v2865, 80
      %v2941 = vadd.s32 %v2865, 88
      %v2942 = vadd.s32 %v2865, 96
      %v2943 = vadd.s32 %v2865, 104
      %v2944 = vadd.s32 %v2865, 112
      %v2945 = vadd.s32 %v2865, 120
      %v2946 = vadd.s32 %v2865, 128
      %v2947 = vadd.s32 %v2865, 136
      %v2948 = vadd.s32 %v2865, 144
      %v2949 = vadd.s32 %v2865, 152
      %v2950 = vadd.s32 %v2865, 160
      %v2951 = vadd.s32 %v2865, 168
      %v2952 = vadd.s32 %v2865, 176
      %v2953 = vadd.s32 %v2865, 184
      %v2954 = vadd.s32 %v2865, 192
      %v2955 = vadd.s32 %v2865, 200
      %v2956 = vadd.s32 %v2865, 208
      %v2957 = vadd.s32 %v2865, 216
      %v2958 = vadd.s32 %v2865, 224
      %v2959 = vadd.s32 %v2865, 232
      %v2960 = vadd.s32 %v2865, 240
      %v2961 = vadd.s32 %v2865, 248
      %vm2962 = vcmp.eq.s32.totalorder %v2865, 0
      %vm2963 = vcmp.eq.s32.totalorder %v2931, 0
      %vm2964 = vcmp.eq.s32.totalorder %v2932, 0
      %vm2965 = vcmp.eq.s32.totalorder %v2933, 0
      %vm2966 = vcmp.eq.s32.totalorder %v2934, 0
      %vm2967 = vcmp.eq.s32.totalorder %v2935, 0
      %vm2968 = vcmp.eq.s32.totalorder %v2936, 0
      %vm2969 = vcmp.eq.s32.totalorder %v2937, 0
      %vm2970 = vcmp.eq.s32.totalorder %v2938, 0
      %vm2971 = vcmp.eq.s32.totalorder %v2939, 0
      %vm2972 = vcmp.eq.s32.totalorder %v2940, 0
      %vm2973 = vcmp.eq.s32.totalorder %v2941, 0
      %vm2974 = vcmp.eq.s32.totalorder %v2942, 0
      %vm2975 = vcmp.eq.s32.totalorder %v2943, 0
      %vm2976 = vcmp.eq.s32.totalorder %v2944, 0
      %vm2977 = vcmp.eq.s32.totalorder %v2945, 0
      %vm2978 = vcmp.eq.s32.totalorder %v2946, 0
      %vm2979 = vcmp.eq.s32.totalorder %v2947, 0
      %vm2980 = vcmp.eq.s32.totalorder %v2948, 0
      %vm2981 = vcmp.eq.s32.totalorder %v2949, 0
      %vm2982 = vcmp.eq.s32.totalorder %v2950, 0
      %vm2983 = vcmp.eq.s32.totalorder %v2951, 0
      %vm2984 = vcmp.eq.s32.totalorder %v2952, 0
      %vm2985 = vcmp.eq.s32.totalorder %v2953, 0
      %vm2986 = vcmp.eq.s32.totalorder %v2954, 0
      %vm2987 = vcmp.eq.s32.totalorder %v2955, 0
      %vm2988 = vcmp.eq.s32.totalorder %v2956, 0
      %vm2989 = vcmp.eq.s32.totalorder %v2957, 0
      %vm2990 = vcmp.eq.s32.totalorder %v2958, 0
      %vm2991 = vcmp.eq.s32.totalorder %v2959, 0
      %vm2992 = vcmp.eq.s32.totalorder %v2960, 0
      %vm2993 = vcmp.eq.s32.totalorder %v2961, 0
      %v2994 = vld [vmem:[#allocation2] sm:$0x3]
      %v2996 = vperm.slane %v2994, 0
      %v2997 = vperm.slane %v2994, 1
      %v3000 = vsel %vm2962, %v2996, %v2929
      %v3001 = vsel %vm2962, %v2997, %v2930
      %v3002 = vsel %vm2963, %v2996, %v2927
      %v3003 = vsel %vm2963, %v2997, %v2928
      %v3004 = vsel %vm2964, %v2996, %v2925
      %v3005 = vsel %vm2964, %v2997, %v2926
      %v3006 = vsel %vm2965, %v2996, %v2923
      %v3007 = vsel %vm2965, %v2997, %v2924
      %v3008 = vsel %vm2966, %v2996, %v2921
      %v3009 = vsel %vm2966, %v2997, %v2922
      %v3010 = vsel %vm2967, %v2996, %v2919
      %v3011 = vsel %vm2967, %v2997, %v2920
      %v3012 = vsel %vm2968, %v2996, %v2917
      %v3013 = vsel %vm2968, %v2997, %v2918
      %v3014 = vsel %vm2969, %v2996, %v2915
      %v3015 = vsel %vm2969, %v2997, %v2916
      %v3016 = vsel %vm2970, %v2996, %v2913
      %v3017 = vsel %vm2970, %v2997, %v2914
      %v3018 = vsel %vm2971, %v2996, %v2911
      %v3019 = vsel %vm2971, %v2997, %v2912
      %v3020 = vsel %vm2972, %v2996, %v2909
      %v3021 = vsel %vm2972, %v2997, %v2910
      %v3022 = vsel %vm2973, %v2996, %v2907
      %v3023 = vsel %vm2973, %v2997, %v2908
      %v3024 = vsel %vm2974, %v2996, %v2905
      %v3025 = vsel %vm2974, %v2997, %v2906
      %v3026 = vsel %vm2975, %v2996, %v2903
      %v3027 = vsel %vm2975, %v2997, %v2904
      %v3028 = vsel %vm2976, %v2996, %v2901
      %v3029 = vsel %vm2976, %v2997, %v2902
      %v3030 = vsel %vm2977, %v2996, %v2899
      %v3031 = vsel %vm2977, %v2997, %v2900
      %v3032 = vsel %vm2978, %v2996, %v2897
      %v3033 = vsel %vm2978, %v2997, %v2898
      %v3034 = vsel %vm2979, %v2996, %v2895
      %v3035 = vsel %vm2979, %v2997, %v2896
      %v3036 = vsel %vm2980, %v2996, %v2893
      %v3037 = vsel %vm2980, %v2997, %v2894
      %v3038 = vsel %vm2981, %v2996, %v2891
      %v3039 = vsel %vm2981, %v2997, %v2892
      %v3040 = vsel %vm2982, %v2996, %v2889
      %v3041 = vsel %vm2982, %v2997, %v2890
      %v3042 = vsel %vm2983, %v2996, %v2887
      %v3043 = vsel %vm2983, %v2997, %v2888
      %v3044 = vsel %vm2984, %v2996, %v2885
      %v3045 = vsel %vm2984, %v2997, %v2886
      %v3046 = vsel %vm2985, %v2996, %v2883
      %v3047 = vsel %vm2985, %v2997, %v2884
      %v3048 = vsel %vm2986, %v2996, %v2881
      %v3049 = vsel %vm2986, %v2997, %v2882
      %v3050 = vsel %vm2987, %v2996, %v2879
      %v3051 = vsel %vm2987, %v2997, %v2880
      %v3052 = vsel %vm2988, %v2996, %v2877
      %v3053 = vsel %vm2988, %v2997, %v2878
      %v3054 = vsel %vm2989, %v2996, %v2875
      %v3055 = vsel %vm2989, %v2997, %v2876
      %v3056 = vsel %vm2990, %v2996, %v2873
      %v3057 = vsel %vm2990, %v2997, %v2874
      %v3058 = vsel %vm2991, %v2996, %v2871
      %v3059 = vsel %vm2991, %v2997, %v2872
      %v3060 = vsel %vm2992, %v2996, %v2869
      %v3061 = vsel %vm2992, %v2997, %v2870
      %v3062 = vsel %vm2993, %v2996, %v2867
      %v3063 = vsel %vm2993, %v2997, %v2868
      %v3064 = vadd.f32 %v3000, %v1653
      %v3065 = vadd.f32 %v3001, %v2009
      %v3066 = vadd.f32 %v3002, %v1655
      %v3067 = vadd.f32 %v3003, %v2011
      %v3068 = vadd.f32 %v3004, %v1658
      %v3069 = vadd.f32 %v3005, %v2014
      %v3070 = vadd.f32 %v3006, %v1660
      %v3071 = vadd.f32 %v3007, %v2016
      %v3072 = vadd.f32 %v3008, %v1663
      %v3073 = vadd.f32 %v3009, %v2019
      %v3074 = vadd.f32 %v3010, %v1665
      %v3075 = vadd.f32 %v3011, %v2021
      %v3076 = vadd.f32 %v3012, %v1668
      %v3077 = vadd.f32 %v3013, %v2024
      %v3078 = vadd.f32 %v3014, %v1670
      %v3079 = vadd.f32 %v3015, %v2026
      %v3080 = vadd.f32 %v3016, %v1673
      %v3081 = vadd.f32 %v3017, %v2029
      %v3082 = vadd.f32 %v3018, %v1675
      %v3083 = vadd.f32 %v3019, %v2031
      %v3084 = vadd.f32 %v3020, %v1678
      %v3085 = vadd.f32 %v3021, %v2034
      %v3086 = vadd.f32 %v3022, %v1680
      %v3087 = vadd.f32 %v3023, %v2036
      %v3088 = vadd.f32 %v3024, %v1683
      %v3089 = vadd.f32 %v3025, %v2039
      %v3090 = vadd.f32 %v3026, %v1685
      %v3091 = vadd.f32 %v3027, %v2041
      %v3092 = vadd.f32 %v3028, %v1688
      %v3093 = vadd.f32 %v3029, %v2044
      %v3094 = vadd.f32 %v3030, %v1690
      %v3095 = vadd.f32 %v3031, %v2046
      %v3096 = vadd.f32 %v3032, %v1693
      %v3097 = vadd.f32 %v3033, %v2049
      %v3098 = vadd.f32 %v3034, %v1695
      %v3099 = vadd.f32 %v3035, %v2051
      %v3100 = vadd.f32 %v3036, %v1698
      %v3101 = vadd.f32 %v3037, %v2054
      %v3102 = vadd.f32 %v3038, %v1700
      %v3103 = vadd.f32 %v3039, %v2056
      %v3104 = vadd.f32 %v3040, %v1703
      %v3105 = vadd.f32 %v3041, %v2059
      %v3106 = vadd.f32 %v3042, %v1705
      %v3107 = vadd.f32 %v3043, %v2061
      %v3108 = vadd.f32 %v3044, %v1708
      %v3109 = vadd.f32 %v3045, %v2064
      %v3110 = vadd.f32 %v3046, %v1710
      %v3111 = vadd.f32 %v3047, %v2066
      %v3112 = vadd.f32 %v3048, %v1713
      %v3113 = vadd.f32 %v3049, %v2069
      %v3114 = vadd.f32 %v3050, %v1715
      %v3115 = vadd.f32 %v3051, %v2071
      %v3116 = vadd.f32 %v3052, %v1718
      %v3117 = vadd.f32 %v3053, %v2074
      %v3118 = vadd.f32 %v3054, %v1720
      %v3119 = vadd.f32 %v3055, %v2076
      %v3120 = vadd.f32 %v3056, %v1723
      %v3121 = vadd.f32 %v3057, %v2079
      %v3122 = vadd.f32 %v3058, %v1725
      %v3123 = vadd.f32 %v3059, %v2081
      %v3124 = vadd.f32 %v3060, %v1728
      %v3125 = vadd.f32 %v3061, %v2084
      %v3126 = vadd.f32 %v3062, %v1730
      %v3127 = vadd.f32 %v3063, %v2086
      %v3128 = vld [vmem:[%s2] sm:$0x3]
      %v3130 = vperm.slane %v3128, 0
      %v3131 = vperm.slane %v3128, 1
      %v3134 = vmul.f32 %v3064, %v3130
      %v3135 = vmul.f32 %v3065, %v3131
      %v3136 = vmul.f32 %v3066, %v3130
      %v3137 = vmul.f32 %v3067, %v3131
      %v3138 = vmul.f32 %v3068, %v3130
      %v3139 = vmul.f32 %v3069, %v3131
      %v3140 = vmul.f32 %v3070, %v3130
      %v3141 = vmul.f32 %v3071, %v3131
      %v3142 = vmul.f32 %v3072, %v3130
      %v3143 = vmul.f32 %v3073, %v3131
      %v3144 = vmul.f32 %v3074, %v3130
      %v3145 = vmul.f32 %v3075, %v3131
      %v3146 = vmul.f32 %v3076, %v3130
      %v3147 = vmul.f32 %v3077, %v3131
      %v3148 = vmul.f32 %v3078, %v3130
      %v3149 = vmul.f32 %v3079, %v3131
      %v3150 = vmul.f32 %v3080, %v3130
      %v3151 = vmul.f32 %v3081, %v3131
      %v3152 = vmul.f32 %v3082, %v3130
      %v3153 = vmul.f32 %v3083, %v3131
      %v3154 = vmul.f32 %v3084, %v3130
      %v3155 = vmul.f32 %v3085, %v3131
      %v3156 = vmul.f32 %v3086, %v3130
      %v3157 = vmul.f32 %v3087, %v3131
      %v3158 = vmul.f32 %v3088, %v3130
      %v3159 = vmul.f32 %v3089, %v3131
      %v3160 = vmul.f32 %v3090, %v3130
      %v3161 = vmul.f32 %v3091, %v3131
      %v3162 = vmul.f32 %v3092, %v3130
      %v3163 = vmul.f32 %v3093, %v3131
      %v3164 = vmul.f32 %v3094, %v3130
      %v3165 = vmul.f32 %v3095, %v3131
      %v3166 = vmul.f32 %v3096, %v3130
      %v3167 = vmul.f32 %v3097, %v3131
      %v3168 = vmul.f32 %v3098, %v3130
      %v3169 = vmul.f32 %v3099, %v3131
      %v3170 = vmul.f32 %v3100, %v3130
      %v3171 = vmul.f32 %v3101, %v3131
      %v3172 = vmul.f32 %v3102, %v3130
      %v3173 = vmul.f32 %v3103, %v3131
      %v3174 = vmul.f32 %v3104, %v3130
      %v3175 = vmul.f32 %v3105, %v3131
      %v3176 = vmul.f32 %v3106, %v3130
      %v3177 = vmul.f32 %v3107, %v3131
      %v3178 = vmul.f32 %v3108, %v3130
      %v3179 = vmul.f32 %v3109, %v3131
      %v3180 = vmul.f32 %v3110, %v3130
      %v3181 = vmul.f32 %v3111, %v3131
      %v3182 = vmul.f32 %v3112, %v3130
      %v3183 = vmul.f32 %v3113, %v3131
      %v3184 = vmul.f32 %v3114, %v3130
      %v3185 = vmul.f32 %v3115, %v3131
      %v3186 = vmul.f32 %v3116, %v3130
      %v3187 = vmul.f32 %v3117, %v3131
      %v3188 = vmul.f32 %v3118, %v3130
      %v3189 = vmul.f32 %v3119, %v3131
      %v3190 = vmul.f32 %v3120, %v3130
      %v3191 = vmul.f32 %v3121, %v3131
      %v3192 = vmul.f32 %v3122, %v3130
      %v3193 = vmul.f32 %v3123, %v3131
      %v3194 = vmul.f32 %v3124, %v3130
      %v3195 = vmul.f32 %v3125, %v3131
      %v3196 = vmul.f32 %v3126, %v3130
      %v3197 = vmul.f32 %v3127, %v3131
      %3198 = vst [vmem:[%s213] sm:$0xff] %v3134
      %3199 = vst [vmem:[%s213 + $0x8] sm:$0xff] %v3135
      %3200 = vst [vmem:[%s213 + $0x10] sm:$0xff] %v3136
      %3201 = vst [vmem:[%s213 + $0x18] sm:$0xff] %v3137
      %3202 = vst [vmem:[%s213 + $0x20] sm:$0xff] %v3138
      %3203 = vst [vmem:[%s213 + $0x28] sm:$0xff] %v3139
      %3204 = vst [vmem:[%s213 + $0x30] sm:$0xff] %v3140
      %3205 = vst [vmem:[%s213 + $0x38] sm:$0xff] %v3141
      %3206 = vst [vmem:[%s213 + $0x40] sm:$0xff] %v3142
      %3207 = vst [vmem:[%s213 + $0x48] sm:$0xff] %v3143
      %3208 = vst [vmem:[%s213 + $0x50] sm:$0xff] %v3144
      %3209 = vst [vmem:[%s213 + $0x58] sm:$0xff] %v3145
      %3210 = vst [vmem:[%s213 + $0x60] sm:$0xff] %v3146
      %3211 = vst [vmem:[%s213 + $0x68] sm:$0xff] %v3147
      %3212 = vst [vmem:[%s213 + $0x70] sm:$0xff] %v3148
      %3213 = vst [vmem:[%s213 + $0x78] sm:$0xff] %v3149
      %3214 = vst [vmem:[%s213 + $0x80] sm:$0xff] %v3150
      %3215 = vst [vmem:[%s213 + $0x88] sm:$0xff] %v3151
      %3216 = vst [vmem:[%s213 + $0x90] sm:$0xff] %v3152
      %3217 = vst [vmem:[%s213 + $0x98] sm:$0xff] %v3153
      %3218 = vst [vmem:[%s213 + $0xa0] sm:$0xff] %v3154
      %3219 = vst [vmem:[%s213 + $0xa8] sm:$0xff] %v3155
      %3220 = vst [vmem:[%s213 + $0xb0] sm:$0xff] %v3156
      %3221 = vst [vmem:[%s213 + $0xb8] sm:$0xff] %v3157
      %3222 = vst [vmem:[%s213 + $0xc0] sm:$0xff] %v3158
      %3223 = vst [vmem:[%s213 + $0xc8] sm:$0xff] %v3159
      %3224 = vst [vmem:[%s213 + $0xd0] sm:$0xff] %v3160
      %3225 = vst [vmem:[%s213 + $0xd8] sm:$0xff] %v3161
      %3226 = vst [vmem:[%s213 + $0xe0] sm:$0xff] %v3162
      %3227 = vst [vmem:[%s213 + $0xe8] sm:$0xff] %v3163
      %3228 = vst [vmem:[%s213 + $0xf0] sm:$0xff] %v3164
      %3229 = vst [vmem:[%s213 + $0xf8] sm:$0xff] %v3165
      %3230 = vst [vmem:[%s213 + $0x100] sm:$0xff] %v3166
      %3231 = vst [vmem:[%s213 + $0x108] sm:$0xff] %v3167
      %3232 = vst [vmem:[%s213 + $0x110] sm:$0xff] %v3168
      %3233 = vst [vmem:[%s213 + $0x118] sm:$0xff] %v3169
      %3234 = vst [vmem:[%s213 + $0x120] sm:$0xff] %v3170
      %3235 = vst [vmem:[%s213 + $0x128] sm:$0xff] %v3171
      %3236 = vst [vmem:[%s213 + $0x130] sm:$0xff] %v3172
      %3237 = vst [vmem:[%s213 + $0x138] sm:$0xff] %v3173
      %3238 = vst [vmem:[%s213 + $0x140] sm:$0xff] %v3174
      %3239 = vst [vmem:[%s213 + $0x148] sm:$0xff] %v3175
      %3240 = vst [vmem:[%s213 + $0x150] sm:$0xff] %v3176
      %3241 = vst [vmem:[%s213 + $0x158] sm:$0xff] %v3177
      %3242 = vst [vmem:[%s213 + $0x160] sm:$0xff] %v3178
      %3243 = vst [vmem:[%s213 + $0x168] sm:$0xff] %v3179
      %3244 = vst [vmem:[%s213 + $0x170] sm:$0xff] %v3180
      %3245 = vst [vmem:[%s213 + $0x178] sm:$0xff] %v3181
      %3246 = vst [vmem:[%s213 + $0x180] sm:$0xff] %v3182
      %3247 = vst [vmem:[%s213 + $0x188] sm:$0xff] %v3183
      %3248 = vst [vmem:[%s213 + $0x190] sm:$0xff] %v3184
      %3249 = vst [vmem:[%s213 + $0x198] sm:$0xff] %v3185
      %3250 = vst [vmem:[%s213 + $0x1a0] sm:$0xff] %v3186
      %3251 = vst [vmem:[%s213 + $0x1a8] sm:$0xff] %v3187
      %3252 = vst [vmem:[%s213 + $0x1b0] sm:$0xff] %v3188
      %3253 = vst [vmem:[%s213 + $0x1b8] sm:$0xff] %v3189
      %3254 = vst [vmem:[%s213 + $0x1c0] sm:$0xff] %v3190
      %3255 = vst [vmem:[%s213 + $0x1c8] sm:$0xff] %v3191
      %3256 = vst [vmem:[%s213 + $0x1d0] sm:$0xff] %v3192
      %3257 = vst [vmem:[%s213 + $0x1d8] sm:$0xff] %v3193
      %3258 = vst [vmem:[%s213 + $0x1e0] sm:$0xff] %v3194
      %3259 = vst [vmem:[%s213 + $0x1e8] sm:$0xff] %v3195
      %3260 = vst [vmem:[%s213 + $0x1f0] sm:$0xff] %v3196
      %3261 = vst [vmem:[%s213 + $0x1f8] sm:$0xff] %v3197
      %3264 = vst [vmem:[#allocation1] sm:$0xff] %v2442
      %3265 = vst [vmem:[#allocation1 + $0x9] sm:$0xff] %v2798
      %s3266 = scalar_lea.vmem [#allocation1], 7
      %v3267 = vld [vmem:[%s3266] ss:$9 sm:$0xff]
      %v3269 = vlaneseq
      %vm3270 = vcmp.ge.s32.totalorder %v3269, 0
      %vm3271 = vcmp.lt.s32.totalorder %v3269, 256
      %vm3272 = vmand %vm3270, %vm3271
      %3273 = vst.msk [vmem:[#allocation2] sm:$0x3] %vm3272, %v3267
      %s3274 = smul.u32 32, %s19
      %p3275 = scmp.lt.s32.totalorder %s18, 1
      %s3276 = scalar_select %p3275, %s18, 1
      %p3277 = scmp.lt.s32.totalorder %s3274, 31
      %s3278 = scalar_select %p3277, %s3274, 31
      %s3279 = smul.addr %s3278, 2
      %s3280 = smul.addr %s3276, 64
      %s3281 = sadd.s32 %s3279, %s3280
      %s3282 = smul.addr %s3281, 8
      %s3283 = scalar_lea.vmem %s3, %s3282
      // Predicated region
      $region37: #{_time_stretch.3} parent=31 // pred_check
        %p3284 = pneg %p116
      $region38: #{_time_stretch.3} parent=31 // pred_check_branch
        %3286 = sbr.rel (%p3284) target = $region40
      $region39: #{_time_stretch.3} parent=31 // pred_region
        %s3287 = smul.u32 32, %s19
      $region40: #{_time_stretch.3} parent=31 // pred_fallthru
        _
    $region32: #{_time_stretch.3} parent=5 // pred_fallthru
      _
    %p3288 = scmp.le.s32.totalorder 2, %s9
    // Predicated region
    $region41: #{_time_stretch.3} parent=5 // pred_check
      %p3289 = pneg %p3288
    $region42: #{_time_stretch.3} parent=5 // pred_check_branch
      %3291 = sbr.rel (%p3289) target = $region44
    $region43: #{_time_stretch.3} parent=5 // pred_region
      %s3292 = ssub.s32 %s9, 2
      // Predicated region
      $region45: #{_time_stretch.3} parent=43 // pred_check
        %p3293 = pneg %p122
      $region46: #{_time_stretch.3} parent=43 // pred_check_branch
        %3295 = sbr.rel (%p3293) target = $region48
      $region47: #{_time_stretch.3} parent=43 // pred_region
        %s3296 = smul.u32 32, %s21
        %p3297 = scmp.lt.s32.totalorder %s20, 1
        %s3298 = scalar_select %p3297, %s20, 1
        %p3299 = scmp.lt.s32.totalorder %s3296, 31
        %s3300 = scalar_select %p3299, %s3296, 31
        %s3301 = smul.addr %s3300, 2
        %s3302 = smul.addr %s3298, 64
        %s3303 = sadd.s32 %s3301, %s3302
        %s3304 = smul.addr %s3303, 8
        %s3305 = scalar_lea.vmem %s3, %s3304
      $region48: #{_time_stretch.3} parent=43 // pred_fallthru
        _
    $region44: #{_time_stretch.3} parent=5 // pred_fallthru
      _
  $region6: #{_time_stretch.3} parent=0 // loop_footer
    %s13 = sadd.s32 1, %s9
  $region7: #{_time_stretch.3} parent=0 // loop_footer_branch
    %8 = sbr.rel target = $region3
  $region8: #{_time_stretch.3} parent=0 // loop_exit
    _

</llo_original>
